<compile_context>
chip_gen: v7x
topology: tpu7x:2x2x1
jax: 0.10.0
libtpu: 0.0.40
codegen_flags: <defaults>
</compile_context>

<pallas_src>
import functools

import jax
import jax.numpy as jnp
import numpy as np
from jax.experimental import pallas as pl
from jax.experimental.pallas import tpu as pltpu


def _round_up(x, m):
    return (x + m - 1) // m * m


def _conv_kernel(x_ref, w_ref, mask_ref, o_ref, sum_ref, ssq_ref, *,
                 offsets, hwq, tn):
    """One grid step = `tn` images.

    x_ref    : (tn, rows_in, Cin)     bf16, spatially padded + flattened NHWC
    w_ref    : (K*K, Cin, Cout_pad)   bf16, VMEM-resident
    mask_ref : (hwq, 1)               f32, 1.0 on valid output columns
    o_ref    : (tn, hwq, Cout_pad)    f32 conv output at padded width Wq
    sum_ref  : (1, 1, Cout_pad)       f32 per-step masked channel sum
    ssq_ref  : (1, 1, Cout_pad)       f32 per-step masked channel sum-of-squares
    """
    cout_p = w_ref.shape[-1]
    mask = mask_ref[...]                                    # (hwq, 1)
    s_tot = jnp.zeros((1, cout_p), jnp.float32)
    q_tot = jnp.zeros((1, cout_p), jnp.float32)

    for b in range(tn):                                     # static unroll
        acc = jnp.zeros((hwq, cout_p), jnp.float32)
        for kidx, off in enumerate(offsets):                # K*K taps, static
            xs = x_ref[b, off:off + hwq, :]                 # (hwq, Cin) slice, no copy from HBM
            acc = acc + jnp.dot(xs, w_ref[kidx],
                                preferred_element_type=jnp.float32)
        am = acc * mask                                     # zero the discarded columns
        o_ref[b] = am
        s_tot = s_tot + jnp.sum(am, axis=0, keepdims=True)
        q_tot = q_tot + jnp.sum(am * am, axis=0, keepdims=True)

    sum_ref[0] = s_tot
    ssq_ref[0] = q_tot


def conv_forward(x_nchw, weight_oikk, *, bn=False, bn_gamma=None, bn_beta=None,
                 eps=1e-5, compute_dtype=jnp.bfloat16, batch_tile=4):
    """x_nchw: (N, Cin, H, W); weight_oikk: (Cout, Cin, K, K)  (PyTorch layout).

    Returns NCHW output matching nn.Conv2d(stride=1, padding=K//2, bias=False),
    optionally followed by training-mode BatchNorm2d.
    """
    n, cin, h, w = x_nchw.shape
    cout, cin_w, k, k2 = weight_oikk.shape
    assert cin_w == cin and k == k2
    assert k % 2 == 1, "padding=K//2 is only a 'same' conv for odd kernel sizes"
    p = k // 2

    wq = w + 2 * p                    # padded width (= wide-output width)
    rows_in = (h + 2 * p + 1) * wq    # +1 extra zero row: slack for discarded cols
    hwq = h * wq                      # wide-output rows per image
    cout_p = _round_up(cout, 128)     # lane-dense output / full MXU N dim

    # Batch tiling: keep >= 2 grid steps when possible (v7x has 2 TensorCores).
    tn = max(1, min(batch_tile, n // 2)) if n >= 2 else 1
    n_pad = _round_up(n, tn)
    grid_n = n_pad // tn

    # ---- glue (fuses into ~one XLA pass): NCHW->NHWC, pad, flatten, cast ----
    # TODO(synk): drop the NCHW<->NHWC boundary transposes if the surrounding
    # model keeps activations in NHWC.
    x_nhwc = jnp.transpose(x_nchw, (0, 2, 3, 1))
    x_padded = jnp.pad(x_nhwc, ((0, n_pad - n), (p, p + 1), (p, p), (0, 0)))
    x_flat = x_padded.reshape(n_pad, rows_in, cin).astype(compute_dtype)

    # Weights: (Cout, Cin, K, K) -> (K*K, Cin, Cout_pad), resident in VMEM.
    w_taps = jnp.transpose(weight_oikk, (2, 3, 1, 0)).reshape(k * k, cin, cout)
    w_taps = jnp.pad(w_taps, ((0, 0), (0, 0), (0, cout_p - cout)))
    w_taps = w_taps.astype(compute_dtype)

    # Valid-column mask for the wide output (columns j < W of each width-Wq row).
    mask = ((jnp.arange(hwq) % wq) < w).astype(jnp.float32).reshape(hwq, 1)

    # Flat row offset of conv tap (kh, kw) inside the flattened padded image.
    offsets = tuple(kh * wq + kw for kh in range(k) for kw in range(k))

    kernel = functools.partial(_conv_kernel, offsets=offsets, hwq=hwq, tn=tn)

    out_wide, sums, ssqs = pl.pallas_call(
        kernel,
        out_shape=(
            jax.ShapeDtypeStruct((n_pad, hwq, cout_p), jnp.float32),
            jax.ShapeDtypeStruct((grid_n, 1, cout_p), jnp.float32),
            jax.ShapeDtypeStruct((grid_n, 1, cout_p), jnp.float32),
        ),
        grid_spec=pltpu.PrefetchScalarGridSpec(
            num_scalar_prefetch=0,
            grid=(grid_n,),
            in_specs=[
                pl.BlockSpec((tn, rows_in, cin), lambda i: (i, 0, 0)),
                pl.BlockSpec((k * k, cin, cout_p), lambda i: (0, 0, 0)),
                pl.BlockSpec((hwq, 1), lambda i: (0, 0)),
            ],
            out_specs=(
                pl.BlockSpec((tn, hwq, cout_p), lambda i: (i, 0, 0)),
                pl.BlockSpec((1, 1, cout_p), lambda i: (i, 0, 0)),
                pl.BlockSpec((1, 1, cout_p), lambda i: (i, 0, 0)),
            ),
        ),
        compiler_params=pltpu.CompilerParams(
            dimension_semantics=("parallel",),
        ),
    )(x_flat, w_taps, mask)

    # Slice the valid region: (N, H, W, Cout).
    out_nhwc = out_wide.reshape(n_pad, h, wq, cout_p)[:n, :, :w, :cout]

    if bn:
        # Training-mode BatchNorm2d (batch statistics, biased variance), using
        # the kernel-fused sums; normalize fuses with the slice/transpose above.
        # TODO(synk): eval-mode BN (running_mean/var buffers) not modeled.
        count = n * h * w
        ch_sum = jnp.sum(sums[:, 0, :cout], axis=0)
        ch_ssq = jnp.sum(ssqs[:, 0, :cout], axis=0)
        mean = ch_sum / count
        var = jnp.maximum(ch_ssq / count - mean * mean, 0.0)
        gamma = (jnp.ones((cout,), jnp.float32) if bn_gamma is None
                 else bn_gamma.astype(jnp.float32))
        beta = (jnp.zeros((cout,), jnp.float32) if bn_beta is None
                else bn_beta.astype(jnp.float32))
        scale = gamma * jax.lax.rsqrt(var + eps)
        out_nhwc = out_nhwc * scale + (beta - mean * scale)

    return jnp.transpose(out_nhwc, (0, 3, 1, 2))   # back to NCHW


# ---------------------------------------------------------------------------
# Demo / self-check
# ---------------------------------------------------------------------------
if __name__ == "__main__":
    # Shapes consistent with Conv(filters0=4, filters1=8, kernel_size=3).
    N, CIN, COUT, K, H, W = 2, 4, 8, 3, 16, 16

    key = jax.random.PRNGKey(0)
    kx, kw_ = jax.random.split(key)
    x = jax.random.normal(kx, (N, CIN, H, W), dtype=jnp.float32)
    weight = jax.random.normal(kw_, (COUT, CIN, K, K), dtype=jnp.float32) * 0.1

    fwd = jax.jit(functools.partial(conv_forward, bn=False))
    out = fwd(x, weight)
    jax.block_until_ready(out)

    # Reference: XLA conv on the same bf16-rounded operands, f32 accumulate.
    x_bf = x.astype(jnp.bfloat16).astype(jnp.float32)
    w_bf = weight.astype(jnp.bfloat16).astype(jnp.float32)
    ref = jax.lax.conv_general_dilated(
        x_bf, w_bf, window_strides=(1, 1), padding="SAME",
        dimension_numbers=("NCHW", "OIHW", "NCHW"),
        precision=jax.lax.Precision.HIGHEST)
    np.testing.assert_allclose(np.asarray(out), np.asarray(ref),
                               rtol=2e-2, atol=2e-2)

    # Also exercise the fused-BN path (training-mode batch statistics).
    fwd_bn = jax.jit(functools.partial(conv_forward, bn=True))
    out_bn = fwd_bn(x, weight)
    jax.block_until_ready(out_bn)
    mean = jnp.mean(ref, axis=(0, 2, 3), keepdims=True)
    var = jnp.mean((ref - mean) ** 2, axis=(0, 2, 3), keepdims=True)
    ref_bn = (ref - mean) * jax.lax.rsqrt(var + 1e-5)
    np.testing.assert_allclose(np.asarray(out_bn), np.asarray(ref_bn),
                               rtol=2e-2, atol=2e-2)

    print("KERNEL_OK")
</pallas_src>

<mosaic_0001>
module attributes {stable_mosaic.version = 11 : i64} {
  func.func @_conv_kernel(%arg0: i32, %arg1: memref<1x342x4xbf16, #tpu.memory_space<vmem>>, %arg2: memref<9x4x128xbf16, #tpu.memory_space<vmem>>, %arg3: memref<288x1xf32, #tpu.memory_space<vmem>>, %arg4: memref<1x288x128xf32, #tpu.memory_space<vmem>>, %arg5: memref<1x1x128xf32, #tpu.memory_space<vmem>>, %arg6: memref<1x1x128xf32, #tpu.memory_space<vmem>>) attributes {dimension_semantics = [#tpu.dimension_semantics<parallel>], iteration_bounds = array<i64: 2>, scalar_prefetch = 0 : i64, scratch_operands = 0 : i64, tpu.core_type = #tpu.core_type<tc>, window_params = [{transform_indices = @transform_0, window_bounds = array<i64: 1, 342, 4>}, {pipeline_mode = #tpu.pipeline_mode<synchronous>, transform_indices = @transform_1, window_bounds = array<i64: 9, 4, 128>}, {pipeline_mode = #tpu.pipeline_mode<synchronous>, transform_indices = @transform_2, window_bounds = array<i64: 288, 1>}, {transform_indices = @transform_3, window_bounds = array<i64: 1, 288, 128>}, {transform_indices = @transform_4, window_bounds = array<i64: 1, 1, 128>}, {transform_indices = @transform_5, window_bounds = array<i64: 1, 1, 128>}]} {
    %c0 = arith.constant 0 : index
    %c0_0 = arith.constant 0 : index
    %0 = vector.load %arg3[%c0, %c0_0] : memref<288x1xf32, #tpu.memory_space<vmem>>, vector<288x1xf32>
    %cst = arith.constant 0.000000e+00 : f32
    %1 = vector.broadcast %cst : f32 to vector<1x128xf32>
    %cst_1 = arith.constant 0.000000e+00 : f32
    %2 = vector.broadcast %cst_1 : f32 to vector<1x128xf32>
    %cst_2 = arith.constant 0.000000e+00 : f32
    %3 = vector.broadcast %cst_2 : f32 to vector<288x128xf32>
    %c0_3 = arith.constant 0 : index
    %c0_4 = arith.constant 0 : index
    %c0_5 = arith.constant 0 : index
    %4 = vector.load %arg1[%c0_3, %c0_4, %c0_5] : memref<1x342x4xbf16, #tpu.memory_space<vmem>>, vector<1x288x4xbf16>
    %5 = vector.shape_cast %4 : vector<1x288x4xbf16> to vector<288x4xbf16>
    %c0_6 = arith.constant 0 : index
    %c0_7 = arith.constant 0 : index
    %c0_8 = arith.constant 0 : index
    %6 = vector.load %arg2[%c0_6, %c0_7, %c0_8] : memref<9x4x128xbf16, #tpu.memory_space<vmem>>, vector<1x4x128xbf16>
    %7 = vector.shape_cast %6 : vector<1x4x128xbf16> to vector<4x128xbf16>
    %cst_9 = arith.constant dense<0.000000e+00> : vector<288x128xf32>
    %8 = tpu.matmul %5, %7, %cst_9 {dimension_numbers = #tpu.dot_dimension_numbers<[1], [0], [0], [1], [0, 0, 1, 1], [], []>} : vector<288x4xbf16>, vector<4x128xbf16>, vector<288x128xf32> -> vector<288x128xf32>
    %9 = arith.addf %3, %8 : vector<288x128xf32>
    %c0_10 = arith.constant 0 : index
    %c1 = arith.constant 1 : index
    %c0_11 = arith.constant 0 : index
    %10 = vector.load %arg1[%c0_10, %c1, %c0_11] : memref<1x342x4xbf16, #tpu.memory_space<vmem>>, vector<1x288x4xbf16>
    %11 = vector.shape_cast %10 : vector<1x288x4xbf16> to vector<288x4xbf16>
    %c1_12 = arith.constant 1 : index
    %c0_13 = arith.constant 0 : index
    %c0_14 = arith.constant 0 : index
    %12 = vector.load %arg2[%c1_12, %c0_13, %c0_14] : memref<9x4x128xbf16, #tpu.memory_space<vmem>>, vector<1x4x128xbf16>
    %13 = vector.shape_cast %12 : vector<1x4x128xbf16> to vector<4x128xbf16>
    %cst_15 = arith.constant dense<0.000000e+00> : vector<288x128xf32>
    %14 = tpu.matmul %11, %13, %cst_15 {dimension_numbers = #tpu.dot_dimension_numbers<[1], [0], [0], [1], [0, 0, 1, 1], [], []>} : vector<288x4xbf16>, vector<4x128xbf16>, vector<288x128xf32> -> vector<288x128xf32>
    %15 = arith.addf %9, %14 : vector<288x128xf32>
    %c0_16 = arith.constant 0 : index
    %c2 = arith.constant 2 : index
    %c0_17 = arith.constant 0 : index
    %16 = vector.load %arg1[%c0_16, %c2, %c0_17] : memref<1x342x4xbf16, #tpu.memory_space<vmem>>, vector<1x288x4xbf16>
    %17 = vector.shape_cast %16 : vector<1x288x4xbf16> to vector<288x4xbf16>
    %c2_18 = arith.constant 2 : index
    %c0_19 = arith.constant 0 : index
    %c0_20 = arith.constant 0 : index
    %18 = vector.load %arg2[%c2_18, %c0_19, %c0_20] : memref<9x4x128xbf16, #tpu.memory_space<vmem>>, vector<1x4x128xbf16>
    %19 = vector.shape_cast %18 : vector<1x4x128xbf16> to vector<4x128xbf16>
    %cst_21 = arith.constant dense<0.000000e+00> : vector<288x128xf32>
    %20 = tpu.matmul %17, %19, %cst_21 {dimension_numbers = #tpu.dot_dimension_numbers<[1], [0], [0], [1], [0, 0, 1, 1], [], []>} : vector<288x4xbf16>, vector<4x128xbf16>, vector<288x128xf32> -> vector<288x128xf32>
    %21 = arith.addf %15, %20 : vector<288x128xf32>
    %c0_22 = arith.constant 0 : index
    %c18 = arith.constant 18 : index
    %c0_23 = arith.constant 0 : index
    %22 = vector.load %arg1[%c0_22, %c18, %c0_23] : memref<1x342x4xbf16, #tpu.memory_space<vmem>>, vector<1x288x4xbf16>
    %23 = vector.shape_cast %22 : vector<1x288x4xbf16> to vector<288x4xbf16>
    %c3 = arith.constant 3 : index
    %c0_24 = arith.constant 0 : index
    %c0_25 = arith.constant 0 : index
    %24 = vector.load %arg2[%c3, %c0_24, %c0_25] : memref<9x4x128xbf16, #tpu.memory_space<vmem>>, vector<1x4x128xbf16>
    %25 = vector.shape_cast %24 : vector<1x4x128xbf16> to vector<4x128xbf16>
    %cst_26 = arith.constant dense<0.000000e+00> : vector<288x128xf32>
    %26 = tpu.matmul %23, %25, %cst_26 {dimension_numbers = #tpu.dot_dimension_numbers<[1], [0], [0], [1], [0, 0, 1, 1], [], []>} : vector<288x4xbf16>, vector<4x128xbf16>, vector<288x128xf32> -> vector<288x128xf32>
    %27 = arith.addf %21, %26 : vector<288x128xf32>
    %c0_27 = arith.constant 0 : index
    %c19 = arith.constant 19 : index
    %c0_28 = arith.constant 0 : index
    %28 = vector.load %arg1[%c0_27, %c19, %c0_28] : memref<1x342x4xbf16, #tpu.memory_space<vmem>>, vector<1x288x4xbf16>
    %29 = vector.shape_cast %28 : vector<1x288x4xbf16> to vector<288x4xbf16>
    %c4 = arith.constant 4 : index
    %c0_29 = arith.constant 0 : index
    %c0_30 = arith.constant 0 : index
    %30 = vector.load %arg2[%c4, %c0_29, %c0_30] : memref<9x4x128xbf16, #tpu.memory_space<vmem>>, vector<1x4x128xbf16>
    %31 = vector.shape_cast %30 : vector<1x4x128xbf16> to vector<4x128xbf16>
    %cst_31 = arith.constant dense<0.000000e+00> : vector<288x128xf32>
    %32 = tpu.matmul %29, %31, %cst_31 {dimension_numbers = #tpu.dot_dimension_numbers<[1], [0], [0], [1], [0, 0, 1, 1], [], []>} : vector<288x4xbf16>, vector<4x128xbf16>, vector<288x128xf32> -> vector<288x128xf32>
    %33 = arith.addf %27, %32 : vector<288x128xf32>
    %c0_32 = arith.constant 0 : index
    %c20 = arith.constant 20 : index
    %c0_33 = arith.constant 0 : index
    %34 = vector.load %arg1[%c0_32, %c20, %c0_33] : memref<1x342x4xbf16, #tpu.memory_space<vmem>>, vector<1x288x4xbf16>
    %35 = vector.shape_cast %34 : vector<1x288x4xbf16> to vector<288x4xbf16>
    %c5 = arith.constant 5 : index
    %c0_34 = arith.constant 0 : index
    %c0_35 = arith.constant 0 : index
    %36 = vector.load %arg2[%c5, %c0_34, %c0_35] : memref<9x4x128xbf16, #tpu.memory_space<vmem>>, vector<1x4x128xbf16>
    %37 = vector.shape_cast %36 : vector<1x4x128xbf16> to vector<4x128xbf16>
    %cst_36 = arith.constant dense<0.000000e+00> : vector<288x128xf32>
    %38 = tpu.matmul %35, %37, %cst_36 {dimension_numbers = #tpu.dot_dimension_numbers<[1], [0], [0], [1], [0, 0, 1, 1], [], []>} : vector<288x4xbf16>, vector<4x128xbf16>, vector<288x128xf32> -> vector<288x128xf32>
    %39 = arith.addf %33, %38 : vector<288x128xf32>
    %c0_37 = arith.constant 0 : index
    %c36 = arith.constant 36 : index
    %c0_38 = arith.constant 0 : index
    %40 = vector.load %arg1[%c0_37, %c36, %c0_38] : memref<1x342x4xbf16, #tpu.memory_space<vmem>>, vector<1x288x4xbf16>
    %41 = vector.shape_cast %40 : vector<1x288x4xbf16> to vector<288x4xbf16>
    %c6 = arith.constant 6 : index
    %c0_39 = arith.constant 0 : index
    %c0_40 = arith.constant 0 : index
    %42 = vector.load %arg2[%c6, %c0_39, %c0_40] : memref<9x4x128xbf16, #tpu.memory_space<vmem>>, vector<1x4x128xbf16>
    %43 = vector.shape_cast %42 : vector<1x4x128xbf16> to vector<4x128xbf16>
    %cst_41 = arith.constant dense<0.000000e+00> : vector<288x128xf32>
    %44 = tpu.matmul %41, %43, %cst_41 {dimension_numbers = #tpu.dot_dimension_numbers<[1], [0], [0], [1], [0, 0, 1, 1], [], []>} : vector<288x4xbf16>, vector<4x128xbf16>, vector<288x128xf32> -> vector<288x128xf32>
    %45 = arith.addf %39, %44 : vector<288x128xf32>
    %c0_42 = arith.constant 0 : index
    %c37 = arith.constant 37 : index
    %c0_43 = arith.constant 0 : index
    %46 = vector.load %arg1[%c0_42, %c37, %c0_43] : memref<1x342x4xbf16, #tpu.memory_space<vmem>>, vector<1x288x4xbf16>
    %47 = vector.shape_cast %46 : vector<1x288x4xbf16> to vector<288x4xbf16>
    %c7 = arith.constant 7 : index
    %c0_44 = arith.constant 0 : index
    %c0_45 = arith.constant 0 : index
    %48 = vector.load %arg2[%c7, %c0_44, %c0_45] : memref<9x4x128xbf16, #tpu.memory_space<vmem>>, vector<1x4x128xbf16>
    %49 = vector.shape_cast %48 : vector<1x4x128xbf16> to vector<4x128xbf16>
    %cst_46 = arith.constant dense<0.000000e+00> : vector<288x128xf32>
    %50 = tpu.matmul %47, %49, %cst_46 {dimension_numbers = #tpu.dot_dimension_numbers<[1], [0], [0], [1], [0, 0, 1, 1], [], []>} : vector<288x4xbf16>, vector<4x128xbf16>, vector<288x128xf32> -> vector<288x128xf32>
    %51 = arith.addf %45, %50 : vector<288x128xf32>
    %c0_47 = arith.constant 0 : index
    %c38 = arith.constant 38 : index
    %c0_48 = arith.constant 0 : index
    %52 = vector.load %arg1[%c0_47, %c38, %c0_48] : memref<1x342x4xbf16, #tpu.memory_space<vmem>>, vector<1x288x4xbf16>
    %53 = vector.shape_cast %52 : vector<1x288x4xbf16> to vector<288x4xbf16>
    %c8 = arith.constant 8 : index
    %c0_49 = arith.constant 0 : index
    %c0_50 = arith.constant 0 : index
    %54 = vector.load %arg2[%c8, %c0_49, %c0_50] : memref<9x4x128xbf16, #tpu.memory_space<vmem>>, vector<1x4x128xbf16>
    %55 = vector.shape_cast %54 : vector<1x4x128xbf16> to vector<4x128xbf16>
    %cst_51 = arith.constant dense<0.000000e+00> : vector<288x128xf32>
    %56 = tpu.matmul %53, %55, %cst_51 {dimension_numbers = #tpu.dot_dimension_numbers<[1], [0], [0], [1], [0, 0, 1, 1], [], []>} : vector<288x4xbf16>, vector<4x128xbf16>, vector<288x128xf32> -> vector<288x128xf32>
    %57 = arith.addf %51, %56 : vector<288x128xf32>
    %58 = vector.broadcast %0 : vector<288x1xf32> to vector<288x128xf32>
    %59 = arith.mulf %57, %58 : vector<288x128xf32>
    %c0_52 = arith.constant 0 : index
    %c0_53 = arith.constant 0 : index
    %c0_54 = arith.constant 0 : index
    %60 = vector.load %arg4[%c0_52, %c0_53, %c0_54] : memref<1x288x128xf32, #tpu.memory_space<vmem>>, vector<1x288x128xf32>
    %61 = vector.shape_cast %60 : vector<1x288x128xf32> to vector<288x128xf32>
    %62 = vector.shape_cast %59 : vector<288x128xf32> to vector<1x288x128xf32>
    tpu.vector_store %arg4[%c0_52, %c0_53, %c0_54], %62 {strides = array<i32>} : memref<1x288x128xf32, #tpu.memory_space<vmem>>, vector<1x288x128xf32>,
    %cst_55 = arith.constant dense<0.000000e+00> : vector<128xf32>
    %63 = vector.multi_reduction <add>, %59, %cst_55 [0] : vector<288x128xf32> to vector<128xf32>
    %64 = vector.shape_cast %63 : vector<128xf32> to vector<1x128xf32>
    %65 = arith.addf %1, %64 : vector<1x128xf32>
    %66 = arith.mulf %59, %59 : vector<288x128xf32>
    %cst_56 = arith.constant dense<0.000000e+00> : vector<128xf32>
    %67 = vector.multi_reduction <add>, %66, %cst_56 [0] : vector<288x128xf32> to vector<128xf32>
    %68 = vector.shape_cast %67 : vector<128xf32> to vector<1x128xf32>
    %69 = arith.addf %2, %68 : vector<1x128xf32>
    %c0_57 = arith.constant 0 : index
    %c0_58 = arith.constant 0 : index
    %c0_59 = arith.constant 0 : index
    %70 = vector.load %arg5[%c0_57, %c0_58, %c0_59] : memref<1x1x128xf32, #tpu.memory_space<vmem>>, vector<1x1x128xf32>
    %71 = vector.shape_cast %70 : vector<1x1x128xf32> to vector<1x128xf32>
    %72 = vector.shape_cast %65 : vector<1x128xf32> to vector<1x1x128xf32>
    tpu.vector_store %arg5[%c0_57, %c0_58, %c0_59], %72 {strides = array<i32>} : memref<1x1x128xf32, #tpu.memory_space<vmem>>, vector<1x1x128xf32>,
    %c0_60 = arith.constant 0 : index
    %c0_61 = arith.constant 0 : index
    %c0_62 = arith.constant 0 : index
    %73 = vector.load %arg6[%c0_60, %c0_61, %c0_62] : memref<1x1x128xf32, #tpu.memory_space<vmem>>, vector<1x1x128xf32>
    %74 = vector.shape_cast %73 : vector<1x1x128xf32> to vector<1x128xf32>
    %75 = vector.shape_cast %69 : vector<1x128xf32> to vector<1x1x128xf32>
    tpu.vector_store %arg6[%c0_60, %c0_61, %c0_62], %75 {strides = array<i32>} : memref<1x1x128xf32, #tpu.memory_space<vmem>>, vector<1x1x128xf32>,
    return
  }
  func.func @transform_0(%arg0: i32) -> (i32, i32, i32) {
    %c0_i32 = arith.constant 0 : i32
    %c0_i32_0 = arith.constant 0 : i32
    %c0_i32_1 = arith.constant 0 : i32
    return %arg0, %c0_i32, %c0_i32_0 : i32, i32, i32
  }
  func.func @transform_1(%arg0: i32) -> (i32, i32, i32) {
    %c0_i32 = arith.constant 0 : i32
    %c0_i32_0 = arith.constant 0 : i32
    %c0_i32_1 = arith.constant 0 : i32
    %c0_i32_2 = arith.constant 0 : i32
    return %c0_i32, %c0_i32_0, %c0_i32_1 : i32, i32, i32
  }
  func.func @transform_2(%arg0: i32) -> (i32, i32) {
    %c0_i32 = arith.constant 0 : i32
    %c0_i32_0 = arith.constant 0 : i32
    %c0_i32_1 = arith.constant 0 : i32
    return %c0_i32, %c0_i32_0 : i32, i32
  }
  func.func @transform_3(%arg0: i32) -> (i32, i32, i32) {
    %c0_i32 = arith.constant 0 : i32
    %c0_i32_0 = arith.constant 0 : i32
    %c0_i32_1 = arith.constant 0 : i32
    return %arg0, %c0_i32, %c0_i32_0 : i32, i32, i32
  }
  func.func @transform_4(%arg0: i32) -> (i32, i32, i32) {
    %c0_i32 = arith.constant 0 : i32
    %c0_i32_0 = arith.constant 0 : i32
    %c0_i32_1 = arith.constant 0 : i32
    return %arg0, %c0_i32, %c0_i32_0 : i32, i32, i32
  }
  func.func @transform_5(%arg0: i32) -> (i32, i32, i32) {
    %c0_i32 = arith.constant 0 : i32
    %c0_i32_0 = arith.constant 0 : i32
    %c0_i32_1 = arith.constant 0 : i32
    return %arg0, %c0_i32, %c0_i32_0 : i32, i32, i32
  }
}

</mosaic_0001>

<llo_original>
// kernel: conv_forward.1
$region0: #{conv_forward.1}
  #allocation0 [shape = 'u32[]', space=smem, size = 0x4, offset = 0x4, fixed_abs, tag = 'smem constant byte address 0x4 - core index']
  #allocation1 [shape = 'u32[144,128]{1,0:T(1,128)}', space=vmem, size = 0x12000, scoped, tag = 'internal scratch']
  %s0 = inlined_call_operand.vmem [shape: bf16[2,342,4], index: 0, kind: input, shape index: {}]
  %s1 = inlined_call_operand.vmem [shape: bf16[9,4,128], index: 1, kind: input, shape index: {}]
  %s2 = inlined_call_operand.vmem [shape: f32[288,1], index: 2, kind: input, shape index: {}]
  %s3 = inlined_call_operand.vmem [shape: f32[2,288,128], index: 3, kind: output, shape index: {0}]
  %s4 = inlined_call_operand.hbm [shape: f32[2,1,128], index: 4, kind: output, shape index: {1}]
  %s5 = inlined_call_operand.hbm [shape: f32[2,1,128], index: 5, kind: output, shape index: {2}]
  %6 = xla_tuple %s3, %s4, %s5
  %s7 = sld [smem:[#allocation0]]
  $region61: #{conv_forward.1} parent=0
    _
  %s9 = ssub.s32 1, %s7
  %s10 = scalar_select 0, %s9, %s7
  $region1: #{conv_forward.1} parent=0
    #allocation2 [shape = 'u8[1024]{0}', space=vmem, size = 0x400, scoped, tag = 'output window, operand 1']
    #allocation3 [shape = 's32[2]{0}', space=sflag, size = 0x8, scoped, tag = 'scoped memory for conv_forward.1']
    #allocation4 [shape = 'u8[1024]{0}', space=vmem, size = 0x400, scoped, tag = 'output window, operand 2']
    #allocation5 [shape = 's32[2]{0}', space=sflag, size = 0x8, scoped, tag = 'scoped memory for conv_forward.1']
    %11 = vsyncpa [#allocation3], 0
    %s12 = scalar_lea.sflag [#allocation3], 1
    %13 = vsyncpa %s12, 0
    %14 = vsyncpa [#allocation5], 0
    %s15 = scalar_lea.sflag [#allocation5], 1
    %16 = vsyncpa %s15, 0
    loop: start=0, step=1, limit=4
    $region2: #{conv_forward.1} parent=1 // loop_pre_header
      _
    $region3: #{conv_forward.1} parent=1 // loop_header
      %s18 = sphi 0, %s22
      %p19 = scmp.ge.s32.totalorder %s18, 4
      %s28 = sphi 0, %s30
      %s31 = sphi 0, %s28
      %s32 = sphi 0, %s31
      %s48 = sphi 0, %s32
      %s52 = sphi 0, %s52
      %s54 = sphi 0, %s52
      %s55 = sphi 0, %s54
      %s69 = sphi 0, %s55
      %s73 = sphi 0, %s73
      %s75 = sphi 0, %s73
      %s76 = sphi 0, %s75
      %s90 = sphi 0, %s76
      %s96 = sphi 0, %s98
      %s99 = sphi 0, %s96
      %s100 = sphi 0, %s99
      %s116 = sphi 0, %s100
      %s122 = sphi 0, %s124
      %s125 = sphi 0, %s122
      %s126 = sphi 0, %s125
      %s142 = sphi 0, %s126
      %s148 = sphi 0, %s150
      %s151 = sphi 0, %s148
      %s152 = sphi 0, %s151
      %s168 = sphi 0, %s152
    $region4: #{conv_forward.1} parent=1 // loop_header_branch
      %21 = sbr.rel (%p19) target = $region8
    $region5: #{conv_forward.1} parent=1 // loop_body
      %s23 = ssub.s32 %s18, 1
      %s24 = ssub.s32 %s18, 2
      %s25 = sadd.s32 %s18, 1
      %s26 = ssub.s32 %s18, %s25
      %p27 = scmp.eq.s32.totalorder %s26, 0
      %s29 = sadd.s32 %s28, 1
      %s30 = scalar_select %p27, %s28, %s29
      %p33 = pneg %p27
      %p34 = scmp.eq.s32.totalorder %s18, 1
      %p35 = por %p33, %p34
      %p36 = scmp.ne.s32.totalorder %s28, %s31
      %p37 = scmp.eq.s32.totalorder %s18, 0
      %p38 = por %p36, %p37
      %p39 = scmp.ne.s32.totalorder %s28, %s31
      %p40 = scmp.eq.s32.totalorder %s23, 1
      %p41 = por %p39, %p40
      %p42 = scmp.ne.s32.totalorder %s31, %s32
      %p43 = scmp.eq.s32.totalorder %s23, 0
      %p44 = por %p42, %p43
      %p45 = scmp.ne.s32.totalorder %s31, %s32
      %p46 = scmp.eq.s32.totalorder %s24, 1
      %p47 = por %p45, %p46
      %p49 = scmp.ne.s32.totalorder %s32, %s48
      %p50 = scmp.eq.s32.totalorder %s24, 0
      %p51 = por %p49, %p50
      %s53 = sadd.s32 %s52, 1
      %p56 = scmp.eq.s32.totalorder %s18, 1
      %p57 = scmp.ne.s32.totalorder %s52, %s54
      %p58 = scmp.eq.s32.totalorder %s18, 0
      %p59 = por %p57, %p58
      %p60 = scmp.ne.s32.totalorder %s52, %s54
      %p61 = scmp.eq.s32.totalorder %s23, 1
      %p62 = por %p60, %p61
      %p63 = scmp.ne.s32.totalorder %s54, %s55
      %p64 = scmp.eq.s32.totalorder %s23, 0
      %p65 = por %p63, %p64
      %p66 = scmp.ne.s32.totalorder %s54, %s55
      %p67 = scmp.eq.s32.totalorder %s24, 1
      %p68 = por %p66, %p67
      %p70 = scmp.ne.s32.totalorder %s55, %s69
      %p71 = scmp.eq.s32.totalorder %s24, 0
      %p72 = por %p70, %p71
      %s74 = sadd.s32 %s73, 1
      %p77 = scmp.eq.s32.totalorder %s18, 1
      %p78 = scmp.ne.s32.totalorder %s73, %s75
      %p79 = scmp.eq.s32.totalorder %s18, 0
      %p80 = por %p78, %p79
      %p81 = scmp.ne.s32.totalorder %s73, %s75
      %p82 = scmp.eq.s32.totalorder %s23, 1
      %p83 = por %p81, %p82
      %p84 = scmp.ne.s32.totalorder %s75, %s76
      %p85 = scmp.eq.s32.totalorder %s23, 0
      %p86 = por %p84, %p85
      %p87 = scmp.ne.s32.totalorder %s75, %s76
      %p88 = scmp.eq.s32.totalorder %s24, 1
      %p89 = por %p87, %p88
      %p91 = scmp.ne.s32.totalorder %s76, %s90
      %p92 = scmp.eq.s32.totalorder %s24, 0
      %p93 = por %p91, %p92
      %s94 = ssub.s32 %s18, %s25
      %p95 = scmp.eq.s32.totalorder %s94, 0
      %s97 = sadd.s32 %s96, 1
      %s98 = scalar_select %p95, %s96, %s97
      %p101 = pneg %p95
      %p102 = scmp.eq.s32.totalorder %s18, 1
      %p103 = por %p101, %p102
      %p104 = scmp.ne.s32.totalorder %s96, %s99
      %p105 = scmp.eq.s32.totalorder %s18, 0
      %p106 = por %p104, %p105
      %p107 = scmp.ne.s32.totalorder %s96, %s99
      %p108 = scmp.eq.s32.totalorder %s23, 1
      %p109 = por %p107, %p108
      %p110 = scmp.ne.s32.totalorder %s99, %s100
      %p111 = scmp.eq.s32.totalorder %s23, 0
      %p112 = por %p110, %p111
      %p113 = scmp.ne.s32.totalorder %s99, %s100
      %p114 = scmp.eq.s32.totalorder %s24, 1
      %p115 = por %p113, %p114
      %p117 = scmp.ne.s32.totalorder %s100, %s116
      %p118 = scmp.eq.s32.totalorder %s24, 0
      %p119 = por %p117, %p118
      %s120 = ssub.s32 %s18, %s25
      %p121 = scmp.eq.s32.totalorder %s120, 0
      %s123 = sadd.s32 %s122, 1
      %s124 = scalar_select %p121, %s122, %s123
      %p127 = pneg %p121
      %p128 = scmp.eq.s32.totalorder %s18, 1
      %p129 = por %p127, %p128
      %p130 = scmp.ne.s32.totalorder %s122, %s125
      %p131 = scmp.eq.s32.totalorder %s18, 0
      %p132 = por %p130, %p131
      %p133 = scmp.ne.s32.totalorder %s122, %s125
      %p134 = scmp.eq.s32.totalorder %s23, 1
      %p135 = por %p133, %p134
      %p136 = scmp.ne.s32.totalorder %s125, %s126
      %p137 = scmp.eq.s32.totalorder %s23, 0
      %p138 = por %p136, %p137
      %p139 = scmp.ne.s32.totalorder %s125, %s126
      %p140 = scmp.eq.s32.totalorder %s24, 1
      %p141 = por %p139, %p140
      %p143 = scmp.ne.s32.totalorder %s126, %s142
      %p144 = scmp.eq.s32.totalorder %s24, 0
      %p145 = por %p143, %p144
      %s146 = ssub.s32 %s18, %s25
      %p147 = scmp.eq.s32.totalorder %s146, 0
      %s149 = sadd.s32 %s148, 1
      %s150 = scalar_select %p147, %s148, %s149
      %p153 = pneg %p147
      %p154 = scmp.eq.s32.totalorder %s18, 1
      %p155 = por %p153, %p154
      %p156 = scmp.ne.s32.totalorder %s148, %s151
      %p157 = scmp.eq.s32.totalorder %s18, 0
      %p158 = por %p156, %p157
      %p159 = scmp.ne.s32.totalorder %s148, %s151
      %p160 = scmp.eq.s32.totalorder %s23, 1
      %p161 = por %p159, %p160
      %p162 = scmp.ne.s32.totalorder %s151, %s152
      %p163 = scmp.eq.s32.totalorder %s23, 0
      %p164 = por %p162, %p163
      %p165 = scmp.ne.s32.totalorder %s151, %s152
      %p166 = scmp.eq.s32.totalorder %s24, 1
      %p167 = por %p165, %p166
      %p169 = scmp.ne.s32.totalorder %s152, %s168
      %p170 = scmp.eq.s32.totalorder %s24, 0
      %p171 = por %p169, %p170
      %p172 = scmp.le.s32.totalorder 1, %s18
      %p173 = scmp.lt.s32.totalorder %s18, 3
      %p174 = pnand %p172, %p173
      %p175 = pneg %p174
      // Predicated region
      $region9: #{conv_forward.1} parent=5 // pred_check
        _
      $region10: #{conv_forward.1} parent=5 // pred_check_branch
        %177 = sbr.rel (%p174) target = $region12
      $region11: #{conv_forward.1} parent=5 // pred_region
        %s178 = ssub.s32 %s18, 1
        // Predicated region
        $region13: #{conv_forward.1} parent=11 // pred_check
          %p179 = pneg %p65
        $region14: #{conv_forward.1} parent=11 // pred_check_branch
          %181 = sbr.rel (%p179) target = $region16
        $region15: #{conv_forward.1} parent=11 // pred_region
          _
        $region16: #{conv_forward.1} parent=11 // pred_fallthru
          _
        // Predicated region
        $region17: #{conv_forward.1} parent=11 // pred_check
          %p182 = pneg %p86
        $region18: #{conv_forward.1} parent=11 // pred_check_branch
          %184 = sbr.rel (%p182) target = $region20
        $region19: #{conv_forward.1} parent=11 // pred_region
          _
        $region20: #{conv_forward.1} parent=11 // pred_fallthru
          _
      $region12: #{conv_forward.1} parent=5 // pred_fallthru
        _
      %p185 = scmp.lt.s32.totalorder %s18, 2
      // Predicated region
      $region21: #{conv_forward.1} parent=5 // pred_check
        %p186 = pneg %p185
      $region22: #{conv_forward.1} parent=5 // pred_check_branch
        %188 = sbr.rel (%p186) target = $region24
      $region23: #{conv_forward.1} parent=5 // pred_region
        // Predicated region
        $region25: #{conv_forward.1} parent=23 // pred_check
          %p189 = pneg %p38
        $region26: #{conv_forward.1} parent=23 // pred_check_branch
          %191 = sbr.rel (%p189) target = $region28
        $region27: #{conv_forward.1} parent=23 // pred_region
          %p192 = scmp.lt.s32.totalorder %s18, 1
          %s193 = scalar_select %p192, %s18, 1
          %s194 = smul.addr %s193, 43
          %s195 = smul.addr %s194, 4
          %s196 = scalar_lea.vmem %s0, %s195
        $region28: #{conv_forward.1} parent=23 // pred_fallthru
          _
      $region24: #{conv_forward.1} parent=5 // pred_fallthru
        _
      %p197 = scmp.le.s32.totalorder 1, %s18
      %p198 = scmp.lt.s32.totalorder %s18, 3
      %p199 = pnand %p197, %p198
      %p200 = pneg %p199
      // Predicated region
      $region29: #{conv_forward.1} parent=5 // pred_check
        _
      $region30: #{conv_forward.1} parent=5 // pred_check_branch
        %202 = sbr.rel (%p199) target = $region32
      $region31: #{conv_forward.1} parent=5 // pred_region
        %s203 = ssub.s32 %s18, 1
        %p204 = scmp.lt.s32.totalorder %s23, 1
        %s205 = scalar_select %p204, %s23, 1
        %s206 = smul.addr %s205, 43
        %s207 = smul.addr %s206, 4
        %s208 = scalar_lea.vmem %s0, %s207
        %p209 = pneg %p44
        %p210 = pneg %p41
        %p211 = pneg %p65
        %p212 = pneg %p62
        %p213 = pneg %p86
        %p214 = pneg %p83
        %p215 = pneg %p112
        %p216 = pneg %p109
        %p217 = scmp.lt.s32.totalorder %s23, 1
        %s218 = scalar_select %p217, %s23, 1
        %s219 = smul.addr %s218, 36
        %s220 = smul.addr %s219, 8
        %s221 = scalar_lea.vmem %s3, %s220
        %p222 = pneg %p138
        %p223 = pneg %p135
        %s224 = sand.u32 %s125, 1
        %s225 = scalar_lea.sflag [#allocation3], %s224
        %s226 = sand.u32 %s125, 1
        %s227 = scalar_lea.vmem [#allocation2], %s226
        %p228 = pneg %p164
        %p229 = pneg %p161
        %s230 = sand.u32 %s151, 1
        %s231 = scalar_lea.sflag [#allocation5], %s230
        %s232 = sand.u32 %s151, 1
        %s233 = scalar_lea.vmem [#allocation4], %s232
        %p234 = scmp.lt.s32.totalorder %s23, 1
        %s235 = scalar_select %p234, %s23, 1
        %s236 = smul.addr %s235, 43
        %s237 = smul.addr %s236, 4
        %s238 = scalar_lea.vmem %s0, %s237
        %p239 = scmp.lt.s32.totalorder %s23, 1
        %s240 = scalar_select %p239, %s23, 1
        %s241 = smul.addr %s240, 36
        %s242 = smul.addr %s241, 8
        %s243 = scalar_lea.vmem %s3, %s242
        %v245 = vld [vmem:[%s2] sm:$0xff]
        %v246 = vld [vmem:[%s2 + $0x8] sm:$0xff]
        %v247 = vld [vmem:[%s2 + $0x10] sm:$0xff]
        %v248 = vld [vmem:[%s2 + $0x18] sm:$0xff]
        %v249 = vld [vmem:[%s2 + $0x20] sm:$0xff]
        %v250 = vld [vmem:[%s2 + $0x28] sm:$0xff]
        %v251 = vld [vmem:[%s2 + $0x30] sm:$0xff]
        %v252 = vld [vmem:[%s2 + $0x38] sm:$0xff]
        %v253 = vld [vmem:[%s2 + $0x40] sm:$0xff]
        %v254 = vld [vmem:[%s2 + $0x48] sm:$0xff]
        %v255 = vld [vmem:[%s2 + $0x50] sm:$0xff]
        %v256 = vld [vmem:[%s2 + $0x58] sm:$0xff]
        %v257 = vld [vmem:[%s2 + $0x60] sm:$0xff]
        %v258 = vld [vmem:[%s2 + $0x68] sm:$0xff]
        %v259 = vld [vmem:[%s2 + $0x70] sm:$0xff]
        %v260 = vld [vmem:[%s2 + $0x78] sm:$0xff]
        %v261 = vld [vmem:[%s2 + $0x80] sm:$0xff]
        %v262 = vld [vmem:[%s2 + $0x88] sm:$0xff]
        %v263 = vld [vmem:[%s2 + $0x90] sm:$0xff]
        %v264 = vld [vmem:[%s2 + $0x98] sm:$0xff]
        %v265 = vld [vmem:[%s2 + $0xa0] sm:$0xff]
        %v266 = vld [vmem:[%s2 + $0xa8] sm:$0xff]
        %v267 = vld [vmem:[%s2 + $0xb0] sm:$0xff]
        %v268 = vld [vmem:[%s2 + $0xb8] sm:$0xff]
        %v269 = vld [vmem:[%s2 + $0xc0] sm:$0xff]
        %v270 = vld [vmem:[%s2 + $0xc8] sm:$0xff]
        %v271 = vld [vmem:[%s2 + $0xd0] sm:$0xff]
        %v272 = vld [vmem:[%s2 + $0xd8] sm:$0xff]
        %v273 = vld [vmem:[%s2 + $0xe0] sm:$0xff]
        %v274 = vld [vmem:[%s2 + $0xe8] sm:$0xff]
        %v275 = vld [vmem:[%s2 + $0xf0] sm:$0xff]
        %v276 = vld [vmem:[%s2 + $0xf8] sm:$0xff]
        %v277 = vld [vmem:[%s2 + $0x100] sm:$0xff]
        %v278 = vld [vmem:[%s2 + $0x108] sm:$0xff]
        %v279 = vld [vmem:[%s2 + $0x110] sm:$0xff]
        %v280 = vld [vmem:[%s2 + $0x118] sm:$0xff]
        %v281 = vld [vmem:[%s238] sm:$0xf]
        %v282 = vld [vmem:[%s238 + $0x4] sm:$0xf]
        %v283 = vld [vmem:[%s238 + $0x8] sm:$0xf]
        %v284 = vld [vmem:[%s238 + $0xc] sm:$0xf]
        %v285 = vld [vmem:[%s238 + $0x10] sm:$0xf]
        %v286 = vld [vmem:[%s238 + $0x14] sm:$0xf]
        %v287 = vld [vmem:[%s238 + $0x18] sm:$0xf]
        %v288 = vld [vmem:[%s238 + $0x1c] sm:$0xf]
        %v289 = vld [vmem:[%s238 + $0x20] sm:$0xf]
        %v290 = vld [vmem:[%s238 + $0x24] sm:$0xf]
        %v291 = vld [vmem:[%s238 + $0x28] sm:$0xf]
        %v292 = vld [vmem:[%s238 + $0x2c] sm:$0xf]
        %v293 = vld [vmem:[%s238 + $0x30] sm:$0xf]
        %v294 = vld [vmem:[%s238 + $0x34] sm:$0xf]
        %v295 = vld [vmem:[%s238 + $0x38] sm:$0xf]
        %v296 = vld [vmem:[%s238 + $0x3c] sm:$0xf]
        %v297 = vld [vmem:[%s238 + $0x40] sm:$0xf]
        %v298 = vld [vmem:[%s238 + $0x44] sm:$0xf]
        %v299 = vld [vmem:[%s238 + $0x48] sm:$0xf]
        %v300 = vld [vmem:[%s238 + $0x4c] sm:$0xf]
        %v301 = vld [vmem:[%s238 + $0x50] sm:$0xf]
        %v302 = vld [vmem:[%s238 + $0x54] sm:$0xf]
        %v303 = vld [vmem:[%s238 + $0x58] sm:$0xf]
        %v304 = vld [vmem:[%s238 + $0x5c] sm:$0xf]
        %v305 = vld [vmem:[%s238 + $0x60] sm:$0xf]
        %v306 = vld [vmem:[%s238 + $0x64] sm:$0xf]
        %v307 = vld [vmem:[%s238 + $0x68] sm:$0xf]
        %v308 = vld [vmem:[%s238 + $0x6c] sm:$0xf]
        %v309 = vld [vmem:[%s238 + $0x70] sm:$0xf]
        %v310 = vld [vmem:[%s238 + $0x74] sm:$0xf]
        %v311 = vld [vmem:[%s238 + $0x78] sm:$0xf]
        %v312 = vld [vmem:[%s238 + $0x7c] sm:$0xf]
        %v313 = vld [vmem:[%s238 + $0x80] sm:$0xf]
        %v314 = vld [vmem:[%s238 + $0x84] sm:$0xf]
        %v315 = vld [vmem:[%s238 + $0x88] sm:$0xf]
        %v316 = vld [vmem:[%s238 + $0x8c] sm:$0xf]
        %v317 = vld [vmem:[%s1] sm:$0x3]
        %v318 = vld [vmem:[%s238 + $0x90] sm:$0x1]
        %s319 = scalar_lea.vmem %s1, 2
        %v320 = vld [vmem:[%s319] sm:$0x3]
        %v358 = vunpack.c.l.b16 %v281
        %v359 = vunpack.c.l.b16 %v282
        %v360 = vunpack.c.l.b16 %v283
        %v361 = vunpack.c.l.b16 %v284
        %v362 = vunpack.c.l.b16 %v285
        %v363 = vunpack.c.l.b16 %v286
        %v364 = vunpack.c.l.b16 %v287
        %v365 = vunpack.c.l.b16 %v288
        %v366 = vunpack.c.l.b16 %v289
        %v367 = vunpack.c.l.b16 %v290
        %v368 = vunpack.c.l.b16 %v291
        %v369 = vunpack.c.l.b16 %v292
        %v370 = vunpack.c.l.b16 %v293
        %v371 = vunpack.c.l.b16 %v294
        %v372 = vunpack.c.l.b16 %v295
        %v373 = vunpack.c.l.b16 %v296
        %v374 = vunpack.c.l.b16 %v297
        %v375 = vunpack.c.l.b16 %v298
        %v376 = vunpack.c.l.b16 %v299
        %v377 = vunpack.c.l.b16 %v300
        %v378 = vunpack.c.l.b16 %v301
        %v379 = vunpack.c.l.b16 %v302
        %v380 = vunpack.c.l.b16 %v303
        %v381 = vunpack.c.l.b16 %v304
        %v382 = vunpack.c.l.b16 %v305
        %v383 = vunpack.c.l.b16 %v306
        %v384 = vunpack.c.l.b16 %v307
        %v385 = vunpack.c.l.b16 %v308
        %v386 = vunpack.c.l.b16 %v309
        %v387 = vunpack.c.l.b16 %v310
        %v388 = vunpack.c.l.b16 %v311
        %v389 = vunpack.c.l.b16 %v312
        %v390 = vunpack.c.l.b16 %v313
        %v391 = vunpack.c.l.b16 %v314
        %v392 = vunpack.c.l.b16 %v315
        %v393 = vunpack.c.l.b16 %v316
        %v394 = vunpack.c.l.b16 %v318
        %v395 = vpack.c.b16 %v359, %v358
        %v396 = vpack.c.b16 %v361, %v360
        %v397 = vpack.c.b16 %v363, %v362
        %v398 = vpack.c.b16 %v365, %v364
        %v399 = vpack.c.b16 %v367, %v366
        %v400 = vpack.c.b16 %v369, %v368
        %v401 = vpack.c.b16 %v371, %v370
        %v402 = vpack.c.b16 %v373, %v372
        %v403 = vpack.c.b16 %v375, %v374
        %v404 = vpack.c.b16 %v377, %v376
        %v405 = vpack.c.b16 %v379, %v378
        %v406 = vpack.c.b16 %v381, %v380
        %v407 = vpack.c.b16 %v383, %v382
        %v408 = vpack.c.b16 %v385, %v384
        %v409 = vpack.c.b16 %v387, %v386
        %v410 = vpack.c.b16 %v389, %v388
        %v411 = vpack.c.b16 %v391, %v390
        %v412 = vpack.c.b16 %v393, %v392
        %v413 = vpack.c.b16 %v394, %v394
        %vm414 = vsmask.f32 7424
        %v416 = vshrl.u32 %v395, 16
        %v418 = vshll.u32 %v395, 16
        %v420 = vrot.slane %v418, 1
        %v421 = vor.u32 %v416, %v420
        %v423 = vshll.u32 %v396, 16
        %v425 = vrot.slane %v423, 1
        %v426 = vsel %vm414, %v421, %v425
        %v427 = vshrl.u32 %v396, 16
        %v429 = vor.u32 %v427, %v425
        %v431 = vshll.u32 %v397, 16
        %v433 = vrot.slane %v431, 1
        %v434 = vsel %vm414, %v429, %v433
        %v435 = vshrl.u32 %v397, 16
        %v437 = vor.u32 %v435, %v433
        %v439 = vshll.u32 %v398, 16
        %v441 = vrot.slane %v439, 1
        %v442 = vsel %vm414, %v437, %v441
        %v443 = vshrl.u32 %v398, 16
        %v445 = vor.u32 %v443, %v441
        %v447 = vshll.u32 %v399, 16
        %v449 = vrot.slane %v447, 1
        %v450 = vsel %vm414, %v445, %v449
        %v451 = vshrl.u32 %v399, 16
        %v453 = vor.u32 %v451, %v449
        %v455 = vshll.u32 %v400, 16
        %v457 = vrot.slane %v455, 1
        %v458 = vsel %vm414, %v453, %v457
        %v459 = vshrl.u32 %v400, 16
        %v461 = vor.u32 %v459, %v457
        %v463 = vshll.u32 %v401, 16
        %v465 = vrot.slane %v463, 1
        %v466 = vsel %vm414, %v461, %v465
        %v467 = vshrl.u32 %v401, 16
        %v469 = vor.u32 %v467, %v465
        %v471 = vshll.u32 %v402, 16
        %v473 = vrot.slane %v471, 1
        %v474 = vsel %vm414, %v469, %v473
        %v475 = vshrl.u32 %v402, 16
        %v477 = vor.u32 %v475, %v473
        %v479 = vshll.u32 %v403, 16
        %v481 = vrot.slane %v479, 1
        %v482 = vsel %vm414, %v477, %v481
        %v483 = vshrl.u32 %v403, 16
        %v485 = vor.u32 %v483, %v481
        %v487 = vshll.u32 %v404, 16
        %v489 = vrot.slane %v487, 1
        %v490 = vsel %vm414, %v485, %v489
        %v491 = vshrl.u32 %v404, 16
        %v493 = vor.u32 %v491, %v489
        %v495 = vshll.u32 %v405, 16
        %v497 = vrot.slane %v495, 1
        %v498 = vsel %vm414, %v493, %v497
        %v499 = vshrl.u32 %v405, 16
        %v501 = vor.u32 %v499, %v497
        %v503 = vshll.u32 %v406, 16
        %v505 = vrot.slane %v503, 1
        %v506 = vsel %vm414, %v501, %v505
        %v507 = vshrl.u32 %v406, 16
        %v509 = vor.u32 %v507, %v505
        %v511 = vshll.u32 %v407, 16
        %v513 = vrot.slane %v511, 1
        %v514 = vsel %vm414, %v509, %v513
        %v515 = vshrl.u32 %v407, 16
        %v517 = vor.u32 %v515, %v513
        %v519 = vshll.u32 %v408, 16
        %v521 = vrot.slane %v519, 1
        %v522 = vsel %vm414, %v517, %v521
        %v523 = vshrl.u32 %v408, 16
        %v525 = vor.u32 %v523, %v521
        %v527 = vshll.u32 %v409, 16
        %v529 = vrot.slane %v527, 1
        %v530 = vsel %vm414, %v525, %v529
        %v531 = vshrl.u32 %v409, 16
        %v533 = vor.u32 %v531, %v529
        %v535 = vshll.u32 %v410, 16
        %v537 = vrot.slane %v535, 1
        %v538 = vsel %vm414, %v533, %v537
        %v539 = vshrl.u32 %v410, 16
        %v541 = vor.u32 %v539, %v537
        %v543 = vshll.u32 %v411, 16
        %v545 = vrot.slane %v543, 1
        %v546 = vsel %vm414, %v541, %v545
        %v547 = vshrl.u32 %v411, 16
        %v549 = vor.u32 %v547, %v545
        %v551 = vshll.u32 %v412, 16
        %v553 = vrot.slane %v551, 1
        %v554 = vsel %vm414, %v549, %v553
        %v555 = vshrl.u32 %v412, 16
        %v557 = vor.u32 %v555, %v553
        %v559 = vshll.u32 %v413, 16
        %v561 = vrot.slane %v559, 1
        %v562 = vsel %vm414, %v557, %v561
        %vm563 = vcmask 31744
        %v565 = vsel %vm563, %v426, 0
        %v568 = vsel %vm563, %v434, 0
        %v571 = vsel %vm563, %v442, 0
        %v574 = vsel %vm563, %v450, 0
        %v577 = vsel %vm563, %v458, 0
        %v580 = vsel %vm563, %v466, 0
        %v583 = vsel %vm563, %v474, 0
        %v586 = vsel %vm563, %v482, 0
        %v589 = vsel %vm563, %v490, 0
        %v592 = vsel %vm563, %v498, 0
        %v595 = vsel %vm563, %v506, 0
        %v598 = vsel %vm563, %v514, 0
        %v601 = vsel %vm563, %v522, 0
        %v604 = vsel %vm563, %v530, 0
        %v607 = vsel %vm563, %v538, 0
        %v610 = vsel %vm563, %v546, 0
        %v613 = vsel %vm563, %v554, 0
        %v616 = vsel %vm563, %v562, 0
        %vm618 = vcmask 1041408
        %v620 = vsel %vm618, %v320, 0
        %622 = vmatprep.subr.bf16.mxu0 0
        %623 = vmatpush1.bf16.msra.mxu0 %v620
        %624 = vmatprep.subr.bf16.mxu0 0
        %625 = vmatpush1.bf16.msra.mxu0 0
        %626 = vmatprep.subr.bf16.mxu0 0
        %627 = vmatpush1.bf16.msra.mxu0 0
        %628 = vmatprep.subr.bf16.mxu0 0
        %629 = vmatpush1.bf16.msra.mxu0 0
        %630 = vmatprep.subr.bf16.mxu0 0
        %631 = vmatpush1.bf16.msra.mxu0 0
        %632 = vmatprep.subr.bf16.mxu0 0
        %633 = vmatpush1.bf16.msra.mxu0 0
        %634 = vmatprep.subr.bf16.mxu0 0
        %635 = vmatpush1.bf16.msra.mxu0 0
        %636 = vmatprep.subr.bf16.mxu0 0
        %637 = vmatpush1.bf16.msra.mxu0 0
        %638 = vmatprep.subr.bf16.mxu0 0
        %639 = vmatpush1.bf16.msra.mxu0 0
        %640 = vmatprep.subr.bf16.mxu0 0
        %641 = vmatpush1.bf16.msra.mxu0 0
        %642 = vmatprep.subr.bf16.mxu0 0
        %643 = vmatpush1.bf16.msra.mxu0 0
        %644 = vmatprep.subr.bf16.mxu0 0
        %645 = vmatpush1.bf16.msra.mxu0 0
        %646 = vmatprep.subr.bf16.mxu0 0
        %647 = vmatpush1.bf16.msra.mxu0 0
        %648 = vmatprep.subr.bf16.mxu0 0
        %649 = vmatpush1.bf16.msra.mxu0 0
        %650 = vmatprep.subr.bf16.mxu0 0
        %651 = vmatpush1.bf16.msra.mxu0 0
        %652 = vmatprep.subr.bf16.mxu0 0
        %653 = vmatpush1.bf16.msra.mxu0 0
        %654 = vmatprep.mubr.bf16.mxu0 0
        %655 = vmatmul.mubr.bf16.gmra.mrb[0].mxu0 %v565
        %v656 = vpop.f32.mrb[0].mxu0
        %v657 = vadd.f32 0.0, %v656
        %v658 = vpop.f32.mrb[0].mxu0
        %v659 = vpop.f32.mrb[0].mxu0
        %v660 = vadd.f32 0.0, %v659
        %v661 = vpop.f32.mrb[0].mxu0
        %662 = vmatprep.mubr.bf16.mxu0 0
        %663 = vmatmul.mubr.bf16.gmra.mrb[0].mxu0 %v568
        %v664 = vpop.f32.mrb[0].mxu0
        %v665 = vadd.f32 0.0, %v664
        %v666 = vpop.f32.mrb[0].mxu0
        %v667 = vpop.f32.mrb[0].mxu0
        %v668 = vadd.f32 0.0, %v667
        %v669 = vpop.f32.mrb[0].mxu0
        %670 = vmatprep.mubr.bf16.mxu0 0
        %671 = vmatmul.mubr.bf16.gmra.mrb[0].mxu0 %v571
        %v672 = vpop.f32.mrb[0].mxu0
        %v673 = vadd.f32 0.0, %v672
        %v674 = vpop.f32.mrb[0].mxu0
        %v675 = vpop.f32.mrb[0].mxu0
        %v676 = vadd.f32 0.0, %v675
        %v677 = vpop.f32.mrb[0].mxu0
        %678 = vmatprep.mubr.bf16.mxu0 0
        %679 = vmatmul.mubr.bf16.gmra.mrb[0].mxu0 %v574
        %v680 = vpop.f32.mrb[0].mxu0
        %v681 = vadd.f32 0.0, %v680
        %v682 = vpop.f32.mrb[0].mxu0
        %v683 = vpop.f32.mrb[0].mxu0
        %v684 = vadd.f32 0.0, %v683
        %v685 = vpop.f32.mrb[0].mxu0
        %686 = vmatprep.mubr.bf16.mxu0 0
        %687 = vmatmul.mubr.bf16.gmra.mrb[0].mxu0 %v577
        %v688 = vpop.f32.mrb[0].mxu0
        %v689 = vadd.f32 0.0, %v688
        %v690 = vpop.f32.mrb[0].mxu0
        %v691 = vpop.f32.mrb[0].mxu0
        %v692 = vadd.f32 0.0, %v691
        %v693 = vpop.f32.mrb[0].mxu0
        %694 = vmatprep.mubr.bf16.mxu0 0
        %695 = vmatmul.mubr.bf16.gmra.mrb[0].mxu0 %v580
        %v696 = vpop.f32.mrb[0].mxu0
        %v697 = vadd.f32 0.0, %v696
        %v698 = vpop.f32.mrb[0].mxu0
        %v699 = vpop.f32.mrb[0].mxu0
        %v700 = vadd.f32 0.0, %v699
        %v701 = vpop.f32.mrb[0].mxu0
        %702 = vmatprep.mubr.bf16.mxu0 0
        %703 = vmatmul.mubr.bf16.gmra.mrb[0].mxu0 %v583
        %v704 = vpop.f32.mrb[0].mxu0
        %v705 = vadd.f32 0.0, %v704
        %v706 = vpop.f32.mrb[0].mxu0
        %v707 = vpop.f32.mrb[0].mxu0
        %v708 = vadd.f32 0.0, %v707
        %v709 = vpop.f32.mrb[0].mxu0
        %710 = vmatprep.mubr.bf16.mxu0 0
        %711 = vmatmul.mubr.bf16.gmra.mrb[0].mxu0 %v586
        %v712 = vpop.f32.mrb[0].mxu0
        %v713 = vadd.f32 0.0, %v712
        %v714 = vpop.f32.mrb[0].mxu0
        %v715 = vpop.f32.mrb[0].mxu0
        %v716 = vadd.f32 0.0, %v715
        %v717 = vpop.f32.mrb[0].mxu0
        %718 = vmatprep.mubr.bf16.mxu0 0
        %719 = vmatmul.mubr.bf16.gmra.mrb[0].mxu0 %v589
        %v720 = vpop.f32.mrb[0].mxu0
        %v721 = vadd.f32 0.0, %v720
        %v722 = vpop.f32.mrb[0].mxu0
        %v723 = vpop.f32.mrb[0].mxu0
        %v724 = vadd.f32 0.0, %v723
        %v725 = vpop.f32.mrb[0].mxu0
        %726 = vmatprep.mubr.bf16.mxu0 0
        %727 = vmatmul.mubr.bf16.gmra.mrb[0].mxu0 %v592
        %v728 = vpop.f32.mrb[0].mxu0
        %v729 = vadd.f32 0.0, %v728
        %v730 = vpop.f32.mrb[0].mxu0
        %v731 = vpop.f32.mrb[0].mxu0
        %v732 = vadd.f32 0.0, %v731
        %v733 = vpop.f32.mrb[0].mxu0
        %734 = vmatprep.mubr.bf16.mxu0 0
        %735 = vmatmul.mubr.bf16.gmra.mrb[0].mxu0 %v595
        %v736 = vpop.f32.mrb[0].mxu0
        %v737 = vadd.f32 0.0, %v736
        %v738 = vpop.f32.mrb[0].mxu0
        %v739 = vpop.f32.mrb[0].mxu0
        %v740 = vadd.f32 0.0, %v739
        %v741 = vpop.f32.mrb[0].mxu0
        %742 = vmatprep.mubr.bf16.mxu0 0
        %743 = vmatmul.mubr.bf16.gmra.mrb[0].mxu0 %v598
        %v744 = vpop.f32.mrb[0].mxu0
        %v745 = vadd.f32 0.0, %v744
        %v746 = vpop.f32.mrb[0].mxu0
        %v747 = vpop.f32.mrb[0].mxu0
        %v748 = vadd.f32 0.0, %v747
        %v749 = vpop.f32.mrb[0].mxu0
        %750 = vmatprep.mubr.bf16.mxu0 0
        %751 = vmatmul.mubr.bf16.gmra.mrb[0].mxu0 %v601
        %v752 = vpop.f32.mrb[0].mxu0
        %v753 = vadd.f32 0.0, %v752
        %v754 = vpop.f32.mrb[0].mxu0
        %v755 = vpop.f32.mrb[0].mxu0
        %v756 = vadd.f32 0.0, %v755
        %v757 = vpop.f32.mrb[0].mxu0
        %758 = vmatprep.mubr.bf16.mxu0 0
        %759 = vmatmul.mubr.bf16.gmra.mrb[0].mxu0 %v604
        %v760 = vpop.f32.mrb[0].mxu0
        %v761 = vadd.f32 0.0, %v760
        %v762 = vpop.f32.mrb[0].mxu0
        %v763 = vpop.f32.mrb[0].mxu0
        %v764 = vadd.f32 0.0, %v763
        %v765 = vpop.f32.mrb[0].mxu0
        %766 = vmatprep.mubr.bf16.mxu0 0
        %767 = vmatmul.mubr.bf16.gmra.mrb[0].mxu0 %v607
        %v768 = vpop.f32.mrb[0].mxu0
        %v769 = vadd.f32 0.0, %v768
        %v770 = vpop.f32.mrb[0].mxu0
        %v771 = vpop.f32.mrb[0].mxu0
        %v772 = vadd.f32 0.0, %v771
        %v773 = vpop.f32.mrb[0].mxu0
        %774 = vmatprep.mubr.bf16.mxu0 0
        %775 = vmatmul.mubr.bf16.gmra.mrb[0].mxu0 %v610
        %v776 = vpop.f32.mrb[0].mxu0
        %v777 = vadd.f32 0.0, %v776
        %v778 = vpop.f32.mrb[0].mxu0
        %v779 = vpop.f32.mrb[0].mxu0
        %v780 = vadd.f32 0.0, %v779
        %v781 = vpop.f32.mrb[0].mxu0
        %782 = vmatprep.mubr.bf16.mxu0 0
        %783 = vmatmul.mubr.bf16.gmra.mrb[0].mxu0 %v613
        %v784 = vpop.f32.mrb[0].mxu0
        %v785 = vadd.f32 0.0, %v784
        %v786 = vpop.f32.mrb[0].mxu0
        %v787 = vpop.f32.mrb[0].mxu0
        %v788 = vadd.f32 0.0, %v787
        %v789 = vpop.f32.mrb[0].mxu0
        %790 = vmatprep.mubr.bf16.mxu0 0
        %791 = vmatmul.mubr.bf16.gmra.mrb[0].mxu0 %v616
        %v792 = vpop.f32.mrb[0].mxu0
        %v793 = vadd.f32 0.0, %v792
        %v794 = vpop.f32.mrb[0].mxu0
        %v795 = vpop.f32.mrb[0].mxu0
        %v796 = vadd.f32 0.0, %v795
        %v797 = vpop.f32.mrb[0].mxu0
        %798 = vdwg.mxu0
        %v799 = vsel %vm563, %v395, 0
        %v801 = vsel %vm563, %v396, 0
        %v803 = vsel %vm563, %v397, 0
        %v805 = vsel %vm563, %v398, 0
        %v807 = vsel %vm563, %v399, 0
        %v809 = vsel %vm563, %v400, 0
        %v811 = vsel %vm563, %v401, 0
        %v813 = vsel %vm563, %v402, 0
        %v815 = vsel %vm563, %v403, 0
        %v817 = vsel %vm563, %v404, 0
        %v819 = vsel %vm563, %v405, 0
        %v821 = vsel %vm563, %v406, 0
        %v823 = vsel %vm563, %v407, 0
        %v825 = vsel %vm563, %v408, 0
        %v827 = vsel %vm563, %v409, 0
        %v829 = vsel %vm563, %v410, 0
        %v831 = vsel %vm563, %v411, 0
        %v833 = vsel %vm563, %v412, 0
        %v836 = vsel %vm618, %v317, 0
        %838 = vmatprep.subr.bf16.mxu0 0
        %839 = vmatpush1.bf16.msra.mxu0 %v836
        %840 = vmatprep.subr.bf16.mxu0 0
        %841 = vmatpush1.bf16.msra.mxu0 0
        %842 = vmatprep.subr.bf16.mxu0 0
        %843 = vmatpush1.bf16.msra.mxu0 0
        %844 = vmatprep.subr.bf16.mxu0 0
        %845 = vmatpush1.bf16.msra.mxu0 0
        %846 = vmatprep.subr.bf16.mxu0 0
        %847 = vmatpush1.bf16.msra.mxu0 0
        %848 = vmatprep.subr.bf16.mxu0 0
        %849 = vmatpush1.bf16.msra.mxu0 0
        %850 = vmatprep.subr.bf16.mxu0 0
        %851 = vmatpush1.bf16.msra.mxu0 0
        %852 = vmatprep.subr.bf16.mxu0 0
        %853 = vmatpush1.bf16.msra.mxu0 0
        %854 = vmatprep.subr.bf16.mxu0 0
        %855 = vmatpush1.bf16.msra.mxu0 0
        %856 = vmatprep.subr.bf16.mxu0 0
        %857 = vmatpush1.bf16.msra.mxu0 0
        %858 = vmatprep.subr.bf16.mxu0 0
        %859 = vmatpush1.bf16.msra.mxu0 0
        %860 = vmatprep.subr.bf16.mxu0 0
        %861 = vmatpush1.bf16.msra.mxu0 0
        %862 = vmatprep.subr.bf16.mxu0 0
        %863 = vmatpush1.bf16.msra.mxu0 0
        %864 = vmatprep.subr.bf16.mxu0 0
        %865 = vmatpush1.bf16.msra.mxu0 0
        %866 = vmatprep.subr.bf16.mxu0 0
        %867 = vmatpush1.bf16.msra.mxu0 0
        %868 = vmatprep.subr.bf16.mxu0 0
        %869 = vmatpush1.bf16.msra.mxu0 0
        %870 = vmatprep.mubr.bf16.mxu0 0
        %871 = vmatmul.mubr.bf16.gmra.mrb[0].mxu0 %v799
        %v872 = vpop.f32.mrb[0].mxu0
        %v873 = vadd.f32 %v657, %v872
        %v874 = vpop.f32.mrb[0].mxu0
        %v875 = vpop.f32.mrb[0].mxu0
        %v876 = vadd.f32 %v660, %v875
        %v877 = vpop.f32.mrb[0].mxu0
        %878 = vmatprep.mubr.bf16.mxu0 0
        %879 = vmatmul.mubr.bf16.gmra.mrb[0].mxu0 %v801
        %v880 = vpop.f32.mrb[0].mxu0
        %v881 = vadd.f32 %v665, %v880
        %v882 = vpop.f32.mrb[0].mxu0
        %v883 = vpop.f32.mrb[0].mxu0
        %v884 = vadd.f32 %v668, %v883
        %v885 = vpop.f32.mrb[0].mxu0
        %886 = vmatprep.mubr.bf16.mxu0 0
        %887 = vmatmul.mubr.bf16.gmra.mrb[0].mxu0 %v803
        %v888 = vpop.f32.mrb[0].mxu0
        %v889 = vadd.f32 %v673, %v888
        %v890 = vpop.f32.mrb[0].mxu0
        %v891 = vpop.f32.mrb[0].mxu0
        %v892 = vadd.f32 %v676, %v891
        %v893 = vpop.f32.mrb[0].mxu0
        %894 = vmatprep.mubr.bf16.mxu0 0
        %895 = vmatmul.mubr.bf16.gmra.mrb[0].mxu0 %v805
        %v896 = vpop.f32.mrb[0].mxu0
        %v897 = vadd.f32 %v681, %v896
        %v898 = vpop.f32.mrb[0].mxu0
        %v899 = vpop.f32.mrb[0].mxu0
        %v900 = vadd.f32 %v684, %v899
        %v901 = vpop.f32.mrb[0].mxu0
        %902 = vmatprep.mubr.bf16.mxu0 0
        %903 = vmatmul.mubr.bf16.gmra.mrb[0].mxu0 %v807
        %v904 = vpop.f32.mrb[0].mxu0
        %v905 = vadd.f32 %v689, %v904
        %v906 = vpop.f32.mrb[0].mxu0
        %v907 = vpop.f32.mrb[0].mxu0
        %v908 = vadd.f32 %v692, %v907
        %v909 = vpop.f32.mrb[0].mxu0
        %910 = vmatprep.mubr.bf16.mxu0 0
        %911 = vmatmul.mubr.bf16.gmra.mrb[0].mxu0 %v809
        %v912 = vpop.f32.mrb[0].mxu0
        %v913 = vadd.f32 %v697, %v912
        %v914 = vpop.f32.mrb[0].mxu0
        %v915 = vpop.f32.mrb[0].mxu0
        %v916 = vadd.f32 %v700, %v915
        %v917 = vpop.f32.mrb[0].mxu0
        %918 = vmatprep.mubr.bf16.mxu0 0
        %919 = vmatmul.mubr.bf16.gmra.mrb[0].mxu0 %v811
        %v920 = vpop.f32.mrb[0].mxu0
        %v921 = vadd.f32 %v705, %v920
        %v922 = vpop.f32.mrb[0].mxu0
        %v923 = vpop.f32.mrb[0].mxu0
        %v924 = vadd.f32 %v708, %v923
        %v925 = vpop.f32.mrb[0].mxu0
        %926 = vmatprep.mubr.bf16.mxu0 0
        %927 = vmatmul.mubr.bf16.gmra.mrb[0].mxu0 %v813
        %v928 = vpop.f32.mrb[0].mxu0
        %v929 = vadd.f32 %v713, %v928
        %v930 = vpop.f32.mrb[0].mxu0
        %v931 = vpop.f32.mrb[0].mxu0
        %v932 = vadd.f32 %v716, %v931
        %v933 = vpop.f32.mrb[0].mxu0
        %934 = vmatprep.mubr.bf16.mxu0 0
        %935 = vmatmul.mubr.bf16.gmra.mrb[0].mxu0 %v815
        %v936 = vpop.f32.mrb[0].mxu0
        %v937 = vadd.f32 %v721, %v936
        %v938 = vpop.f32.mrb[0].mxu0
        %v939 = vpop.f32.mrb[0].mxu0
        %v940 = vadd.f32 %v724, %v939
        %v941 = vpop.f32.mrb[0].mxu0
        %942 = vmatprep.mubr.bf16.mxu0 0
        %943 = vmatmul.mubr.bf16.gmra.mrb[0].mxu0 %v817
        %v944 = vpop.f32.mrb[0].mxu0
        %v945 = vadd.f32 %v729, %v944
        %v946 = vpop.f32.mrb[0].mxu0
        %v947 = vpop.f32.mrb[0].mxu0
        %v948 = vadd.f32 %v732, %v947
        %v949 = vpop.f32.mrb[0].mxu0
        %950 = vmatprep.mubr.bf16.mxu0 0
        %951 = vmatmul.mubr.bf16.gmra.mrb[0].mxu0 %v819
        %v952 = vpop.f32.mrb[0].mxu0
        %v953 = vadd.f32 %v737, %v952
        %v954 = vpop.f32.mrb[0].mxu0
        %v955 = vpop.f32.mrb[0].mxu0
        %v956 = vadd.f32 %v740, %v955
        %v957 = vpop.f32.mrb[0].mxu0
        %958 = vmatprep.mubr.bf16.mxu0 0
        %959 = vmatmul.mubr.bf16.gmra.mrb[0].mxu0 %v821
        %v960 = vpop.f32.mrb[0].mxu0
        %v961 = vadd.f32 %v745, %v960
        %v962 = vpop.f32.mrb[0].mxu0
        %v963 = vpop.f32.mrb[0].mxu0
        %v964 = vadd.f32 %v748, %v963
        %v965 = vpop.f32.mrb[0].mxu0
        %966 = vmatprep.mubr.bf16.mxu0 0
        %967 = vmatmul.mubr.bf16.gmra.mrb[0].mxu0 %v823
        %v968 = vpop.f32.mrb[0].mxu0
        %v969 = vadd.f32 %v753, %v968
        %v970 = vpop.f32.mrb[0].mxu0
        %v971 = vpop.f32.mrb[0].mxu0
        %v972 = vadd.f32 %v756, %v971
        %v973 = vpop.f32.mrb[0].mxu0
        %974 = vmatprep.mubr.bf16.mxu0 0
        %975 = vmatmul.mubr.bf16.gmra.mrb[0].mxu0 %v825
        %v976 = vpop.f32.mrb[0].mxu0
        %v977 = vadd.f32 %v761, %v976
        %v978 = vpop.f32.mrb[0].mxu0
        %v979 = vpop.f32.mrb[0].mxu0
        %v980 = vadd.f32 %v764, %v979
        %v981 = vpop.f32.mrb[0].mxu0
        %982 = vmatprep.mubr.bf16.mxu0 0
        %983 = vmatmul.mubr.bf16.gmra.mrb[0].mxu0 %v827
        %v984 = vpop.f32.mrb[0].mxu0
        %v985 = vadd.f32 %v769, %v984
        %v986 = vpop.f32.mrb[0].mxu0
        %v987 = vpop.f32.mrb[0].mxu0
        %v988 = vadd.f32 %v772, %v987
        %v989 = vpop.f32.mrb[0].mxu0
        %990 = vmatprep.mubr.bf16.mxu0 0
        %991 = vmatmul.mubr.bf16.gmra.mrb[0].mxu0 %v829
        %v992 = vpop.f32.mrb[0].mxu0
        %v993 = vadd.f32 %v777, %v992
        %v994 = vpop.f32.mrb[0].mxu0
        %v995 = vpop.f32.mrb[0].mxu0
        %v996 = vadd.f32 %v780, %v995
        %v997 = vpop.f32.mrb[0].mxu0
        %998 = vmatprep.mubr.bf16.mxu0 0
        %999 = vmatmul.mubr.bf16.gmra.mrb[0].mxu0 %v831
        %v1000 = vpop.f32.mrb[0].mxu0
        %v1001 = vadd.f32 %v785, %v1000
        %v1002 = vpop.f32.mrb[0].mxu0
        %v1003 = vpop.f32.mrb[0].mxu0
        %v1004 = vadd.f32 %v788, %v1003
        %v1005 = vpop.f32.mrb[0].mxu0
        %1006 = vmatprep.mubr.bf16.mxu0 0
        %1007 = vmatmul.mubr.bf16.gmra.mrb[0].mxu0 %v833
        %v1008 = vpop.f32.mrb[0].mxu0
        %v1009 = vadd.f32 %v793, %v1008
        %v1010 = vpop.f32.mrb[0].mxu0
        %v1011 = vpop.f32.mrb[0].mxu0
        %v1012 = vadd.f32 %v796, %v1011
        %v1013 = vpop.f32.mrb[0].mxu0
        %1014 = vdwg.mxu0
        %v1015 = vld [vmem:[%s238] sm:$0xe]
        %s1016 = scalar_lea.vmem %s1, 4
        %v1017 = vld [vmem:[%s1016] sm:$0x3]
        %v1019 = vunpack.c.l.b16 %v1015
        %v1020 = vpack.c.b16 %v359, %v1019
        %vm1021 = vcmask 1046528
        %v1022 = vrot.slane %v1020, 1
        %v1023 = vrot.slane %v396, 1
        %v1024 = vsel %vm1021, %v1022, %v1023
        %v1025 = vrot.slane %v397, 1
        %v1026 = vsel %vm1021, %v1023, %v1025
        %v1027 = vrot.slane %v398, 1
        %v1028 = vsel %vm1021, %v1025, %v1027
        %v1029 = vrot.slane %v399, 1
        %v1030 = vsel %vm1021, %v1027, %v1029
        %v1031 = vrot.slane %v400, 1
        %v1032 = vsel %vm1021, %v1029, %v1031
        %v1033 = vrot.slane %v401, 1
        %v1034 = vsel %vm1021, %v1031, %v1033
        %v1035 = vrot.slane %v402, 1
        %v1036 = vsel %vm1021, %v1033, %v1035
        %v1037 = vrot.slane %v403, 1
        %v1038 = vsel %vm1021, %v1035, %v1037
        %v1039 = vrot.slane %v404, 1
        %v1040 = vsel %vm1021, %v1037, %v1039
        %v1041 = vrot.slane %v405, 1
        %v1042 = vsel %vm1021, %v1039, %v1041
        %v1043 = vrot.slane %v406, 1
        %v1044 = vsel %vm1021, %v1041, %v1043
        %v1045 = vrot.slane %v407, 1
        %v1046 = vsel %vm1021, %v1043, %v1045
        %v1047 = vrot.slane %v408, 1
        %v1048 = vsel %vm1021, %v1045, %v1047
        %v1049 = vrot.slane %v409, 1
        %v1050 = vsel %vm1021, %v1047, %v1049
        %v1051 = vrot.slane %v410, 1
        %v1052 = vsel %vm1021, %v1049, %v1051
        %v1053 = vrot.slane %v411, 1
        %v1054 = vsel %vm1021, %v1051, %v1053
        %v1055 = vrot.slane %v412, 1
        %v1056 = vsel %vm1021, %v1053, %v1055
        %v1057 = vrot.slane %v413, 1
        %v1058 = vsel %vm1021, %v1055, %v1057
        %v1060 = vsel %vm563, %v1024, 0
        %v1063 = vsel %vm563, %v1026, 0
        %v1066 = vsel %vm563, %v1028, 0
        %v1069 = vsel %vm563, %v1030, 0
        %v1072 = vsel %vm563, %v1032, 0
        %v1075 = vsel %vm563, %v1034, 0
        %v1078 = vsel %vm563, %v1036, 0
        %v1081 = vsel %vm563, %v1038, 0
        %v1084 = vsel %vm563, %v1040, 0
        %v1087 = vsel %vm563, %v1042, 0
        %v1090 = vsel %vm563, %v1044, 0
        %v1093 = vsel %vm563, %v1046, 0
        %v1096 = vsel %vm563, %v1048, 0
        %v1099 = vsel %vm563, %v1050, 0
        %v1102 = vsel %vm563, %v1052, 0
        %v1105 = vsel %vm563, %v1054, 0
        %v1108 = vsel %vm563, %v1056, 0
        %v1111 = vsel %vm563, %v1058, 0
        %v1114 = vsel %vm618, %v1017, 0
        %1116 = vmatprep.subr.bf16.mxu0 0
        %1117 = vmatpush1.bf16.msra.mxu0 %v1114
        %1118 = vmatprep.subr.bf16.mxu0 0
        %1119 = vmatpush1.bf16.msra.mxu0 0
        %1120 = vmatprep.subr.bf16.mxu0 0
        %1121 = vmatpush1.bf16.msra.mxu0 0
        %1122 = vmatprep.subr.bf16.mxu0 0
        %1123 = vmatpush1.bf16.msra.mxu0 0
        %1124 = vmatprep.subr.bf16.mxu0 0
        %1125 = vmatpush1.bf16.msra.mxu0 0
        %1126 = vmatprep.subr.bf16.mxu0 0
        %1127 = vmatpush1.bf16.msra.mxu0 0
        %1128 = vmatprep.subr.bf16.mxu0 0
        %1129 = vmatpush1.bf16.msra.mxu0 0
        %1130 = vmatprep.subr.bf16.mxu0 0
        %1131 = vmatpush1.bf16.msra.mxu0 0
        %1132 = vmatprep.subr.bf16.mxu0 0
        %1133 = vmatpush1.bf16.msra.mxu0 0
        %1134 = vmatprep.subr.bf16.mxu0 0
        %1135 = vmatpush1.bf16.msra.mxu0 0
        %1136 = vmatprep.subr.bf16.mxu0 0
        %1137 = vmatpush1.bf16.msra.mxu0 0
        %1138 = vmatprep.subr.bf16.mxu0 0
        %1139 = vmatpush1.bf16.msra.mxu0 0
        %1140 = vmatprep.subr.bf16.mxu0 0
        %1141 = vmatpush1.bf16.msra.mxu0 0
        %1142 = vmatprep.subr.bf16.mxu0 0
        %1143 = vmatpush1.bf16.msra.mxu0 0
        %1144 = vmatprep.subr.bf16.mxu0 0
        %1145 = vmatpush1.bf16.msra.mxu0 0
        %1146 = vmatprep.subr.bf16.mxu0 0
        %1147 = vmatpush1.bf16.msra.mxu0 0
        %1148 = vmatprep.mubr.bf16.mxu0 0
        %1149 = vmatmul.mubr.bf16.gmra.mrb[0].mxu0 %v1060
        %v1150 = vpop.f32.mrb[0].mxu0
        %v1151 = vadd.f32 0.0, %v1150
        %v1152 = vpop.f32.mrb[0].mxu0
        %v1153 = vpop.f32.mrb[0].mxu0
        %v1154 = vadd.f32 0.0, %v1153
        %v1155 = vpop.f32.mrb[0].mxu0
        %1156 = vmatprep.mubr.bf16.mxu0 0
        %1157 = vmatmul.mubr.bf16.gmra.mrb[0].mxu0 %v1063
        %v1158 = vpop.f32.mrb[0].mxu0
        %v1159 = vadd.f32 0.0, %v1158
        %v1160 = vpop.f32.mrb[0].mxu0
        %v1161 = vpop.f32.mrb[0].mxu0
        %v1162 = vadd.f32 0.0, %v1161
        %v1163 = vpop.f32.mrb[0].mxu0
        %1164 = vmatprep.mubr.bf16.mxu0 0
        %1165 = vmatmul.mubr.bf16.gmra.mrb[0].mxu0 %v1066
        %v1166 = vpop.f32.mrb[0].mxu0
        %v1167 = vadd.f32 0.0, %v1166
        %v1168 = vpop.f32.mrb[0].mxu0
        %v1169 = vpop.f32.mrb[0].mxu0
        %v1170 = vadd.f32 0.0, %v1169
        %v1171 = vpop.f32.mrb[0].mxu0
        %1172 = vmatprep.mubr.bf16.mxu0 0
        %1173 = vmatmul.mubr.bf16.gmra.mrb[0].mxu0 %v1069
        %v1174 = vpop.f32.mrb[0].mxu0
        %v1175 = vadd.f32 0.0, %v1174
        %v1176 = vpop.f32.mrb[0].mxu0
        %v1177 = vpop.f32.mrb[0].mxu0
        %v1178 = vadd.f32 0.0, %v1177
        %v1179 = vpop.f32.mrb[0].mxu0
        %1180 = vmatprep.mubr.bf16.mxu0 0
        %1181 = vmatmul.mubr.bf16.gmra.mrb[0].mxu0 %v1072
        %v1182 = vpop.f32.mrb[0].mxu0
        %v1183 = vadd.f32 0.0, %v1182
        %v1184 = vpop.f32.mrb[0].mxu0
        %v1185 = vpop.f32.mrb[0].mxu0
        %v1186 = vadd.f32 0.0, %v1185
        %v1187 = vpop.f32.mrb[0].mxu0
        %1188 = vmatprep.mubr.bf16.mxu0 0
        %1189 = vmatmul.mubr.bf16.gmra.mrb[0].mxu0 %v1075
        %v1190 = vpop.f32.mrb[0].mxu0
        %v1191 = vadd.f32 0.0, %v1190
        %v1192 = vpop.f32.mrb[0].mxu0
        %v1193 = vpop.f32.mrb[0].mxu0
        %v1194 = vadd.f32 0.0, %v1193
        %v1195 = vpop.f32.mrb[0].mxu0
        %1196 = vmatprep.mubr.bf16.mxu0 0
        %1197 = vmatmul.mubr.bf16.gmra.mrb[0].mxu0 %v1078
        %v1198 = vpop.f32.mrb[0].mxu0
        %v1199 = vadd.f32 0.0, %v1198
        %v1200 = vpop.f32.mrb[0].mxu0
        %v1201 = vpop.f32.mrb[0].mxu0
        %v1202 = vadd.f32 0.0, %v1201
        %v1203 = vpop.f32.mrb[0].mxu0
        %1204 = vmatprep.mubr.bf16.mxu0 0
        %1205 = vmatmul.mubr.bf16.gmra.mrb[0].mxu0 %v1081
        %v1206 = vpop.f32.mrb[0].mxu0
        %v1207 = vadd.f32 0.0, %v1206
        %v1208 = vpop.f32.mrb[0].mxu0
        %v1209 = vpop.f32.mrb[0].mxu0
        %v1210 = vadd.f32 0.0, %v1209
        %v1211 = vpop.f32.mrb[0].mxu0
        %1212 = vmatprep.mubr.bf16.mxu0 0
        %1213 = vmatmul.mubr.bf16.gmra.mrb[0].mxu0 %v1084
        %v1214 = vpop.f32.mrb[0].mxu0
        %v1215 = vadd.f32 0.0, %v1214
        %v1216 = vpop.f32.mrb[0].mxu0
        %v1217 = vpop.f32.mrb[0].mxu0
        %v1218 = vadd.f32 0.0, %v1217
        %v1219 = vpop.f32.mrb[0].mxu0
        %1220 = vmatprep.mubr.bf16.mxu0 0
        %1221 = vmatmul.mubr.bf16.gmra.mrb[0].mxu0 %v1087
        %v1222 = vpop.f32.mrb[0].mxu0
        %v1223 = vadd.f32 0.0, %v1222
        %v1224 = vpop.f32.mrb[0].mxu0
        %v1225 = vpop.f32.mrb[0].mxu0
        %v1226 = vadd.f32 0.0, %v1225
        %v1227 = vpop.f32.mrb[0].mxu0
        %1228 = vmatprep.mubr.bf16.mxu0 0
        %1229 = vmatmul.mubr.bf16.gmra.mrb[0].mxu0 %v1090
        %v1230 = vpop.f32.mrb[0].mxu0
        %v1231 = vadd.f32 0.0, %v1230
        %v1232 = vpop.f32.mrb[0].mxu0
        %v1233 = vpop.f32.mrb[0].mxu0
        %v1234 = vadd.f32 0.0, %v1233
        %v1235 = vpop.f32.mrb[0].mxu0
        %1236 = vmatprep.mubr.bf16.mxu0 0
        %1237 = vmatmul.mubr.bf16.gmra.mrb[0].mxu0 %v1093
        %v1238 = vpop.f32.mrb[0].mxu0
        %v1239 = vadd.f32 0.0, %v1238
        %v1240 = vpop.f32.mrb[0].mxu0
        %v1241 = vpop.f32.mrb[0].mxu0
        %v1242 = vadd.f32 0.0, %v1241
        %v1243 = vpop.f32.mrb[0].mxu0
        %1244 = vmatprep.mubr.bf16.mxu0 0
        %1245 = vmatmul.mubr.bf16.gmra.mrb[0].mxu0 %v1096
        %v1246 = vpop.f32.mrb[0].mxu0
        %v1247 = vadd.f32 0.0, %v1246
        %v1248 = vpop.f32.mrb[0].mxu0
        %v1249 = vpop.f32.mrb[0].mxu0
        %v1250 = vadd.f32 0.0, %v1249
        %v1251 = vpop.f32.mrb[0].mxu0
        %1252 = vmatprep.mubr.bf16.mxu0 0
        %1253 = vmatmul.mubr.bf16.gmra.mrb[0].mxu0 %v1099
        %v1254 = vpop.f32.mrb[0].mxu0
        %v1255 = vadd.f32 0.0, %v1254
        %v1256 = vpop.f32.mrb[0].mxu0
        %v1257 = vpop.f32.mrb[0].mxu0
        %v1258 = vadd.f32 0.0, %v1257
        %v1259 = vpop.f32.mrb[0].mxu0
        %1260 = vmatprep.mubr.bf16.mxu0 0
        %1261 = vmatmul.mubr.bf16.gmra.mrb[0].mxu0 %v1102
        %v1262 = vpop.f32.mrb[0].mxu0
        %v1263 = vadd.f32 0.0, %v1262
        %v1264 = vpop.f32.mrb[0].mxu0
        %v1265 = vpop.f32.mrb[0].mxu0
        %v1266 = vadd.f32 0.0, %v1265
        %v1267 = vpop.f32.mrb[0].mxu0
        %1268 = vmatprep.mubr.bf16.mxu0 0
        %1269 = vmatmul.mubr.bf16.gmra.mrb[0].mxu0 %v1105
        %v1270 = vpop.f32.mrb[0].mxu0
        %v1271 = vadd.f32 0.0, %v1270
        %v1272 = vpop.f32.mrb[0].mxu0
        %v1273 = vpop.f32.mrb[0].mxu0
        %v1274 = vadd.f32 0.0, %v1273
        %v1275 = vpop.f32.mrb[0].mxu0
        %1276 = vmatprep.mubr.bf16.mxu0 0
        %1277 = vmatmul.mubr.bf16.gmra.mrb[0].mxu0 %v1108
        %v1278 = vpop.f32.mrb[0].mxu0
        %v1279 = vadd.f32 0.0, %v1278
        %v1280 = vpop.f32.mrb[0].mxu0
        %v1281 = vpop.f32.mrb[0].mxu0
        %v1282 = vadd.f32 0.0, %v1281
        %v1283 = vpop.f32.mrb[0].mxu0
        %1284 = vmatprep.mubr.bf16.mxu0 0
        %1285 = vmatmul.mubr.bf16.gmra.mrb[0].mxu0 %v1111
        %v1286 = vpop.f32.mrb[0].mxu0
        %v1287 = vadd.f32 0.0, %v1286
        %v1288 = vpop.f32.mrb[0].mxu0
        %v1289 = vpop.f32.mrb[0].mxu0
        %v1290 = vadd.f32 0.0, %v1289
        %v1291 = vpop.f32.mrb[0].mxu0
        %1292 = vdwg.mxu0
        %v1293 = vadd.f32 %v873, %v1151
        %v1294 = vadd.f32 %v876, %v1154
        %v1295 = vadd.f32 %v881, %v1159
        %v1296 = vadd.f32 %v884, %v1162
        %v1297 = vadd.f32 %v889, %v1167
        %v1298 = vadd.f32 %v892, %v1170
        %v1299 = vadd.f32 %v897, %v1175
        %v1300 = vadd.f32 %v900, %v1178
        %v1301 = vadd.f32 %v905, %v1183
        %v1302 = vadd.f32 %v908, %v1186
        %v1303 = vadd.f32 %v913, %v1191
        %v1304 = vadd.f32 %v916, %v1194
        %v1305 = vadd.f32 %v921, %v1199
        %v1306 = vadd.f32 %v924, %v1202
        %v1307 = vadd.f32 %v929, %v1207
        %v1308 = vadd.f32 %v932, %v1210
        %v1309 = vadd.f32 %v937, %v1215
        %v1310 = vadd.f32 %v940, %v1218
        %v1311 = vadd.f32 %v945, %v1223
        %v1312 = vadd.f32 %v948, %v1226
        %v1313 = vadd.f32 %v953, %v1231
        %v1314 = vadd.f32 %v956, %v1234
        %v1315 = vadd.f32 %v961, %v1239
        %v1316 = vadd.f32 %v964, %v1242
        %v1317 = vadd.f32 %v969, %v1247
        %v1318 = vadd.f32 %v972, %v1250
        %v1319 = vadd.f32 %v977, %v1255
        %v1320 = vadd.f32 %v980, %v1258
        %v1321 = vadd.f32 %v985, %v1263
        %v1322 = vadd.f32 %v988, %v1266
        %v1323 = vadd.f32 %v993, %v1271
        %v1324 = vadd.f32 %v996, %v1274
        %v1325 = vadd.f32 %v1001, %v1279
        %v1326 = vadd.f32 %v1004, %v1282
        %v1327 = vadd.f32 %v1009, %v1287
        %v1328 = vadd.f32 %v1012, %v1290
        %v1329 = vld [vmem:[%s238 + $0x8] sm:$0xe]
        %v1330 = vld [vmem:[%s238 + $0xc] sm:$0xf]
        %v1331 = vld [vmem:[%s238 + $0x10] sm:$0xf]
        %v1332 = vld [vmem:[%s238 + $0x14] sm:$0xf]
        %v1333 = vld [vmem:[%s238 + $0x18] sm:$0xf]
        %v1334 = vld [vmem:[%s238 + $0x1c] sm:$0xf]
        %v1335 = vld [vmem:[%s238 + $0x20] sm:$0xf]
        %v1336 = vld [vmem:[%s238 + $0x24] sm:$0xf]
        %v1337 = vld [vmem:[%s238 + $0x28] sm:$0xf]
        %v1338 = vld [vmem:[%s238 + $0x2c] sm:$0xf]
        %v1339 = vld [vmem:[%s238 + $0x30] sm:$0xf]
        %v1340 = vld [vmem:[%s238 + $0x34] sm:$0xf]
        %v1341 = vld [vmem:[%s238 + $0x38] sm:$0xf]
        %v1342 = vld [vmem:[%s238 + $0x3c] sm:$0xf]
        %v1343 = vld [vmem:[%s238 + $0x40] sm:$0xf]
        %v1344 = vld [vmem:[%s238 + $0x44] sm:$0xf]
        %v1345 = vld [vmem:[%s238 + $0x48] sm:$0xf]
        %v1346 = vld [vmem:[%s238 + $0x4c] sm:$0xf]
        %v1347 = vld [vmem:[%s238 + $0x50] sm:$0xf]
        %v1348 = vld [vmem:[%s238 + $0x54] sm:$0xf]
        %v1349 = vld [vmem:[%s238 + $0x58] sm:$0xf]
        %v1350 = vld [vmem:[%s238 + $0x5c] sm:$0xf]
        %v1351 = vld [vmem:[%s238 + $0x60] sm:$0xf]
        %v1352 = vld [vmem:[%s238 + $0x64] sm:$0xf]
        %v1353 = vld [vmem:[%s238 + $0x68] sm:$0xf]
        %v1354 = vld [vmem:[%s238 + $0x6c] sm:$0xf]
        %v1355 = vld [vmem:[%s238 + $0x70] sm:$0xf]
        %v1356 = vld [vmem:[%s238 + $0x74] sm:$0xf]
        %v1357 = vld [vmem:[%s238 + $0x78] sm:$0xf]
        %v1358 = vld [vmem:[%s238 + $0x7c] sm:$0xf]
        %v1359 = vld [vmem:[%s238 + $0x80] sm:$0xf]
        %v1360 = vld [vmem:[%s238 + $0x84] sm:$0xf]
        %v1361 = vld [vmem:[%s238 + $0x88] sm:$0xf]
        %v1362 = vld [vmem:[%s238 + $0x8c] sm:$0xf]
        %v1363 = vld [vmem:[%s238 + $0x90] sm:$0xf]
        %v1364 = vld [vmem:[%s238 + $0x94] sm:$0xf]
        %v1365 = vld [vmem:[%s238 + $0x98] sm:$0x1]
        %s1366 = scalar_lea.vmem %s1, 6
        %v1367 = vld [vmem:[%s1366] sm:$0x3]
        %v1405 = vunpack.c.l.b16 %v1329
        %v1406 = vunpack.c.l.b16 %v1330
        %v1407 = vunpack.c.l.b16 %v1331
        %v1408 = vunpack.c.l.b16 %v1332
        %v1409 = vunpack.c.l.b16 %v1333
        %v1410 = vunpack.c.l.b16 %v1334
        %v1411 = vunpack.c.l.b16 %v1335
        %v1412 = vunpack.c.l.b16 %v1336
        %v1413 = vunpack.c.l.b16 %v1337
        %v1414 = vunpack.c.l.b16 %v1338
        %v1415 = vunpack.c.l.b16 %v1339
        %v1416 = vunpack.c.l.b16 %v1340
        %v1417 = vunpack.c.l.b16 %v1341
        %v1418 = vunpack.c.l.b16 %v1342
        %v1419 = vunpack.c.l.b16 %v1343
        %v1420 = vunpack.c.l.b16 %v1344
        %v1421 = vunpack.c.l.b16 %v1345
        %v1422 = vunpack.c.l.b16 %v1346
        %v1423 = vunpack.c.l.b16 %v1347
        %v1424 = vunpack.c.l.b16 %v1348
        %v1425 = vunpack.c.l.b16 %v1349
        %v1426 = vunpack.c.l.b16 %v1350
        %v1427 = vunpack.c.l.b16 %v1351
        %v1428 = vunpack.c.l.b16 %v1352
        %v1429 = vunpack.c.l.b16 %v1353
        %v1430 = vunpack.c.l.b16 %v1354
        %v1431 = vunpack.c.l.b16 %v1355
        %v1432 = vunpack.c.l.b16 %v1356
        %v1433 = vunpack.c.l.b16 %v1357
        %v1434 = vunpack.c.l.b16 %v1358
        %v1435 = vunpack.c.l.b16 %v1359
        %v1436 = vunpack.c.l.b16 %v1360
        %v1437 = vunpack.c.l.b16 %v1361
        %v1438 = vunpack.c.l.b16 %v1362
        %v1439 = vunpack.c.l.b16 %v1363
        %v1440 = vunpack.c.l.b16 %v1364
        %v1441 = vunpack.c.l.b16 %v1365
        %v1442 = vpack.c.b16 %v1406, %v1405
        %v1443 = vpack.c.b16 %v1408, %v1407
        %v1444 = vpack.c.b16 %v1410, %v1409
        %v1445 = vpack.c.b16 %v1412, %v1411
        %v1446 = vpack.c.b16 %v1414, %v1413
        %v1447 = vpack.c.b16 %v1416, %v1415
        %v1448 = vpack.c.b16 %v1418, %v1417
        %v1449 = vpack.c.b16 %v1420, %v1419
        %v1450 = vpack.c.b16 %v1422, %v1421
        %v1451 = vpack.c.b16 %v1424, %v1423
        %v1452 = vpack.c.b16 %v1426, %v1425
        %v1453 = vpack.c.b16 %v1428, %v1427
        %v1454 = vpack.c.b16 %v1430, %v1429
        %v1455 = vpack.c.b16 %v1432, %v1431
        %v1456 = vpack.c.b16 %v1434, %v1433
        %v1457 = vpack.c.b16 %v1436, %v1435
        %v1458 = vpack.c.b16 %v1438, %v1437
        %v1459 = vpack.c.b16 %v1440, %v1439
        %v1460 = vpack.c.b16 %v1441, %v1441
        %v1461 = vrot.slane %v1442, 1
        %v1462 = vrot.slane %v1443, 1
        %v1463 = vsel %vm1021, %v1461, %v1462
        %v1464 = vrot.slane %v1444, 1
        %v1465 = vsel %vm1021, %v1462, %v1464
        %v1466 = vrot.slane %v1445, 1
        %v1467 = vsel %vm1021, %v1464, %v1466
        %v1468 = vrot.slane %v1446, 1
        %v1469 = vsel %vm1021, %v1466, %v1468
        %v1470 = vrot.slane %v1447, 1
        %v1471 = vsel %vm1021, %v1468, %v1470
        %v1472 = vrot.slane %v1448, 1
        %v1473 = vsel %vm1021, %v1470, %v1472
        %v1474 = vrot.slane %v1449, 1
        %v1475 = vsel %vm1021, %v1472, %v1474
        %v1476 = vrot.slane %v1450, 1
        %v1477 = vsel %vm1021, %v1474, %v1476
        %v1478 = vrot.slane %v1451, 1
        %v1479 = vsel %vm1021, %v1476, %v1478
        %v1480 = vrot.slane %v1452, 1
        %v1481 = vsel %vm1021, %v1478, %v1480
        %v1482 = vrot.slane %v1453, 1
        %v1483 = vsel %vm1021, %v1480, %v1482
        %v1484 = vrot.slane %v1454, 1
        %v1485 = vsel %vm1021, %v1482, %v1484
        %v1486 = vrot.slane %v1455, 1
        %v1487 = vsel %vm1021, %v1484, %v1486
        %v1488 = vrot.slane %v1456, 1
        %v1489 = vsel %vm1021, %v1486, %v1488
        %v1490 = vrot.slane %v1457, 1
        %v1491 = vsel %vm1021, %v1488, %v1490
        %v1492 = vrot.slane %v1458, 1
        %v1493 = vsel %vm1021, %v1490, %v1492
        %v1494 = vrot.slane %v1459, 1
        %v1495 = vsel %vm1021, %v1492, %v1494
        %v1496 = vrot.slane %v1460, 1
        %v1497 = vsel %vm1021, %v1494, %v1496
        %v1499 = vsel %vm563, %v1463, 0
        %v1502 = vsel %vm563, %v1465, 0
        %v1505 = vsel %vm563, %v1467, 0
        %v1508 = vsel %vm563, %v1469, 0
        %v1511 = vsel %vm563, %v1471, 0
        %v1514 = vsel %vm563, %v1473, 0
        %v1517 = vsel %vm563, %v1475, 0
        %v1520 = vsel %vm563, %v1477, 0
        %v1523 = vsel %vm563, %v1479, 0
        %v1526 = vsel %vm563, %v1481, 0
        %v1529 = vsel %vm563, %v1483, 0
        %v1532 = vsel %vm563, %v1485, 0
        %v1535 = vsel %vm563, %v1487, 0
        %v1538 = vsel %vm563, %v1489, 0
        %v1541 = vsel %vm563, %v1491, 0
        %v1544 = vsel %vm563, %v1493, 0
        %v1547 = vsel %vm563, %v1495, 0
        %v1550 = vsel %vm563, %v1497, 0
        %v1553 = vsel %vm618, %v1367, 0
        %1555 = vmatprep.subr.bf16.mxu0 0
        %1556 = vmatpush1.bf16.msra.mxu0 %v1553
        %1557 = vmatprep.subr.bf16.mxu0 0
        %1558 = vmatpush1.bf16.msra.mxu0 0
        %1559 = vmatprep.subr.bf16.mxu0 0
        %1560 = vmatpush1.bf16.msra.mxu0 0
        %1561 = vmatprep.subr.bf16.mxu0 0
        %1562 = vmatpush1.bf16.msra.mxu0 0
        %1563 = vmatprep.subr.bf16.mxu0 0
        %1564 = vmatpush1.bf16.msra.mxu0 0
        %1565 = vmatprep.subr.bf16.mxu0 0
        %1566 = vmatpush1.bf16.msra.mxu0 0
        %1567 = vmatprep.subr.bf16.mxu0 0
        %1568 = vmatpush1.bf16.msra.mxu0 0
        %1569 = vmatprep.subr.bf16.mxu0 0
        %1570 = vmatpush1.bf16.msra.mxu0 0
        %1571 = vmatprep.subr.bf16.mxu0 0
        %1572 = vmatpush1.bf16.msra.mxu0 0
        %1573 = vmatprep.subr.bf16.mxu0 0
        %1574 = vmatpush1.bf16.msra.mxu0 0
        %1575 = vmatprep.subr.bf16.mxu0 0
        %1576 = vmatpush1.bf16.msra.mxu0 0
        %1577 = vmatprep.subr.bf16.mxu0 0
        %1578 = vmatpush1.bf16.msra.mxu0 0
        %1579 = vmatprep.subr.bf16.mxu0 0
        %1580 = vmatpush1.bf16.msra.mxu0 0
        %1581 = vmatprep.subr.bf16.mxu0 0
        %1582 = vmatpush1.bf16.msra.mxu0 0
        %1583 = vmatprep.subr.bf16.mxu0 0
        %1584 = vmatpush1.bf16.msra.mxu0 0
        %1585 = vmatprep.subr.bf16.mxu0 0
        %1586 = vmatpush1.bf16.msra.mxu0 0
        %1587 = vmatprep.mubr.bf16.mxu0 0
        %1588 = vmatmul.mubr.bf16.gmra.mrb[0].mxu0 %v1499
        %v1589 = vpop.f32.mrb[0].mxu0
        %v1590 = vadd.f32 0.0, %v1589
        %v1591 = vpop.f32.mrb[0].mxu0
        %v1592 = vpop.f32.mrb[0].mxu0
        %v1593 = vadd.f32 0.0, %v1592
        %v1594 = vpop.f32.mrb[0].mxu0
        %1595 = vmatprep.mubr.bf16.mxu0 0
        %1596 = vmatmul.mubr.bf16.gmra.mrb[0].mxu0 %v1502
        %v1597 = vpop.f32.mrb[0].mxu0
        %v1598 = vadd.f32 0.0, %v1597
        %v1599 = vpop.f32.mrb[0].mxu0
        %v1600 = vpop.f32.mrb[0].mxu0
        %v1601 = vadd.f32 0.0, %v1600
        %v1602 = vpop.f32.mrb[0].mxu0
        %1603 = vmatprep.mubr.bf16.mxu0 0
        %1604 = vmatmul.mubr.bf16.gmra.mrb[0].mxu0 %v1505
        %v1605 = vpop.f32.mrb[0].mxu0
        %v1606 = vadd.f32 0.0, %v1605
        %v1607 = vpop.f32.mrb[0].mxu0
        %v1608 = vpop.f32.mrb[0].mxu0
        %v1609 = vadd.f32 0.0, %v1608
        %v1610 = vpop.f32.mrb[0].mxu0
        %1611 = vmatprep.mubr.bf16.mxu0 0
        %1612 = vmatmul.mubr.bf16.gmra.mrb[0].mxu0 %v1508
        %v1613 = vpop.f32.mrb[0].mxu0
        %v1614 = vadd.f32 0.0, %v1613
        %v1615 = vpop.f32.mrb[0].mxu0
        %v1616 = vpop.f32.mrb[0].mxu0
        %v1617 = vadd.f32 0.0, %v1616
        %v1618 = vpop.f32.mrb[0].mxu0
        %1619 = vmatprep.mubr.bf16.mxu0 0
        %1620 = vmatmul.mubr.bf16.gmra.mrb[0].mxu0 %v1511
        %v1621 = vpop.f32.mrb[0].mxu0
        %v1622 = vadd.f32 0.0, %v1621
        %v1623 = vpop.f32.mrb[0].mxu0
        %v1624 = vpop.f32.mrb[0].mxu0
        %v1625 = vadd.f32 0.0, %v1624
        %v1626 = vpop.f32.mrb[0].mxu0
        %1627 = vmatprep.mubr.bf16.mxu0 0
        %1628 = vmatmul.mubr.bf16.gmra.mrb[0].mxu0 %v1514
        %v1629 = vpop.f32.mrb[0].mxu0
        %v1630 = vadd.f32 0.0, %v1629
        %v1631 = vpop.f32.mrb[0].mxu0
        %v1632 = vpop.f32.mrb[0].mxu0
        %v1633 = vadd.f32 0.0, %v1632
        %v1634 = vpop.f32.mrb[0].mxu0
        %1635 = vmatprep.mubr.bf16.mxu0 0
        %1636 = vmatmul.mubr.bf16.gmra.mrb[0].mxu0 %v1517
        %v1637 = vpop.f32.mrb[0].mxu0
        %v1638 = vadd.f32 0.0, %v1637
        %v1639 = vpop.f32.mrb[0].mxu0
        %v1640 = vpop.f32.mrb[0].mxu0
        %v1641 = vadd.f32 0.0, %v1640
        %v1642 = vpop.f32.mrb[0].mxu0
        %1643 = vmatprep.mubr.bf16.mxu0 0
        %1644 = vmatmul.mubr.bf16.gmra.mrb[0].mxu0 %v1520
        %v1645 = vpop.f32.mrb[0].mxu0
        %v1646 = vadd.f32 0.0, %v1645
        %v1647 = vpop.f32.mrb[0].mxu0
        %v1648 = vpop.f32.mrb[0].mxu0
        %v1649 = vadd.f32 0.0, %v1648
        %v1650 = vpop.f32.mrb[0].mxu0
        %1651 = vmatprep.mubr.bf16.mxu0 0
        %1652 = vmatmul.mubr.bf16.gmra.mrb[0].mxu0 %v1523
        %v1653 = vpop.f32.mrb[0].mxu0
        %v1654 = vadd.f32 0.0, %v1653
        %v1655 = vpop.f32.mrb[0].mxu0
        %v1656 = vpop.f32.mrb[0].mxu0
        %v1657 = vadd.f32 0.0, %v1656
        %v1658 = vpop.f32.mrb[0].mxu0
        %1659 = vmatprep.mubr.bf16.mxu0 0
        %1660 = vmatmul.mubr.bf16.gmra.mrb[0].mxu0 %v1526
        %v1661 = vpop.f32.mrb[0].mxu0
        %v1662 = vadd.f32 0.0, %v1661
        %v1663 = vpop.f32.mrb[0].mxu0
        %v1664 = vpop.f32.mrb[0].mxu0
        %v1665 = vadd.f32 0.0, %v1664
        %v1666 = vpop.f32.mrb[0].mxu0
        %1667 = vmatprep.mubr.bf16.mxu0 0
        %1668 = vmatmul.mubr.bf16.gmra.mrb[0].mxu0 %v1529
        %v1669 = vpop.f32.mrb[0].mxu0
        %v1670 = vadd.f32 0.0, %v1669
        %v1671 = vpop.f32.mrb[0].mxu0
        %v1672 = vpop.f32.mrb[0].mxu0
        %v1673 = vadd.f32 0.0, %v1672
        %v1674 = vpop.f32.mrb[0].mxu0
        %1675 = vmatprep.mubr.bf16.mxu0 0
        %1676 = vmatmul.mubr.bf16.gmra.mrb[0].mxu0 %v1532
        %v1677 = vpop.f32.mrb[0].mxu0
        %v1678 = vadd.f32 0.0, %v1677
        %v1679 = vpop.f32.mrb[0].mxu0
        %v1680 = vpop.f32.mrb[0].mxu0
        %v1681 = vadd.f32 0.0, %v1680
        %v1682 = vpop.f32.mrb[0].mxu0
        %1683 = vmatprep.mubr.bf16.mxu0 0
        %1684 = vmatmul.mubr.bf16.gmra.mrb[0].mxu0 %v1535
        %v1685 = vpop.f32.mrb[0].mxu0
        %v1686 = vadd.f32 0.0, %v1685
        %v1687 = vpop.f32.mrb[0].mxu0
        %v1688 = vpop.f32.mrb[0].mxu0
        %v1689 = vadd.f32 0.0, %v1688
        %v1690 = vpop.f32.mrb[0].mxu0
        %1691 = vmatprep.mubr.bf16.mxu0 0
        %1692 = vmatmul.mubr.bf16.gmra.mrb[0].mxu0 %v1538
        %v1693 = vpop.f32.mrb[0].mxu0
        %v1694 = vadd.f32 0.0, %v1693
        %v1695 = vpop.f32.mrb[0].mxu0
        %v1696 = vpop.f32.mrb[0].mxu0
        %v1697 = vadd.f32 0.0, %v1696
        %v1698 = vpop.f32.mrb[0].mxu0
        %1699 = vmatprep.mubr.bf16.mxu0 0
        %1700 = vmatmul.mubr.bf16.gmra.mrb[0].mxu0 %v1541
        %v1701 = vpop.f32.mrb[0].mxu0
        %v1702 = vadd.f32 0.0, %v1701
        %v1703 = vpop.f32.mrb[0].mxu0
        %v1704 = vpop.f32.mrb[0].mxu0
        %v1705 = vadd.f32 0.0, %v1704
        %v1706 = vpop.f32.mrb[0].mxu0
        %1707 = vmatprep.mubr.bf16.mxu0 0
        %1708 = vmatmul.mubr.bf16.gmra.mrb[0].mxu0 %v1544
        %v1709 = vpop.f32.mrb[0].mxu0
        %v1710 = vadd.f32 0.0, %v1709
        %v1711 = vpop.f32.mrb[0].mxu0
        %v1712 = vpop.f32.mrb[0].mxu0
        %v1713 = vadd.f32 0.0, %v1712
        %v1714 = vpop.f32.mrb[0].mxu0
        %1715 = vmatprep.mubr.bf16.mxu0 0
        %1716 = vmatmul.mubr.bf16.gmra.mrb[0].mxu0 %v1547
        %v1717 = vpop.f32.mrb[0].mxu0
        %v1718 = vadd.f32 0.0, %v1717
        %v1719 = vpop.f32.mrb[0].mxu0
        %v1720 = vpop.f32.mrb[0].mxu0
        %v1721 = vadd.f32 0.0, %v1720
        %v1722 = vpop.f32.mrb[0].mxu0
        %1723 = vmatprep.mubr.bf16.mxu0 0
        %1724 = vmatmul.mubr.bf16.gmra.mrb[0].mxu0 %v1550
        %v1725 = vpop.f32.mrb[0].mxu0
        %v1726 = vadd.f32 0.0, %v1725
        %v1727 = vpop.f32.mrb[0].mxu0
        %v1728 = vpop.f32.mrb[0].mxu0
        %v1729 = vadd.f32 0.0, %v1728
        %v1730 = vpop.f32.mrb[0].mxu0
        %1731 = vdwg.mxu0
        %v1732 = vadd.f32 %v1293, %v1590
        %v1733 = vadd.f32 %v1294, %v1593
        %v1734 = vadd.f32 %v1295, %v1598
        %v1735 = vadd.f32 %v1296, %v1601
        %v1736 = vadd.f32 %v1297, %v1606
        %v1737 = vadd.f32 %v1298, %v1609
        %v1738 = vadd.f32 %v1299, %v1614
        %v1739 = vadd.f32 %v1300, %v1617
        %v1740 = vadd.f32 %v1301, %v1622
        %v1741 = vadd.f32 %v1302, %v1625
        %v1742 = vadd.f32 %v1303, %v1630
        %v1743 = vadd.f32 %v1304, %v1633
        %v1744 = vadd.f32 %v1305, %v1638
        %v1745 = vadd.f32 %v1306, %v1641
        %v1746 = vadd.f32 %v1307, %v1646
        %v1747 = vadd.f32 %v1308, %v1649
        %v1748 = vadd.f32 %v1309, %v1654
        %v1749 = vadd.f32 %v1310, %v1657
        %v1750 = vadd.f32 %v1311, %v1662
        %v1751 = vadd.f32 %v1312, %v1665
        %v1752 = vadd.f32 %v1313, %v1670
        %v1753 = vadd.f32 %v1314, %v1673
        %v1754 = vadd.f32 %v1315, %v1678
        %v1755 = vadd.f32 %v1316, %v1681
        %v1756 = vadd.f32 %v1317, %v1686
        %v1757 = vadd.f32 %v1318, %v1689
        %v1758 = vadd.f32 %v1319, %v1694
        %v1759 = vadd.f32 %v1320, %v1697
        %v1760 = vadd.f32 %v1321, %v1702
        %v1761 = vadd.f32 %v1322, %v1705
        %v1762 = vadd.f32 %v1323, %v1710
        %v1763 = vadd.f32 %v1324, %v1713
        %v1764 = vadd.f32 %v1325, %v1718
        %v1765 = vadd.f32 %v1326, %v1721
        %v1766 = vadd.f32 %v1327, %v1726
        %v1767 = vadd.f32 %v1328, %v1729
        %v1768 = vld [vmem:[%s238 + $0x98] sm:$0x3]
        %s1769 = scalar_lea.vmem %s1, 8
        %v1770 = vld [vmem:[%s1769] sm:$0x3]
        %v1772 = vunpack.c.l.b16 %v1768
        %v1773 = vpack.c.b16 %v1772, %v1772
        %vm1774 = vsmask.f32 6400
        %v1776 = vshrl.u32 %v1442, 16
        %v1778 = vrot.slane %v1776, 1
        %v1779 = vshll.u32 %v1442, 16
        %v1781 = vrot.slane %v1779, 2
        %v1782 = vor.u32 %v1778, %v1781
        %v1784 = vshrl.u32 %v1443, 16
        %v1786 = vrot.slane %v1784, 1
        %v1787 = vshll.u32 %v1443, 16
        %v1789 = vrot.slane %v1787, 2
        %v1790 = vor.u32 %v1786, %v1789
        %v1791 = vsel %vm1774, %v1782, %v1790
        %v1793 = vshrl.u32 %v1444, 16
        %v1795 = vrot.slane %v1793, 1
        %v1796 = vshll.u32 %v1444, 16
        %v1798 = vrot.slane %v1796, 2
        %v1799 = vor.u32 %v1795, %v1798
        %v1800 = vsel %vm1774, %v1790, %v1799
        %v1802 = vshrl.u32 %v1445, 16
        %v1804 = vrot.slane %v1802, 1
        %v1805 = vshll.u32 %v1445, 16
        %v1807 = vrot.slane %v1805, 2
        %v1808 = vor.u32 %v1804, %v1807
        %v1809 = vsel %vm1774, %v1799, %v1808
        %v1811 = vshrl.u32 %v1446, 16
        %v1813 = vrot.slane %v1811, 1
        %v1814 = vshll.u32 %v1446, 16
        %v1816 = vrot.slane %v1814, 2
        %v1817 = vor.u32 %v1813, %v1816
        %v1818 = vsel %vm1774, %v1808, %v1817
        %v1820 = vshrl.u32 %v1447, 16
        %v1822 = vrot.slane %v1820, 1
        %v1823 = vshll.u32 %v1447, 16
        %v1825 = vrot.slane %v1823, 2
        %v1826 = vor.u32 %v1822, %v1825
        %v1827 = vsel %vm1774, %v1817, %v1826
        %v1829 = vshrl.u32 %v1448, 16
        %v1831 = vrot.slane %v1829, 1
        %v1832 = vshll.u32 %v1448, 16
        %v1834 = vrot.slane %v1832, 2
        %v1835 = vor.u32 %v1831, %v1834
        %v1836 = vsel %vm1774, %v1826, %v1835
        %v1838 = vshrl.u32 %v1449, 16
        %v1840 = vrot.slane %v1838, 1
        %v1841 = vshll.u32 %v1449, 16
        %v1843 = vrot.slane %v1841, 2
        %v1844 = vor.u32 %v1840, %v1843
        %v1845 = vsel %vm1774, %v1835, %v1844
        %v1847 = vshrl.u32 %v1450, 16
        %v1849 = vrot.slane %v1847, 1
        %v1850 = vshll.u32 %v1450, 16
        %v1852 = vrot.slane %v1850, 2
        %v1853 = vor.u32 %v1849, %v1852
        %v1854 = vsel %vm1774, %v1844, %v1853
        %v1856 = vshrl.u32 %v1451, 16
        %v1858 = vrot.slane %v1856, 1
        %v1859 = vshll.u32 %v1451, 16
        %v1861 = vrot.slane %v1859, 2
        %v1862 = vor.u32 %v1858, %v1861
        %v1863 = vsel %vm1774, %v1853, %v1862
        %v1865 = vshrl.u32 %v1452, 16
        %v1867 = vrot.slane %v1865, 1
        %v1868 = vshll.u32 %v1452, 16
        %v1870 = vrot.slane %v1868, 2
        %v1871 = vor.u32 %v1867, %v1870
        %v1872 = vsel %vm1774, %v1862, %v1871
        %v1874 = vshrl.u32 %v1453, 16
        %v1876 = vrot.slane %v1874, 1
        %v1877 = vshll.u32 %v1453, 16
        %v1879 = vrot.slane %v1877, 2
        %v1880 = vor.u32 %v1876, %v1879
        %v1881 = vsel %vm1774, %v1871, %v1880
        %v1883 = vshrl.u32 %v1454, 16
        %v1885 = vrot.slane %v1883, 1
        %v1886 = vshll.u32 %v1454, 16
        %v1888 = vrot.slane %v1886, 2
        %v1889 = vor.u32 %v1885, %v1888
        %v1890 = vsel %vm1774, %v1880, %v1889
        %v1892 = vshrl.u32 %v1455, 16
        %v1894 = vrot.slane %v1892, 1
        %v1895 = vshll.u32 %v1455, 16
        %v1897 = vrot.slane %v1895, 2
        %v1898 = vor.u32 %v1894, %v1897
        %v1899 = vsel %vm1774, %v1889, %v1898
        %v1901 = vshrl.u32 %v1456, 16
        %v1903 = vrot.slane %v1901, 1
        %v1904 = vshll.u32 %v1456, 16
        %v1906 = vrot.slane %v1904, 2
        %v1907 = vor.u32 %v1903, %v1906
        %v1908 = vsel %vm1774, %v1898, %v1907
        %v1910 = vshrl.u32 %v1457, 16
        %v1912 = vrot.slane %v1910, 1
        %v1913 = vshll.u32 %v1457, 16
        %v1915 = vrot.slane %v1913, 2
        %v1916 = vor.u32 %v1912, %v1915
        %v1917 = vsel %vm1774, %v1907, %v1916
        %v1919 = vshrl.u32 %v1458, 16
        %v1921 = vrot.slane %v1919, 1
        %v1922 = vshll.u32 %v1458, 16
        %v1924 = vrot.slane %v1922, 2
        %v1925 = vor.u32 %v1921, %v1924
        %v1926 = vsel %vm1774, %v1916, %v1925
        %v1928 = vshrl.u32 %v1459, 16
        %v1930 = vrot.slane %v1928, 1
        %v1931 = vshll.u32 %v1459, 16
        %v1933 = vrot.slane %v1931, 2
        %v1934 = vor.u32 %v1930, %v1933
        %v1935 = vsel %vm1774, %v1925, %v1934
        %v1937 = vshrl.u32 %v1773, 16
        %v1939 = vrot.slane %v1937, 1
        %v1940 = vshll.u32 %v1773, 16
        %v1942 = vrot.slane %v1940, 2
        %v1943 = vor.u32 %v1939, %v1942
        %v1944 = vsel %vm1774, %v1934, %v1943
        %v1946 = vsel %vm563, %v1791, 0
        %v1949 = vsel %vm563, %v1800, 0
        %v1952 = vsel %vm563, %v1809, 0
        %v1955 = vsel %vm563, %v1818, 0
        %v1958 = vsel %vm563, %v1827, 0
        %v1961 = vsel %vm563, %v1836, 0
        %v1964 = vsel %vm563, %v1845, 0
        %v1967 = vsel %vm563, %v1854, 0
        %v1970 = vsel %vm563, %v1863, 0
        %v1973 = vsel %vm563, %v1872, 0
        %v1976 = vsel %vm563, %v1881, 0
        %v1979 = vsel %vm563, %v1890, 0
        %v1982 = vsel %vm563, %v1899, 0
        %v1985 = vsel %vm563, %v1908, 0
        %v1988 = vsel %vm563, %v1917, 0
        %v1991 = vsel %vm563, %v1926, 0
        %v1994 = vsel %vm563, %v1935, 0
        %v1997 = vsel %vm563, %v1944, 0
        %v2000 = vsel %vm618, %v1770, 0
        %2002 = vmatprep.subr.bf16.mxu0 0
        %2003 = vmatpush1.bf16.msra.mxu0 %v2000
        %2004 = vmatprep.subr.bf16.mxu0 0
        %2005 = vmatpush1.bf16.msra.mxu0 0
        %2006 = vmatprep.subr.bf16.mxu0 0
        %2007 = vmatpush1.bf16.msra.mxu0 0
        %2008 = vmatprep.subr.bf16.mxu0 0
        %2009 = vmatpush1.bf16.msra.mxu0 0
        %2010 = vmatprep.subr.bf16.mxu0 0
        %2011 = vmatpush1.bf16.msra.mxu0 0
        %2012 = vmatprep.subr.bf16.mxu0 0
        %2013 = vmatpush1.bf16.msra.mxu0 0
        %2014 = vmatprep.subr.bf16.mxu0 0
        %2015 = vmatpush1.bf16.msra.mxu0 0
        %2016 = vmatprep.subr.bf16.mxu0 0
        %2017 = vmatpush1.bf16.msra.mxu0 0
        %2018 = vmatprep.subr.bf16.mxu0 0
        %2019 = vmatpush1.bf16.msra.mxu0 0
        %2020 = vmatprep.subr.bf16.mxu0 0
        %2021 = vmatpush1.bf16.msra.mxu0 0
        %2022 = vmatprep.subr.bf16.mxu0 0
        %2023 = vmatpush1.bf16.msra.mxu0 0
        %2024 = vmatprep.subr.bf16.mxu0 0
        %2025 = vmatpush1.bf16.msra.mxu0 0
        %2026 = vmatprep.subr.bf16.mxu0 0
        %2027 = vmatpush1.bf16.msra.mxu0 0
        %2028 = vmatprep.subr.bf16.mxu0 0
        %2029 = vmatpush1.bf16.msra.mxu0 0
        %2030 = vmatprep.subr.bf16.mxu0 0
        %2031 = vmatpush1.bf16.msra.mxu0 0
        %2032 = vmatprep.subr.bf16.mxu0 0
        %2033 = vmatpush1.bf16.msra.mxu0 0
        %2034 = vmatprep.mubr.bf16.mxu0 0
        %2035 = vmatmul.mubr.bf16.gmra.mrb[0].mxu0 %v1946
        %v2036 = vpop.f32.mrb[0].mxu0
        %v2037 = vadd.f32 0.0, %v2036
        %v2038 = vpop.f32.mrb[0].mxu0
        %v2039 = vpop.f32.mrb[0].mxu0
        %v2040 = vadd.f32 0.0, %v2039
        %v2041 = vpop.f32.mrb[0].mxu0
        %2042 = vmatprep.mubr.bf16.mxu0 0
        %2043 = vmatmul.mubr.bf16.gmra.mrb[0].mxu0 %v1949
        %v2044 = vpop.f32.mrb[0].mxu0
        %v2045 = vadd.f32 0.0, %v2044
        %v2046 = vpop.f32.mrb[0].mxu0
        %v2047 = vpop.f32.mrb[0].mxu0
        %v2048 = vadd.f32 0.0, %v2047
        %v2049 = vpop.f32.mrb[0].mxu0
        %2050 = vmatprep.mubr.bf16.mxu0 0
        %2051 = vmatmul.mubr.bf16.gmra.mrb[0].mxu0 %v1952
        %v2052 = vpop.f32.mrb[0].mxu0
        %v2053 = vadd.f32 0.0, %v2052
        %v2054 = vpop.f32.mrb[0].mxu0
        %v2055 = vpop.f32.mrb[0].mxu0
        %v2056 = vadd.f32 0.0, %v2055
        %v2057 = vpop.f32.mrb[0].mxu0
        %2058 = vmatprep.mubr.bf16.mxu0 0
        %2059 = vmatmul.mubr.bf16.gmra.mrb[0].mxu0 %v1955
        %v2060 = vpop.f32.mrb[0].mxu0
        %v2061 = vadd.f32 0.0, %v2060
        %v2062 = vpop.f32.mrb[0].mxu0
        %v2063 = vpop.f32.mrb[0].mxu0
        %v2064 = vadd.f32 0.0, %v2063
        %v2065 = vpop.f32.mrb[0].mxu0
        %2066 = vmatprep.mubr.bf16.mxu0 0
        %2067 = vmatmul.mubr.bf16.gmra.mrb[0].mxu0 %v1958
        %v2068 = vpop.f32.mrb[0].mxu0
        %v2069 = vadd.f32 0.0, %v2068
        %v2070 = vpop.f32.mrb[0].mxu0
        %v2071 = vpop.f32.mrb[0].mxu0
        %v2072 = vadd.f32 0.0, %v2071
        %v2073 = vpop.f32.mrb[0].mxu0
        %2074 = vmatprep.mubr.bf16.mxu0 0
        %2075 = vmatmul.mubr.bf16.gmra.mrb[0].mxu0 %v1961
        %v2076 = vpop.f32.mrb[0].mxu0
        %v2077 = vadd.f32 0.0, %v2076
        %v2078 = vpop.f32.mrb[0].mxu0
        %v2079 = vpop.f32.mrb[0].mxu0
        %v2080 = vadd.f32 0.0, %v2079
        %v2081 = vpop.f32.mrb[0].mxu0
        %2082 = vmatprep.mubr.bf16.mxu0 0
        %2083 = vmatmul.mubr.bf16.gmra.mrb[0].mxu0 %v1964
        %v2084 = vpop.f32.mrb[0].mxu0
        %v2085 = vadd.f32 0.0, %v2084
        %v2086 = vpop.f32.mrb[0].mxu0
        %v2087 = vpop.f32.mrb[0].mxu0
        %v2088 = vadd.f32 0.0, %v2087
        %v2089 = vpop.f32.mrb[0].mxu0
        %2090 = vmatprep.mubr.bf16.mxu0 0
        %2091 = vmatmul.mubr.bf16.gmra.mrb[0].mxu0 %v1967
        %v2092 = vpop.f32.mrb[0].mxu0
        %v2093 = vadd.f32 0.0, %v2092
        %v2094 = vpop.f32.mrb[0].mxu0
        %v2095 = vpop.f32.mrb[0].mxu0
        %v2096 = vadd.f32 0.0, %v2095
        %v2097 = vpop.f32.mrb[0].mxu0
        %2098 = vmatprep.mubr.bf16.mxu0 0
        %2099 = vmatmul.mubr.bf16.gmra.mrb[0].mxu0 %v1970
        %v2100 = vpop.f32.mrb[0].mxu0
        %v2101 = vadd.f32 0.0, %v2100
        %v2102 = vpop.f32.mrb[0].mxu0
        %v2103 = vpop.f32.mrb[0].mxu0
        %v2104 = vadd.f32 0.0, %v2103
        %v2105 = vpop.f32.mrb[0].mxu0
        %2106 = vmatprep.mubr.bf16.mxu0 0
        %2107 = vmatmul.mubr.bf16.gmra.mrb[0].mxu0 %v1973
        %v2108 = vpop.f32.mrb[0].mxu0
        %v2109 = vadd.f32 0.0, %v2108
        %v2110 = vpop.f32.mrb[0].mxu0
        %v2111 = vpop.f32.mrb[0].mxu0
        %v2112 = vadd.f32 0.0, %v2111
        %v2113 = vpop.f32.mrb[0].mxu0
        %2114 = vmatprep.mubr.bf16.mxu0 0
        %2115 = vmatmul.mubr.bf16.gmra.mrb[0].mxu0 %v1976
        %v2116 = vpop.f32.mrb[0].mxu0
        %v2117 = vadd.f32 0.0, %v2116
        %v2118 = vpop.f32.mrb[0].mxu0
        %v2119 = vpop.f32.mrb[0].mxu0
        %v2120 = vadd.f32 0.0, %v2119
        %v2121 = vpop.f32.mrb[0].mxu0
        %2122 = vmatprep.mubr.bf16.mxu0 0
        %2123 = vmatmul.mubr.bf16.gmra.mrb[0].mxu0 %v1979
        %v2124 = vpop.f32.mrb[0].mxu0
        %v2125 = vadd.f32 0.0, %v2124
        %v2126 = vpop.f32.mrb[0].mxu0
        %v2127 = vpop.f32.mrb[0].mxu0
        %v2128 = vadd.f32 0.0, %v2127
        %v2129 = vpop.f32.mrb[0].mxu0
        %2130 = vmatprep.mubr.bf16.mxu0 0
        %2131 = vmatmul.mubr.bf16.gmra.mrb[0].mxu0 %v1982
        %v2132 = vpop.f32.mrb[0].mxu0
        %v2133 = vadd.f32 0.0, %v2132
        %v2134 = vpop.f32.mrb[0].mxu0
        %v2135 = vpop.f32.mrb[0].mxu0
        %v2136 = vadd.f32 0.0, %v2135
        %v2137 = vpop.f32.mrb[0].mxu0
        %2138 = vmatprep.mubr.bf16.mxu0 0
        %2139 = vmatmul.mubr.bf16.gmra.mrb[0].mxu0 %v1985
        %v2140 = vpop.f32.mrb[0].mxu0
        %v2141 = vadd.f32 0.0, %v2140
        %v2142 = vpop.f32.mrb[0].mxu0
        %v2143 = vpop.f32.mrb[0].mxu0
        %v2144 = vadd.f32 0.0, %v2143
        %v2145 = vpop.f32.mrb[0].mxu0
        %2146 = vmatprep.mubr.bf16.mxu0 0
        %2147 = vmatmul.mubr.bf16.gmra.mrb[0].mxu0 %v1988
        %v2148 = vpop.f32.mrb[0].mxu0
        %v2149 = vadd.f32 0.0, %v2148
        %v2150 = vpop.f32.mrb[0].mxu0
        %v2151 = vpop.f32.mrb[0].mxu0
        %v2152 = vadd.f32 0.0, %v2151
        %v2153 = vpop.f32.mrb[0].mxu0
        %2154 = vmatprep.mubr.bf16.mxu0 0
        %2155 = vmatmul.mubr.bf16.gmra.mrb[0].mxu0 %v1991
        %v2156 = vpop.f32.mrb[0].mxu0
        %v2157 = vadd.f32 0.0, %v2156
        %v2158 = vpop.f32.mrb[0].mxu0
        %v2159 = vpop.f32.mrb[0].mxu0
        %v2160 = vadd.f32 0.0, %v2159
        %v2161 = vpop.f32.mrb[0].mxu0
        %2162 = vmatprep.mubr.bf16.mxu0 0
        %2163 = vmatmul.mubr.bf16.gmra.mrb[0].mxu0 %v1994
        %v2164 = vpop.f32.mrb[0].mxu0
        %v2165 = vadd.f32 0.0, %v2164
        %v2166 = vpop.f32.mrb[0].mxu0
        %v2167 = vpop.f32.mrb[0].mxu0
        %v2168 = vadd.f32 0.0, %v2167
        %v2169 = vpop.f32.mrb[0].mxu0
        %2170 = vmatprep.mubr.bf16.mxu0 0
        %2171 = vmatmul.mubr.bf16.gmra.mrb[0].mxu0 %v1997
        %v2172 = vpop.f32.mrb[0].mxu0
        %v2173 = vadd.f32 0.0, %v2172
        %v2174 = vpop.f32.mrb[0].mxu0
        %v2175 = vpop.f32.mrb[0].mxu0
        %v2176 = vadd.f32 0.0, %v2175
        %v2177 = vpop.f32.mrb[0].mxu0
        %2178 = vdwg.mxu0
        %v2179 = vadd.f32 %v1732, %v2037
        %v2180 = vadd.f32 %v1733, %v2040
        %v2181 = vadd.f32 %v1734, %v2045
        %v2182 = vadd.f32 %v1735, %v2048
        %v2183 = vadd.f32 %v1736, %v2053
        %v2184 = vadd.f32 %v1737, %v2056
        %v2185 = vadd.f32 %v1738, %v2061
        %v2186 = vadd.f32 %v1739, %v2064
        %v2187 = vadd.f32 %v1740, %v2069
        %v2188 = vadd.f32 %v1741, %v2072
        %v2189 = vadd.f32 %v1742, %v2077
        %v2190 = vadd.f32 %v1743, %v2080
        %v2191 = vadd.f32 %v1744, %v2085
        %v2192 = vadd.f32 %v1745, %v2088
        %v2193 = vadd.f32 %v1746, %v2093
        %v2194 = vadd.f32 %v1747, %v2096
        %v2195 = vadd.f32 %v1748, %v2101
        %v2196 = vadd.f32 %v1749, %v2104
        %v2197 = vadd.f32 %v1750, %v2109
        %v2198 = vadd.f32 %v1751, %v2112
        %v2199 = vadd.f32 %v1752, %v2117
        %v2200 = vadd.f32 %v1753, %v2120
        %v2201 = vadd.f32 %v1754, %v2125
        %v2202 = vadd.f32 %v1755, %v2128
        %v2203 = vadd.f32 %v1756, %v2133
        %v2204 = vadd.f32 %v1757, %v2136
        %v2205 = vadd.f32 %v1758, %v2141
        %v2206 = vadd.f32 %v1759, %v2144
        %v2207 = vadd.f32 %v1760, %v2149
        %v2208 = vadd.f32 %v1761, %v2152
        %v2209 = vadd.f32 %v1762, %v2157
        %v2210 = vadd.f32 %v1763, %v2160
        %v2211 = vadd.f32 %v1764, %v2165
        %v2212 = vadd.f32 %v1765, %v2168
        %v2213 = vadd.f32 %v1766, %v2173
        %v2214 = vadd.f32 %v1767, %v2176
        %v2215 = vld [vmem:[%s238 + $0x8] sm:$0xc]
        %s2216 = scalar_lea.vmem %s1, 10
        %v2217 = vld [vmem:[%s2216] sm:$0x3]
        %v2219 = vunpack.c.l.b16 %v2215
        %v2220 = vpack.c.b16 %v1406, %v2219
        %vm2221 = vcmask 1045504
        %v2222 = vrot.slane %v2220, 2
        %v2223 = vrot.slane %v1443, 2
        %v2224 = vsel %vm2221, %v2222, %v2223
        %v2225 = vrot.slane %v1444, 2
        %v2226 = vsel %vm2221, %v2223, %v2225
        %v2227 = vrot.slane %v1445, 2
        %v2228 = vsel %vm2221, %v2225, %v2227
        %v2229 = vrot.slane %v1446, 2
        %v2230 = vsel %vm2221, %v2227, %v2229
        %v2231 = vrot.slane %v1447, 2
        %v2232 = vsel %vm2221, %v2229, %v2231
        %v2233 = vrot.slane %v1448, 2
        %v2234 = vsel %vm2221, %v2231, %v2233
        %v2235 = vrot.slane %v1449, 2
        %v2236 = vsel %vm2221, %v2233, %v2235
        %v2237 = vrot.slane %v1450, 2
        %v2238 = vsel %vm2221, %v2235, %v2237
        %v2239 = vrot.slane %v1451, 2
        %v2240 = vsel %vm2221, %v2237, %v2239
        %v2241 = vrot.slane %v1452, 2
        %v2242 = vsel %vm2221, %v2239, %v2241
        %v2243 = vrot.slane %v1453, 2
        %v2244 = vsel %vm2221, %v2241, %v2243
        %v2245 = vrot.slane %v1454, 2
        %v2246 = vsel %vm2221, %v2243, %v2245
        %v2247 = vrot.slane %v1455, 2
        %v2248 = vsel %vm2221, %v2245, %v2247
        %v2249 = vrot.slane %v1456, 2
        %v2250 = vsel %vm2221, %v2247, %v2249
        %v2251 = vrot.slane %v1457, 2
        %v2252 = vsel %vm2221, %v2249, %v2251
        %v2253 = vrot.slane %v1458, 2
        %v2254 = vsel %vm2221, %v2251, %v2253
        %v2255 = vrot.slane %v1459, 2
        %v2256 = vsel %vm2221, %v2253, %v2255
        %v2257 = vrot.slane %v1773, 2
        %v2258 = vsel %vm2221, %v2255, %v2257
        %v2260 = vsel %vm563, %v2224, 0
        %v2263 = vsel %vm563, %v2226, 0
        %v2266 = vsel %vm563, %v2228, 0
        %v2269 = vsel %vm563, %v2230, 0
        %v2272 = vsel %vm563, %v2232, 0
        %v2275 = vsel %vm563, %v2234, 0
        %v2278 = vsel %vm563, %v2236, 0
        %v2281 = vsel %vm563, %v2238, 0
        %v2284 = vsel %vm563, %v2240, 0
        %v2287 = vsel %vm563, %v2242, 0
        %v2290 = vsel %vm563, %v2244, 0
        %v2293 = vsel %vm563, %v2246, 0
        %v2296 = vsel %vm563, %v2248, 0
        %v2299 = vsel %vm563, %v2250, 0
        %v2302 = vsel %vm563, %v2252, 0
        %v2305 = vsel %vm563, %v2254, 0
        %v2308 = vsel %vm563, %v2256, 0
        %v2311 = vsel %vm563, %v2258, 0
        %v2314 = vsel %vm618, %v2217, 0
        %2316 = vmatprep.subr.bf16.mxu0 0
        %2317 = vmatpush1.bf16.msra.mxu0 %v2314
        %2318 = vmatprep.subr.bf16.mxu0 0
        %2319 = vmatpush1.bf16.msra.mxu0 0
        %2320 = vmatprep.subr.bf16.mxu0 0
        %2321 = vmatpush1.bf16.msra.mxu0 0
        %2322 = vmatprep.subr.bf16.mxu0 0
        %2323 = vmatpush1.bf16.msra.mxu0 0
        %2324 = vmatprep.subr.bf16.mxu0 0
        %2325 = vmatpush1.bf16.msra.mxu0 0
        %2326 = vmatprep.subr.bf16.mxu0 0
        %2327 = vmatpush1.bf16.msra.mxu0 0
        %2328 = vmatprep.subr.bf16.mxu0 0
        %2329 = vmatpush1.bf16.msra.mxu0 0
        %2330 = vmatprep.subr.bf16.mxu0 0
        %2331 = vmatpush1.bf16.msra.mxu0 0
        %2332 = vmatprep.subr.bf16.mxu0 0
        %2333 = vmatpush1.bf16.msra.mxu0 0
        %2334 = vmatprep.subr.bf16.mxu0 0
        %2335 = vmatpush1.bf16.msra.mxu0 0
        %2336 = vmatprep.subr.bf16.mxu0 0
        %2337 = vmatpush1.bf16.msra.mxu0 0
        %2338 = vmatprep.subr.bf16.mxu0 0
        %2339 = vmatpush1.bf16.msra.mxu0 0
        %2340 = vmatprep.subr.bf16.mxu0 0
        %2341 = vmatpush1.bf16.msra.mxu0 0
        %2342 = vmatprep.subr.bf16.mxu0 0
        %2343 = vmatpush1.bf16.msra.mxu0 0
        %2344 = vmatprep.subr.bf16.mxu0 0
        %2345 = vmatpush1.bf16.msra.mxu0 0
        %2346 = vmatprep.subr.bf16.mxu0 0
        %2347 = vmatpush1.bf16.msra.mxu0 0
        %2348 = vmatprep.mubr.bf16.mxu0 0
        %2349 = vmatmul.mubr.bf16.gmra.mrb[0].mxu0 %v2260
        %v2350 = vpop.f32.mrb[0].mxu0
        %v2351 = vadd.f32 0.0, %v2350
        %v2352 = vpop.f32.mrb[0].mxu0
        %v2353 = vpop.f32.mrb[0].mxu0
        %v2354 = vadd.f32 0.0, %v2353
        %v2355 = vpop.f32.mrb[0].mxu0
        %2356 = vmatprep.mubr.bf16.mxu0 0
        %2357 = vmatmul.mubr.bf16.gmra.mrb[0].mxu0 %v2263
        %v2358 = vpop.f32.mrb[0].mxu0
        %v2359 = vadd.f32 0.0, %v2358
        %v2360 = vpop.f32.mrb[0].mxu0
        %v2361 = vpop.f32.mrb[0].mxu0
        %v2362 = vadd.f32 0.0, %v2361
        %v2363 = vpop.f32.mrb[0].mxu0
        %2364 = vmatprep.mubr.bf16.mxu0 0
        %2365 = vmatmul.mubr.bf16.gmra.mrb[0].mxu0 %v2266
        %v2366 = vpop.f32.mrb[0].mxu0
        %v2367 = vadd.f32 0.0, %v2366
        %v2368 = vpop.f32.mrb[0].mxu0
        %v2369 = vpop.f32.mrb[0].mxu0
        %v2370 = vadd.f32 0.0, %v2369
        %v2371 = vpop.f32.mrb[0].mxu0
        %2372 = vmatprep.mubr.bf16.mxu0 0
        %2373 = vmatmul.mubr.bf16.gmra.mrb[0].mxu0 %v2269
        %v2374 = vpop.f32.mrb[0].mxu0
        %v2375 = vadd.f32 0.0, %v2374
        %v2376 = vpop.f32.mrb[0].mxu0
        %v2377 = vpop.f32.mrb[0].mxu0
        %v2378 = vadd.f32 0.0, %v2377
        %v2379 = vpop.f32.mrb[0].mxu0
        %2380 = vmatprep.mubr.bf16.mxu0 0
        %2381 = vmatmul.mubr.bf16.gmra.mrb[0].mxu0 %v2272
        %v2382 = vpop.f32.mrb[0].mxu0
        %v2383 = vadd.f32 0.0, %v2382
        %v2384 = vpop.f32.mrb[0].mxu0
        %v2385 = vpop.f32.mrb[0].mxu0
        %v2386 = vadd.f32 0.0, %v2385
        %v2387 = vpop.f32.mrb[0].mxu0
        %2388 = vmatprep.mubr.bf16.mxu0 0
        %2389 = vmatmul.mubr.bf16.gmra.mrb[0].mxu0 %v2275
        %v2390 = vpop.f32.mrb[0].mxu0
        %v2391 = vadd.f32 0.0, %v2390
        %v2392 = vpop.f32.mrb[0].mxu0
        %v2393 = vpop.f32.mrb[0].mxu0
        %v2394 = vadd.f32 0.0, %v2393
        %v2395 = vpop.f32.mrb[0].mxu0
        %2396 = vmatprep.mubr.bf16.mxu0 0
        %2397 = vmatmul.mubr.bf16.gmra.mrb[0].mxu0 %v2278
        %v2398 = vpop.f32.mrb[0].mxu0
        %v2399 = vadd.f32 0.0, %v2398
        %v2400 = vpop.f32.mrb[0].mxu0
        %v2401 = vpop.f32.mrb[0].mxu0
        %v2402 = vadd.f32 0.0, %v2401
        %v2403 = vpop.f32.mrb[0].mxu0
        %2404 = vmatprep.mubr.bf16.mxu0 0
        %2405 = vmatmul.mubr.bf16.gmra.mrb[0].mxu0 %v2281
        %v2406 = vpop.f32.mrb[0].mxu0
        %v2407 = vadd.f32 0.0, %v2406
        %v2408 = vpop.f32.mrb[0].mxu0
        %v2409 = vpop.f32.mrb[0].mxu0
        %v2410 = vadd.f32 0.0, %v2409
        %v2411 = vpop.f32.mrb[0].mxu0
        %2412 = vmatprep.mubr.bf16.mxu0 0
        %2413 = vmatmul.mubr.bf16.gmra.mrb[0].mxu0 %v2284
        %v2414 = vpop.f32.mrb[0].mxu0
        %v2415 = vadd.f32 0.0, %v2414
        %v2416 = vpop.f32.mrb[0].mxu0
        %v2417 = vpop.f32.mrb[0].mxu0
        %v2418 = vadd.f32 0.0, %v2417
        %v2419 = vpop.f32.mrb[0].mxu0
        %2420 = vmatprep.mubr.bf16.mxu0 0
        %2421 = vmatmul.mubr.bf16.gmra.mrb[0].mxu0 %v2287
        %v2422 = vpop.f32.mrb[0].mxu0
        %v2423 = vadd.f32 0.0, %v2422
        %v2424 = vpop.f32.mrb[0].mxu0
        %v2425 = vpop.f32.mrb[0].mxu0
        %v2426 = vadd.f32 0.0, %v2425
        %v2427 = vpop.f32.mrb[0].mxu0
        %2428 = vmatprep.mubr.bf16.mxu0 0
        %2429 = vmatmul.mubr.bf16.gmra.mrb[0].mxu0 %v2290
        %v2430 = vpop.f32.mrb[0].mxu0
        %v2431 = vadd.f32 0.0, %v2430
        %v2432 = vpop.f32.mrb[0].mxu0
        %v2433 = vpop.f32.mrb[0].mxu0
        %v2434 = vadd.f32 0.0, %v2433
        %v2435 = vpop.f32.mrb[0].mxu0
        %2436 = vmatprep.mubr.bf16.mxu0 0
        %2437 = vmatmul.mubr.bf16.gmra.mrb[0].mxu0 %v2293
        %v2438 = vpop.f32.mrb[0].mxu0
        %v2439 = vadd.f32 0.0, %v2438
        %v2440 = vpop.f32.mrb[0].mxu0
        %v2441 = vpop.f32.mrb[0].mxu0
        %v2442 = vadd.f32 0.0, %v2441
        %v2443 = vpop.f32.mrb[0].mxu0
        %2444 = vmatprep.mubr.bf16.mxu0 0
        %2445 = vmatmul.mubr.bf16.gmra.mrb[0].mxu0 %v2296
        %v2446 = vpop.f32.mrb[0].mxu0
        %v2447 = vadd.f32 0.0, %v2446
        %v2448 = vpop.f32.mrb[0].mxu0
        %v2449 = vpop.f32.mrb[0].mxu0
        %v2450 = vadd.f32 0.0, %v2449
        %v2451 = vpop.f32.mrb[0].mxu0
        %2452 = vmatprep.mubr.bf16.mxu0 0
        %2453 = vmatmul.mubr.bf16.gmra.mrb[0].mxu0 %v2299
        %v2454 = vpop.f32.mrb[0].mxu0
        %v2455 = vadd.f32 0.0, %v2454
        %v2456 = vpop.f32.mrb[0].mxu0
        %v2457 = vpop.f32.mrb[0].mxu0
        %v2458 = vadd.f32 0.0, %v2457
        %v2459 = vpop.f32.mrb[0].mxu0
        %2460 = vmatprep.mubr.bf16.mxu0 0
        %2461 = vmatmul.mubr.bf16.gmra.mrb[0].mxu0 %v2302
        %v2462 = vpop.f32.mrb[0].mxu0
        %v2463 = vadd.f32 0.0, %v2462
        %v2464 = vpop.f32.mrb[0].mxu0
        %v2465 = vpop.f32.mrb[0].mxu0
        %v2466 = vadd.f32 0.0, %v2465
        %v2467 = vpop.f32.mrb[0].mxu0
        %2468 = vmatprep.mubr.bf16.mxu0 0
        %2469 = vmatmul.mubr.bf16.gmra.mrb[0].mxu0 %v2305
        %v2470 = vpop.f32.mrb[0].mxu0
        %v2471 = vadd.f32 0.0, %v2470
        %v2472 = vpop.f32.mrb[0].mxu0
        %v2473 = vpop.f32.mrb[0].mxu0
        %v2474 = vadd.f32 0.0, %v2473
        %v2475 = vpop.f32.mrb[0].mxu0
        %2476 = vmatprep.mubr.bf16.mxu0 0
        %2477 = vmatmul.mubr.bf16.gmra.mrb[0].mxu0 %v2308
        %v2478 = vpop.f32.mrb[0].mxu0
        %v2479 = vadd.f32 0.0, %v2478
        %v2480 = vpop.f32.mrb[0].mxu0
        %v2481 = vpop.f32.mrb[0].mxu0
        %v2482 = vadd.f32 0.0, %v2481
        %v2483 = vpop.f32.mrb[0].mxu0
        %2484 = vmatprep.mubr.bf16.mxu0 0
        %2485 = vmatmul.mubr.bf16.gmra.mrb[0].mxu0 %v2311
        %v2486 = vpop.f32.mrb[0].mxu0
        %v2487 = vadd.f32 0.0, %v2486
        %v2488 = vpop.f32.mrb[0].mxu0
        %v2489 = vpop.f32.mrb[0].mxu0
        %v2490 = vadd.f32 0.0, %v2489
        %v2491 = vpop.f32.mrb[0].mxu0
        %2492 = vdwg.mxu0
        %v2493 = vadd.f32 %v2179, %v2351
        %v2494 = vadd.f32 %v2180, %v2354
        %v2495 = vadd.f32 %v2181, %v2359
        %v2496 = vadd.f32 %v2182, %v2362
        %v2497 = vadd.f32 %v2183, %v2367
        %v2498 = vadd.f32 %v2184, %v2370
        %v2499 = vadd.f32 %v2185, %v2375
        %v2500 = vadd.f32 %v2186, %v2378
        %v2501 = vadd.f32 %v2187, %v2383
        %v2502 = vadd.f32 %v2188, %v2386
        %v2503 = vadd.f32 %v2189, %v2391
        %v2504 = vadd.f32 %v2190, %v2394
        %v2505 = vadd.f32 %v2191, %v2399
        %v2506 = vadd.f32 %v2192, %v2402
        %v2507 = vadd.f32 %v2193, %v2407
        %v2508 = vadd.f32 %v2194, %v2410
        %v2509 = vadd.f32 %v2195, %v2415
        %v2510 = vadd.f32 %v2196, %v2418
        %v2511 = vadd.f32 %v2197, %v2423
        %v2512 = vadd.f32 %v2198, %v2426
        %v2513 = vadd.f32 %v2199, %v2431
        %v2514 = vadd.f32 %v2200, %v2434
        %v2515 = vadd.f32 %v2201, %v2439
        %v2516 = vadd.f32 %v2202, %v2442
        %v2517 = vadd.f32 %v2203, %v2447
        %v2518 = vadd.f32 %v2204, %v2450
        %v2519 = vadd.f32 %v2205, %v2455
        %v2520 = vadd.f32 %v2206, %v2458
        %v2521 = vadd.f32 %v2207, %v2463
        %v2522 = vadd.f32 %v2208, %v2466
        %v2523 = vadd.f32 %v2209, %v2471
        %v2524 = vadd.f32 %v2210, %v2474
        %v2525 = vadd.f32 %v2211, %v2479
        %v2526 = vadd.f32 %v2212, %v2482
        %v2527 = vadd.f32 %v2213, %v2487
        %v2528 = vadd.f32 %v2214, %v2490
        %v2529 = vld [vmem:[%s238 + $0x10] sm:$0xc]
        %v2530 = vld [vmem:[%s238 + $0x14] sm:$0xf]
        %v2531 = vld [vmem:[%s238 + $0x18] sm:$0xf]
        %v2532 = vld [vmem:[%s238 + $0x1c] sm:$0xf]
        %v2533 = vld [vmem:[%s238 + $0x20] sm:$0xf]
        %v2534 = vld [vmem:[%s238 + $0x24] sm:$0xf]
        %v2535 = vld [vmem:[%s238 + $0x28] sm:$0xf]
        %v2536 = vld [vmem:[%s238 + $0x2c] sm:$0xf]
        %v2537 = vld [vmem:[%s238 + $0x30] sm:$0xf]
        %v2538 = vld [vmem:[%s238 + $0x34] sm:$0xf]
        %v2539 = vld [vmem:[%s238 + $0x38] sm:$0xf]
        %v2540 = vld [vmem:[%s238 + $0x3c] sm:$0xf]
        %v2541 = vld [vmem:[%s238 + $0x40] sm:$0xf]
        %v2542 = vld [vmem:[%s238 + $0x44] sm:$0xf]
        %v2543 = vld [vmem:[%s238 + $0x48] sm:$0xf]
        %v2544 = vld [vmem:[%s238 + $0x4c] sm:$0xf]
        %v2545 = vld [vmem:[%s238 + $0x50] sm:$0xf]
        %v2546 = vld [vmem:[%s238 + $0x54] sm:$0xf]
        %v2547 = vld [vmem:[%s238 + $0x58] sm:$0xf]
        %v2548 = vld [vmem:[%s238 + $0x5c] sm:$0xf]
        %v2549 = vld [vmem:[%s238 + $0x60] sm:$0xf]
        %v2550 = vld [vmem:[%s238 + $0x64] sm:$0xf]
        %v2551 = vld [vmem:[%s238 + $0x68] sm:$0xf]
        %v2552 = vld [vmem:[%s238 + $0x6c] sm:$0xf]
        %v2553 = vld [vmem:[%s238 + $0x70] sm:$0xf]
        %v2554 = vld [vmem:[%s238 + $0x74] sm:$0xf]
        %v2555 = vld [vmem:[%s238 + $0x78] sm:$0xf]
        %v2556 = vld [vmem:[%s238 + $0x7c] sm:$0xf]
        %v2557 = vld [vmem:[%s238 + $0x80] sm:$0xf]
        %v2558 = vld [vmem:[%s238 + $0x84] sm:$0xf]
        %v2559 = vld [vmem:[%s238 + $0x88] sm:$0xf]
        %v2560 = vld [vmem:[%s238 + $0x8c] sm:$0xf]
        %v2561 = vld [vmem:[%s238 + $0x90] sm:$0xf]
        %v2562 = vld [vmem:[%s238 + $0x94] sm:$0xf]
        %v2563 = vld [vmem:[%s238 + $0x98] sm:$0xf]
        %v2564 = vld [vmem:[%s238 + $0x9c] sm:$0xf]
        %v2565 = vld [vmem:[%s238 + $0xa0] sm:$0x3]
        %s2566 = scalar_lea.vmem %s1, 12
        %v2567 = vld [vmem:[%s2566] sm:$0x3]
        %v2605 = vunpack.c.l.b16 %v2529
        %v2606 = vunpack.c.l.b16 %v2530
        %v2607 = vunpack.c.l.b16 %v2531
        %v2608 = vunpack.c.l.b16 %v2532
        %v2609 = vunpack.c.l.b16 %v2533
        %v2610 = vunpack.c.l.b16 %v2534
        %v2611 = vunpack.c.l.b16 %v2535
        %v2612 = vunpack.c.l.b16 %v2536
        %v2613 = vunpack.c.l.b16 %v2537
        %v2614 = vunpack.c.l.b16 %v2538
        %v2615 = vunpack.c.l.b16 %v2539
        %v2616 = vunpack.c.l.b16 %v2540
        %v2617 = vunpack.c.l.b16 %v2541
        %v2618 = vunpack.c.l.b16 %v2542
        %v2619 = vunpack.c.l.b16 %v2543
        %v2620 = vunpack.c.l.b16 %v2544
        %v2621 = vunpack.c.l.b16 %v2545
        %v2622 = vunpack.c.l.b16 %v2546
        %v2623 = vunpack.c.l.b16 %v2547
        %v2624 = vunpack.c.l.b16 %v2548
        %v2625 = vunpack.c.l.b16 %v2549
        %v2626 = vunpack.c.l.b16 %v2550
        %v2627 = vunpack.c.l.b16 %v2551
        %v2628 = vunpack.c.l.b16 %v2552
        %v2629 = vunpack.c.l.b16 %v2553
        %v2630 = vunpack.c.l.b16 %v2554
        %v2631 = vunpack.c.l.b16 %v2555
        %v2632 = vunpack.c.l.b16 %v2556
        %v2633 = vunpack.c.l.b16 %v2557
        %v2634 = vunpack.c.l.b16 %v2558
        %v2635 = vunpack.c.l.b16 %v2559
        %v2636 = vunpack.c.l.b16 %v2560
        %v2637 = vunpack.c.l.b16 %v2561
        %v2638 = vunpack.c.l.b16 %v2562
        %v2639 = vunpack.c.l.b16 %v2563
        %v2640 = vunpack.c.l.b16 %v2564
        %v2641 = vunpack.c.l.b16 %v2565
        %v2642 = vpack.c.b16 %v2606, %v2605
        %v2643 = vpack.c.b16 %v2608, %v2607
        %v2644 = vpack.c.b16 %v2610, %v2609
        %v2645 = vpack.c.b16 %v2612, %v2611
        %v2646 = vpack.c.b16 %v2614, %v2613
        %v2647 = vpack.c.b16 %v2616, %v2615
        %v2648 = vpack.c.b16 %v2618, %v2617
        %v2649 = vpack.c.b16 %v2620, %v2619
        %v2650 = vpack.c.b16 %v2622, %v2621
        %v2651 = vpack.c.b16 %v2624, %v2623
        %v2652 = vpack.c.b16 %v2626, %v2625
        %v2653 = vpack.c.b16 %v2628, %v2627
        %v2654 = vpack.c.b16 %v2630, %v2629
        %v2655 = vpack.c.b16 %v2632, %v2631
        %v2656 = vpack.c.b16 %v2634, %v2633
        %v2657 = vpack.c.b16 %v2636, %v2635
        %v2658 = vpack.c.b16 %v2638, %v2637
        %v2659 = vpack.c.b16 %v2640, %v2639
        %v2660 = vpack.c.b16 %v2641, %v2641
        %v2661 = vrot.slane %v2642, 2
        %v2662 = vrot.slane %v2643, 2
        %v2663 = vsel %vm2221, %v2661, %v2662
        %v2664 = vrot.slane %v2644, 2
        %v2665 = vsel %vm2221, %v2662, %v2664
        %v2666 = vrot.slane %v2645, 2
        %v2667 = vsel %vm2221, %v2664, %v2666
        %v2668 = vrot.slane %v2646, 2
        %v2669 = vsel %vm2221, %v2666, %v2668
        %v2670 = vrot.slane %v2647, 2
        %v2671 = vsel %vm2221, %v2668, %v2670
        %v2672 = vrot.slane %v2648, 2
        %v2673 = vsel %vm2221, %v2670, %v2672
        %v2674 = vrot.slane %v2649, 2
        %v2675 = vsel %vm2221, %v2672, %v2674
        %v2676 = vrot.slane %v2650, 2
        %v2677 = vsel %vm2221, %v2674, %v2676
        %v2678 = vrot.slane %v2651, 2
        %v2679 = vsel %vm2221, %v2676, %v2678
        %v2680 = vrot.slane %v2652, 2
        %v2681 = vsel %vm2221, %v2678, %v2680
        %v2682 = vrot.slane %v2653, 2
        %v2683 = vsel %vm2221, %v2680, %v2682
        %v2684 = vrot.slane %v2654, 2
        %v2685 = vsel %vm2221, %v2682, %v2684
        %v2686 = vrot.slane %v2655, 2
        %v2687 = vsel %vm2221, %v2684, %v2686
        %v2688 = vrot.slane %v2656, 2
        %v2689 = vsel %vm2221, %v2686, %v2688
        %v2690 = vrot.slane %v2657, 2
        %v2691 = vsel %vm2221, %v2688, %v2690
        %v2692 = vrot.slane %v2658, 2
        %v2693 = vsel %vm2221, %v2690, %v2692
        %v2694 = vrot.slane %v2659, 2
        %v2695 = vsel %vm2221, %v2692, %v2694
        %v2696 = vrot.slane %v2660, 2
        %v2697 = vsel %vm2221, %v2694, %v2696
        %v2699 = vsel %vm563, %v2663, 0
        %v2702 = vsel %vm563, %v2665, 0
        %v2705 = vsel %vm563, %v2667, 0
        %v2708 = vsel %vm563, %v2669, 0
        %v2711 = vsel %vm563, %v2671, 0
        %v2714 = vsel %vm563, %v2673, 0
        %v2717 = vsel %vm563, %v2675, 0
        %v2720 = vsel %vm563, %v2677, 0
        %v2723 = vsel %vm563, %v2679, 0
        %v2726 = vsel %vm563, %v2681, 0
        %v2729 = vsel %vm563, %v2683, 0
        %v2732 = vsel %vm563, %v2685, 0
        %v2735 = vsel %vm563, %v2687, 0
        %v2738 = vsel %vm563, %v2689, 0
        %v2741 = vsel %vm563, %v2691, 0
        %v2744 = vsel %vm563, %v2693, 0
        %v2747 = vsel %vm563, %v2695, 0
        %v2750 = vsel %vm563, %v2697, 0
        %v2753 = vsel %vm618, %v2567, 0
        %2755 = vmatprep.subr.bf16.mxu0 0
        %2756 = vmatpush1.bf16.msra.mxu0 %v2753
        %2757 = vmatprep.subr.bf16.mxu0 0
        %2758 = vmatpush1.bf16.msra.mxu0 0
        %2759 = vmatprep.subr.bf16.mxu0 0
        %2760 = vmatpush1.bf16.msra.mxu0 0
        %2761 = vmatprep.subr.bf16.mxu0 0
        %2762 = vmatpush1.bf16.msra.mxu0 0
        %2763 = vmatprep.subr.bf16.mxu0 0
        %2764 = vmatpush1.bf16.msra.mxu0 0
        %2765 = vmatprep.subr.bf16.mxu0 0
        %2766 = vmatpush1.bf16.msra.mxu0 0
        %2767 = vmatprep.subr.bf16.mxu0 0
        %2768 = vmatpush1.bf16.msra.mxu0 0
        %2769 = vmatprep.subr.bf16.mxu0 0
        %2770 = vmatpush1.bf16.msra.mxu0 0
        %2771 = vmatprep.subr.bf16.mxu0 0
        %2772 = vmatpush1.bf16.msra.mxu0 0
        %2773 = vmatprep.subr.bf16.mxu0 0
        %2774 = vmatpush1.bf16.msra.mxu0 0
        %2775 = vmatprep.subr.bf16.mxu0 0
        %2776 = vmatpush1.bf16.msra.mxu0 0
        %2777 = vmatprep.subr.bf16.mxu0 0
        %2778 = vmatpush1.bf16.msra.mxu0 0
        %2779 = vmatprep.subr.bf16.mxu0 0
        %2780 = vmatpush1.bf16.msra.mxu0 0
        %2781 = vmatprep.subr.bf16.mxu0 0
        %2782 = vmatpush1.bf16.msra.mxu0 0
        %2783 = vmatprep.subr.bf16.mxu0 0
        %2784 = vmatpush1.bf16.msra.mxu0 0
        %2785 = vmatprep.subr.bf16.mxu0 0
        %2786 = vmatpush1.bf16.msra.mxu0 0
        %2787 = vmatprep.mubr.bf16.mxu0 0
        %2788 = vmatmul.mubr.bf16.gmra.mrb[0].mxu0 %v2699
        %v2789 = vpop.f32.mrb[0].mxu0
        %v2790 = vadd.f32 0.0, %v2789
        %v2791 = vpop.f32.mrb[0].mxu0
        %v2792 = vpop.f32.mrb[0].mxu0
        %v2793 = vadd.f32 0.0, %v2792
        %v2794 = vpop.f32.mrb[0].mxu0
        %2795 = vmatprep.mubr.bf16.mxu0 0
        %2796 = vmatmul.mubr.bf16.gmra.mrb[0].mxu0 %v2702
        %v2797 = vpop.f32.mrb[0].mxu0
        %v2798 = vadd.f32 0.0, %v2797
        %v2799 = vpop.f32.mrb[0].mxu0
        %v2800 = vpop.f32.mrb[0].mxu0
        %v2801 = vadd.f32 0.0, %v2800
        %v2802 = vpop.f32.mrb[0].mxu0
        %2803 = vmatprep.mubr.bf16.mxu0 0
        %2804 = vmatmul.mubr.bf16.gmra.mrb[0].mxu0 %v2705
        %v2805 = vpop.f32.mrb[0].mxu0
        %v2806 = vadd.f32 0.0, %v2805
        %v2807 = vpop.f32.mrb[0].mxu0
        %v2808 = vpop.f32.mrb[0].mxu0
        %v2809 = vadd.f32 0.0, %v2808
        %v2810 = vpop.f32.mrb[0].mxu0
        %2811 = vmatprep.mubr.bf16.mxu0 0
        %2812 = vmatmul.mubr.bf16.gmra.mrb[0].mxu0 %v2708
        %v2813 = vpop.f32.mrb[0].mxu0
        %v2814 = vadd.f32 0.0, %v2813
        %v2815 = vpop.f32.mrb[0].mxu0
        %v2816 = vpop.f32.mrb[0].mxu0
        %v2817 = vadd.f32 0.0, %v2816
        %v2818 = vpop.f32.mrb[0].mxu0
        %2819 = vmatprep.mubr.bf16.mxu0 0
        %2820 = vmatmul.mubr.bf16.gmra.mrb[0].mxu0 %v2711
        %v2821 = vpop.f32.mrb[0].mxu0
        %v2822 = vadd.f32 0.0, %v2821
        %v2823 = vpop.f32.mrb[0].mxu0
        %v2824 = vpop.f32.mrb[0].mxu0
        %v2825 = vadd.f32 0.0, %v2824
        %v2826 = vpop.f32.mrb[0].mxu0
        %2827 = vmatprep.mubr.bf16.mxu0 0
        %2828 = vmatmul.mubr.bf16.gmra.mrb[0].mxu0 %v2714
        %v2829 = vpop.f32.mrb[0].mxu0
        %v2830 = vadd.f32 0.0, %v2829
        %v2831 = vpop.f32.mrb[0].mxu0
        %v2832 = vpop.f32.mrb[0].mxu0
        %v2833 = vadd.f32 0.0, %v2832
        %v2834 = vpop.f32.mrb[0].mxu0
        %2835 = vmatprep.mubr.bf16.mxu0 0
        %2836 = vmatmul.mubr.bf16.gmra.mrb[0].mxu0 %v2717
        %v2837 = vpop.f32.mrb[0].mxu0
        %v2838 = vadd.f32 0.0, %v2837
        %v2839 = vpop.f32.mrb[0].mxu0
        %v2840 = vpop.f32.mrb[0].mxu0
        %v2841 = vadd.f32 0.0, %v2840
        %v2842 = vpop.f32.mrb[0].mxu0
        %2843 = vmatprep.mubr.bf16.mxu0 0
        %2844 = vmatmul.mubr.bf16.gmra.mrb[0].mxu0 %v2720
        %v2845 = vpop.f32.mrb[0].mxu0
        %v2846 = vadd.f32 0.0, %v2845
        %v2847 = vpop.f32.mrb[0].mxu0
        %v2848 = vpop.f32.mrb[0].mxu0
        %v2849 = vadd.f32 0.0, %v2848
        %v2850 = vpop.f32.mrb[0].mxu0
        %2851 = vmatprep.mubr.bf16.mxu0 0
        %2852 = vmatmul.mubr.bf16.gmra.mrb[0].mxu0 %v2723
        %v2853 = vpop.f32.mrb[0].mxu0
        %v2854 = vadd.f32 0.0, %v2853
        %v2855 = vpop.f32.mrb[0].mxu0
        %v2856 = vpop.f32.mrb[0].mxu0
        %v2857 = vadd.f32 0.0, %v2856
        %v2858 = vpop.f32.mrb[0].mxu0
        %2859 = vmatprep.mubr.bf16.mxu0 0
        %2860 = vmatmul.mubr.bf16.gmra.mrb[0].mxu0 %v2726
        %v2861 = vpop.f32.mrb[0].mxu0
        %v2862 = vadd.f32 0.0, %v2861
        %v2863 = vpop.f32.mrb[0].mxu0
        %v2864 = vpop.f32.mrb[0].mxu0
        %v2865 = vadd.f32 0.0, %v2864
        %v2866 = vpop.f32.mrb[0].mxu0
        %2867 = vmatprep.mubr.bf16.mxu0 0
        %2868 = vmatmul.mubr.bf16.gmra.mrb[0].mxu0 %v2729
        %v2869 = vpop.f32.mrb[0].mxu0
        %v2870 = vadd.f32 0.0, %v2869
        %v2871 = vpop.f32.mrb[0].mxu0
        %v2872 = vpop.f32.mrb[0].mxu0
        %v2873 = vadd.f32 0.0, %v2872
        %v2874 = vpop.f32.mrb[0].mxu0
        %2875 = vmatprep.mubr.bf16.mxu0 0
        %2876 = vmatmul.mubr.bf16.gmra.mrb[0].mxu0 %v2732
        %v2877 = vpop.f32.mrb[0].mxu0
        %v2878 = vadd.f32 0.0, %v2877
        %v2879 = vpop.f32.mrb[0].mxu0
        %v2880 = vpop.f32.mrb[0].mxu0
        %v2881 = vadd.f32 0.0, %v2880
        %v2882 = vpop.f32.mrb[0].mxu0
        %2883 = vmatprep.mubr.bf16.mxu0 0
        %2884 = vmatmul.mubr.bf16.gmra.mrb[0].mxu0 %v2735
        %v2885 = vpop.f32.mrb[0].mxu0
        %v2886 = vadd.f32 0.0, %v2885
        %v2887 = vpop.f32.mrb[0].mxu0
        %v2888 = vpop.f32.mrb[0].mxu0
        %v2889 = vadd.f32 0.0, %v2888
        %v2890 = vpop.f32.mrb[0].mxu0
        %2891 = vmatprep.mubr.bf16.mxu0 0
        %2892 = vmatmul.mubr.bf16.gmra.mrb[0].mxu0 %v2738
        %v2893 = vpop.f32.mrb[0].mxu0
        %v2894 = vadd.f32 0.0, %v2893
        %v2895 = vpop.f32.mrb[0].mxu0
        %v2896 = vpop.f32.mrb[0].mxu0
        %v2897 = vadd.f32 0.0, %v2896
        %v2898 = vpop.f32.mrb[0].mxu0
        %2899 = vmatprep.mubr.bf16.mxu0 0
        %2900 = vmatmul.mubr.bf16.gmra.mrb[0].mxu0 %v2741
        %v2901 = vpop.f32.mrb[0].mxu0
        %v2902 = vadd.f32 0.0, %v2901
        %v2903 = vpop.f32.mrb[0].mxu0
        %v2904 = vpop.f32.mrb[0].mxu0
        %v2905 = vadd.f32 0.0, %v2904
        %v2906 = vpop.f32.mrb[0].mxu0
        %2907 = vmatprep.mubr.bf16.mxu0 0
        %2908 = vmatmul.mubr.bf16.gmra.mrb[0].mxu0 %v2744
        %v2909 = vpop.f32.mrb[0].mxu0
        %v2910 = vadd.f32 0.0, %v2909
        %v2911 = vpop.f32.mrb[0].mxu0
        %v2912 = vpop.f32.mrb[0].mxu0
        %v2913 = vadd.f32 0.0, %v2912
        %v2914 = vpop.f32.mrb[0].mxu0
        %2915 = vmatprep.mubr.bf16.mxu0 0
        %2916 = vmatmul.mubr.bf16.gmra.mrb[0].mxu0 %v2747
        %v2917 = vpop.f32.mrb[0].mxu0
        %v2918 = vadd.f32 0.0, %v2917
        %v2919 = vpop.f32.mrb[0].mxu0
        %v2920 = vpop.f32.mrb[0].mxu0
        %v2921 = vadd.f32 0.0, %v2920
        %v2922 = vpop.f32.mrb[0].mxu0
        %2923 = vmatprep.mubr.bf16.mxu0 0
        %2924 = vmatmul.mubr.bf16.gmra.mrb[0].mxu0 %v2750
        %v2925 = vpop.f32.mrb[0].mxu0
        %v2926 = vadd.f32 0.0, %v2925
        %v2927 = vpop.f32.mrb[0].mxu0
        %v2928 = vpop.f32.mrb[0].mxu0
        %v2929 = vadd.f32 0.0, %v2928
        %v2930 = vpop.f32.mrb[0].mxu0
        %2931 = vdwg.mxu0
        %v2932 = vadd.f32 %v2493, %v2790
        %v2933 = vadd.f32 %v2494, %v2793
        %v2934 = vadd.f32 %v2495, %v2798
        %v2935 = vadd.f32 %v2496, %v2801
        %v2936 = vadd.f32 %v2497, %v2806
        %v2937 = vadd.f32 %v2498, %v2809
        %v2938 = vadd.f32 %v2499, %v2814
        %v2939 = vadd.f32 %v2500, %v2817
        %v2940 = vadd.f32 %v2501, %v2822
        %v2941 = vadd.f32 %v2502, %v2825
        %v2942 = vadd.f32 %v2503, %v2830
        %v2943 = vadd.f32 %v2504, %v2833
        %v2944 = vadd.f32 %v2505, %v2838
        %v2945 = vadd.f32 %v2506, %v2841
        %v2946 = vadd.f32 %v2507, %v2846
        %v2947 = vadd.f32 %v2508, %v2849
        %v2948 = vadd.f32 %v2509, %v2854
        %v2949 = vadd.f32 %v2510, %v2857
        %v2950 = vadd.f32 %v2511, %v2862
        %v2951 = vadd.f32 %v2512, %v2865
        %v2952 = vadd.f32 %v2513, %v2870
        %v2953 = vadd.f32 %v2514, %v2873
        %v2954 = vadd.f32 %v2515, %v2878
        %v2955 = vadd.f32 %v2516, %v2881
        %v2956 = vadd.f32 %v2517, %v2886
        %v2957 = vadd.f32 %v2518, %v2889
        %v2958 = vadd.f32 %v2519, %v2894
        %v2959 = vadd.f32 %v2520, %v2897
        %v2960 = vadd.f32 %v2521, %v2902
        %v2961 = vadd.f32 %v2522, %v2905
        %v2962 = vadd.f32 %v2523, %v2910
        %v2963 = vadd.f32 %v2524, %v2913
        %v2964 = vadd.f32 %v2525, %v2918
        %v2965 = vadd.f32 %v2526, %v2921
        %v2966 = vadd.f32 %v2527, %v2926
        %v2967 = vadd.f32 %v2528, %v2929
        %v2968 = vld [vmem:[%s238 + $0xa0] sm:$0x7]
        %s2969 = scalar_lea.vmem %s1, 14
        %v2970 = vld [vmem:[%s2969] sm:$0x3]
        %v2972 = vunpack.c.l.b16 %v2968
        %v2973 = vpack.c.b16 %v2972, %v2972
        %vm2974 = vsmask.f32 5376
        %v2976 = vshrl.u32 %v2642, 16
        %v2978 = vrot.slane %v2976, 2
        %v2979 = vshll.u32 %v2642, 16
        %v2981 = vrot.slane %v2979, 3
        %v2982 = vor.u32 %v2978, %v2981
        %v2984 = vshrl.u32 %v2643, 16
        %v2986 = vrot.slane %v2984, 2
        %v2987 = vshll.u32 %v2643, 16
        %v2989 = vrot.slane %v2987, 3
        %v2990 = vor.u32 %v2986, %v2989
        %v2991 = vsel %vm2974, %v2982, %v2990
        %v2993 = vshrl.u32 %v2644, 16
        %v2995 = vrot.slane %v2993, 2
        %v2996 = vshll.u32 %v2644, 16
        %v2998 = vrot.slane %v2996, 3
        %v2999 = vor.u32 %v2995, %v2998
        %v3000 = vsel %vm2974, %v2990, %v2999
        %v3002 = vshrl.u32 %v2645, 16
        %v3004 = vrot.slane %v3002, 2
        %v3005 = vshll.u32 %v2645, 16
        %v3007 = vrot.slane %v3005, 3
        %v3008 = vor.u32 %v3004, %v3007
        %v3009 = vsel %vm2974, %v2999, %v3008
        %v3011 = vshrl.u32 %v2646, 16
        %v3013 = vrot.slane %v3011, 2
        %v3014 = vshll.u32 %v2646, 16
        %v3016 = vrot.slane %v3014, 3
        %v3017 = vor.u32 %v3013, %v3016
        %v3018 = vsel %vm2974, %v3008, %v3017
        %v3020 = vshrl.u32 %v2647, 16
        %v3022 = vrot.slane %v3020, 2
        %v3023 = vshll.u32 %v2647, 16
        %v3025 = vrot.slane %v3023, 3
        %v3026 = vor.u32 %v3022, %v3025
        %v3027 = vsel %vm2974, %v3017, %v3026
        %v3029 = vshrl.u32 %v2648, 16
        %v3031 = vrot.slane %v3029, 2
        %v3032 = vshll.u32 %v2648, 16
        %v3034 = vrot.slane %v3032, 3
        %v3035 = vor.u32 %v3031, %v3034
        %v3036 = vsel %vm2974, %v3026, %v3035
        %v3038 = vshrl.u32 %v2649, 16
        %v3040 = vrot.slane %v3038, 2
        %v3041 = vshll.u32 %v2649, 16
        %v3043 = vrot.slane %v3041, 3
        %v3044 = vor.u32 %v3040, %v3043
        %v3045 = vsel %vm2974, %v3035, %v3044
        %v3047 = vshrl.u32 %v2650, 16
        %v3049 = vrot.slane %v3047, 2
        %v3050 = vshll.u32 %v2650, 16
        %v3052 = vrot.slane %v3050, 3
        %v3053 = vor.u32 %v3049, %v3052
        %v3054 = vsel %vm2974, %v3044, %v3053
        %v3056 = vshrl.u32 %v2651, 16
        %v3058 = vrot.slane %v3056, 2
        %v3059 = vshll.u32 %v2651, 16
        %v3061 = vrot.slane %v3059, 3
        %v3062 = vor.u32 %v3058, %v3061
        %v3063 = vsel %vm2974, %v3053, %v3062
        %v3065 = vshrl.u32 %v2652, 16
        %v3067 = vrot.slane %v3065, 2
        %v3068 = vshll.u32 %v2652, 16
        %v3070 = vrot.slane %v3068, 3
        %v3071 = vor.u32 %v3067, %v3070
        %v3072 = vsel %vm2974, %v3062, %v3071
        %v3074 = vshrl.u32 %v2653, 16
        %v3076 = vrot.slane %v3074, 2
        %v3077 = vshll.u32 %v2653, 16
        %v3079 = vrot.slane %v3077, 3
        %v3080 = vor.u32 %v3076, %v3079
        %v3081 = vsel %vm2974, %v3071, %v3080
        %v3083 = vshrl.u32 %v2654, 16
        %v3085 = vrot.slane %v3083, 2
        %v3086 = vshll.u32 %v2654, 16
        %v3088 = vrot.slane %v3086, 3
        %v3089 = vor.u32 %v3085, %v3088
        %v3090 = vsel %vm2974, %v3080, %v3089
        %v3092 = vshrl.u32 %v2655, 16
        %v3094 = vrot.slane %v3092, 2
        %v3095 = vshll.u32 %v2655, 16
        %v3097 = vrot.slane %v3095, 3
        %v3098 = vor.u32 %v3094, %v3097
        %v3099 = vsel %vm2974, %v3089, %v3098
        %v3101 = vshrl.u32 %v2656, 16
        %v3103 = vrot.slane %v3101, 2
        %v3104 = vshll.u32 %v2656, 16
        %v3106 = vrot.slane %v3104, 3
        %v3107 = vor.u32 %v3103, %v3106
        %v3108 = vsel %vm2974, %v3098, %v3107
        %v3110 = vshrl.u32 %v2657, 16
        %v3112 = vrot.slane %v3110, 2
        %v3113 = vshll.u32 %v2657, 16
        %v3115 = vrot.slane %v3113, 3
        %v3116 = vor.u32 %v3112, %v3115
        %v3117 = vsel %vm2974, %v3107, %v3116
        %v3119 = vshrl.u32 %v2658, 16
        %v3121 = vrot.slane %v3119, 2
        %v3122 = vshll.u32 %v2658, 16
        %v3124 = vrot.slane %v3122, 3
        %v3125 = vor.u32 %v3121, %v3124
        %v3126 = vsel %vm2974, %v3116, %v3125
        %v3128 = vshrl.u32 %v2659, 16
        %v3130 = vrot.slane %v3128, 2
        %v3131 = vshll.u32 %v2659, 16
        %v3133 = vrot.slane %v3131, 3
        %v3134 = vor.u32 %v3130, %v3133
        %v3135 = vsel %vm2974, %v3125, %v3134
        %v3137 = vshrl.u32 %v2973, 16
        %v3139 = vrot.slane %v3137, 2
        %v3140 = vshll.u32 %v2973, 16
        %v3142 = vrot.slane %v3140, 3
        %v3143 = vor.u32 %v3139, %v3142
        %v3144 = vsel %vm2974, %v3134, %v3143
        %v3146 = vsel %vm563, %v2991, 0
        %v3149 = vsel %vm563, %v3000, 0
        %v3152 = vsel %vm563, %v3009, 0
        %v3155 = vsel %vm563, %v3018, 0
        %v3158 = vsel %vm563, %v3027, 0
        %v3161 = vsel %vm563, %v3036, 0
        %v3164 = vsel %vm563, %v3045, 0
        %v3167 = vsel %vm563, %v3054, 0
        %v3170 = vsel %vm563, %v3063, 0
        %v3173 = vsel %vm563, %v3072, 0
        %v3176 = vsel %vm563, %v3081, 0
        %v3179 = vsel %vm563, %v3090, 0
        %v3182 = vsel %vm563, %v3099, 0
        %v3185 = vsel %vm563, %v3108, 0
        %v3188 = vsel %vm563, %v3117, 0
        %v3191 = vsel %vm563, %v3126, 0
        %v3194 = vsel %vm563, %v3135, 0
        %v3197 = vsel %vm563, %v3144, 0
        %v3200 = vsel %vm618, %v2970, 0
        %3202 = vmatprep.subr.bf16.mxu0 0
        %3203 = vmatpush1.bf16.msra.mxu0 %v3200
        %3204 = vmatprep.subr.bf16.mxu0 0
        %3205 = vmatpush1.bf16.msra.mxu0 0
        %3206 = vmatprep.subr.bf16.mxu0 0
        %3207 = vmatpush1.bf16.msra.mxu0 0
        %3208 = vmatprep.subr.bf16.mxu0 0
        %3209 = vmatpush1.bf16.msra.mxu0 0
        %3210 = vmatprep.subr.bf16.mxu0 0
        %3211 = vmatpush1.bf16.msra.mxu0 0
        %3212 = vmatprep.subr.bf16.mxu0 0
        %3213 = vmatpush1.bf16.msra.mxu0 0
        %3214 = vmatprep.subr.bf16.mxu0 0
        %3215 = vmatpush1.bf16.msra.mxu0 0
        %3216 = vmatprep.subr.bf16.mxu0 0
        %3217 = vmatpush1.bf16.msra.mxu0 0
        %3218 = vmatprep.subr.bf16.mxu0 0
        %3219 = vmatpush1.bf16.msra.mxu0 0
        %3220 = vmatprep.subr.bf16.mxu0 0
        %3221 = vmatpush1.bf16.msra.mxu0 0
        %3222 = vmatprep.subr.bf16.mxu0 0
        %3223 = vmatpush1.bf16.msra.mxu0 0
        %3224 = vmatprep.subr.bf16.mxu0 0
        %3225 = vmatpush1.bf16.msra.mxu0 0
        %3226 = vmatprep.subr.bf16.mxu0 0
        %3227 = vmatpush1.bf16.msra.mxu0 0
        %3228 = vmatprep.subr.bf16.mxu0 0
        %3229 = vmatpush1.bf16.msra.mxu0 0
        %3230 = vmatprep.subr.bf16.mxu0 0
        %3231 = vmatpush1.bf16.msra.mxu0 0
        %3232 = vmatprep.subr.bf16.mxu0 0
        %3233 = vmatpush1.bf16.msra.mxu0 0
        %3234 = vmatprep.mubr.bf16.mxu0 0
        %3235 = vmatmul.mubr.bf16.gmra.mrb[0].mxu0 %v3146
        %v3236 = vpop.f32.mrb[0].mxu0
        %v3237 = vadd.f32 0.0, %v3236
        %v3238 = vpop.f32.mrb[0].mxu0
        %v3239 = vpop.f32.mrb[0].mxu0
        %v3240 = vadd.f32 0.0, %v3239
        %v3241 = vpop.f32.mrb[0].mxu0
        %3242 = vmatprep.mubr.bf16.mxu0 0
        %3243 = vmatmul.mubr.bf16.gmra.mrb[0].mxu0 %v3149
        %v3244 = vpop.f32.mrb[0].mxu0
        %v3245 = vadd.f32 0.0, %v3244
        %v3246 = vpop.f32.mrb[0].mxu0
        %v3247 = vpop.f32.mrb[0].mxu0
        %v3248 = vadd.f32 0.0, %v3247
        %v3249 = vpop.f32.mrb[0].mxu0
        %3250 = vmatprep.mubr.bf16.mxu0 0
        %3251 = vmatmul.mubr.bf16.gmra.mrb[0].mxu0 %v3152
        %v3252 = vpop.f32.mrb[0].mxu0
        %v3253 = vadd.f32 0.0, %v3252
        %v3254 = vpop.f32.mrb[0].mxu0
        %v3255 = vpop.f32.mrb[0].mxu0
        %v3256 = vadd.f32 0.0, %v3255
        %v3257 = vpop.f32.mrb[0].mxu0
        %3258 = vmatprep.mubr.bf16.mxu0 0
        %3259 = vmatmul.mubr.bf16.gmra.mrb[0].mxu0 %v3155
        %v3260 = vpop.f32.mrb[0].mxu0
        %v3261 = vadd.f32 0.0, %v3260
        %v3262 = vpop.f32.mrb[0].mxu0
        %v3263 = vpop.f32.mrb[0].mxu0
        %v3264 = vadd.f32 0.0, %v3263
        %v3265 = vpop.f32.mrb[0].mxu0
        %3266 = vmatprep.mubr.bf16.mxu0 0
        %3267 = vmatmul.mubr.bf16.gmra.mrb[0].mxu0 %v3158
        %v3268 = vpop.f32.mrb[0].mxu0
        %v3269 = vadd.f32 0.0, %v3268
        %v3270 = vpop.f32.mrb[0].mxu0
        %v3271 = vpop.f32.mrb[0].mxu0
        %v3272 = vadd.f32 0.0, %v3271
        %v3273 = vpop.f32.mrb[0].mxu0
        %3274 = vmatprep.mubr.bf16.mxu0 0
        %3275 = vmatmul.mubr.bf16.gmra.mrb[0].mxu0 %v3161
        %v3276 = vpop.f32.mrb[0].mxu0
        %v3277 = vadd.f32 0.0, %v3276
        %v3278 = vpop.f32.mrb[0].mxu0
        %v3279 = vpop.f32.mrb[0].mxu0
        %v3280 = vadd.f32 0.0, %v3279
        %v3281 = vpop.f32.mrb[0].mxu0
        %3282 = vmatprep.mubr.bf16.mxu0 0
        %3283 = vmatmul.mubr.bf16.gmra.mrb[0].mxu0 %v3164
        %v3284 = vpop.f32.mrb[0].mxu0
        %v3285 = vadd.f32 0.0, %v3284
        %v3286 = vpop.f32.mrb[0].mxu0
        %v3287 = vpop.f32.mrb[0].mxu0
        %v3288 = vadd.f32 0.0, %v3287
        %v3289 = vpop.f32.mrb[0].mxu0
        %3290 = vmatprep.mubr.bf16.mxu0 0
        %3291 = vmatmul.mubr.bf16.gmra.mrb[0].mxu0 %v3167
        %v3292 = vpop.f32.mrb[0].mxu0
        %v3293 = vadd.f32 0.0, %v3292
        %v3294 = vpop.f32.mrb[0].mxu0
        %v3295 = vpop.f32.mrb[0].mxu0
        %v3296 = vadd.f32 0.0, %v3295
        %v3297 = vpop.f32.mrb[0].mxu0
        %3298 = vmatprep.mubr.bf16.mxu0 0
        %3299 = vmatmul.mubr.bf16.gmra.mrb[0].mxu0 %v3170
        %v3300 = vpop.f32.mrb[0].mxu0
        %v3301 = vadd.f32 0.0, %v3300
        %v3302 = vpop.f32.mrb[0].mxu0
        %v3303 = vpop.f32.mrb[0].mxu0
        %v3304 = vadd.f32 0.0, %v3303
        %v3305 = vpop.f32.mrb[0].mxu0
        %3306 = vmatprep.mubr.bf16.mxu0 0
        %3307 = vmatmul.mubr.bf16.gmra.mrb[0].mxu0 %v3173
        %v3308 = vpop.f32.mrb[0].mxu0
        %v3309 = vadd.f32 0.0, %v3308
        %v3310 = vpop.f32.mrb[0].mxu0
        %v3311 = vpop.f32.mrb[0].mxu0
        %v3312 = vadd.f32 0.0, %v3311
        %v3313 = vpop.f32.mrb[0].mxu0
        %3314 = vmatprep.mubr.bf16.mxu0 0
        %3315 = vmatmul.mubr.bf16.gmra.mrb[0].mxu0 %v3176
        %v3316 = vpop.f32.mrb[0].mxu0
        %v3317 = vadd.f32 0.0, %v3316
        %v3318 = vpop.f32.mrb[0].mxu0
        %v3319 = vpop.f32.mrb[0].mxu0
        %v3320 = vadd.f32 0.0, %v3319
        %v3321 = vpop.f32.mrb[0].mxu0
        %3322 = vmatprep.mubr.bf16.mxu0 0
        %3323 = vmatmul.mubr.bf16.gmra.mrb[0].mxu0 %v3179
        %v3324 = vpop.f32.mrb[0].mxu0
        %v3325 = vadd.f32 0.0, %v3324
        %v3326 = vpop.f32.mrb[0].mxu0
        %v3327 = vpop.f32.mrb[0].mxu0
        %v3328 = vadd.f32 0.0, %v3327
        %v3329 = vpop.f32.mrb[0].mxu0
        %3330 = vmatprep.mubr.bf16.mxu0 0
        %3331 = vmatmul.mubr.bf16.gmra.mrb[0].mxu0 %v3182
        %v3332 = vpop.f32.mrb[0].mxu0
        %v3333 = vadd.f32 0.0, %v3332
        %v3334 = vpop.f32.mrb[0].mxu0
        %v3335 = vpop.f32.mrb[0].mxu0
        %v3336 = vadd.f32 0.0, %v3335
        %v3337 = vpop.f32.mrb[0].mxu0
        %3338 = vmatprep.mubr.bf16.mxu0 0
        %3339 = vmatmul.mubr.bf16.gmra.mrb[0].mxu0 %v3185
        %v3340 = vpop.f32.mrb[0].mxu0
        %v3341 = vadd.f32 0.0, %v3340
        %v3342 = vpop.f32.mrb[0].mxu0
        %v3343 = vpop.f32.mrb[0].mxu0
        %v3344 = vadd.f32 0.0, %v3343
        %v3345 = vpop.f32.mrb[0].mxu0
        %3346 = vmatprep.mubr.bf16.mxu0 0
        %3347 = vmatmul.mubr.bf16.gmra.mrb[0].mxu0 %v3188
        %v3348 = vpop.f32.mrb[0].mxu0
        %v3349 = vadd.f32 0.0, %v3348
        %v3350 = vpop.f32.mrb[0].mxu0
        %v3351 = vpop.f32.mrb[0].mxu0
        %v3352 = vadd.f32 0.0, %v3351
        %v3353 = vpop.f32.mrb[0].mxu0
        %3354 = vmatprep.mubr.bf16.mxu0 0
        %3355 = vmatmul.mubr.bf16.gmra.mrb[0].mxu0 %v3191
        %v3356 = vpop.f32.mrb[0].mxu0
        %v3357 = vadd.f32 0.0, %v3356
        %v3358 = vpop.f32.mrb[0].mxu0
        %v3359 = vpop.f32.mrb[0].mxu0
        %v3360 = vadd.f32 0.0, %v3359
        %v3361 = vpop.f32.mrb[0].mxu0
        %3362 = vmatprep.mubr.bf16.mxu0 0
        %3363 = vmatmul.mubr.bf16.gmra.mrb[0].mxu0 %v3194
        %v3364 = vpop.f32.mrb[0].mxu0
        %v3365 = vadd.f32 0.0, %v3364
        %v3366 = vpop.f32.mrb[0].mxu0
        %v3367 = vpop.f32.mrb[0].mxu0
        %v3368 = vadd.f32 0.0, %v3367
        %v3369 = vpop.f32.mrb[0].mxu0
        %3370 = vmatprep.mubr.bf16.mxu0 0
        %3371 = vmatmul.mubr.bf16.gmra.mrb[0].mxu0 %v3197
        %v3372 = vpop.f32.mrb[0].mxu0
        %v3373 = vadd.f32 0.0, %v3372
        %v3374 = vpop.f32.mrb[0].mxu0
        %v3375 = vpop.f32.mrb[0].mxu0
        %v3376 = vadd.f32 0.0, %v3375
        %v3377 = vpop.f32.mrb[0].mxu0
        %3378 = vdwg.mxu0
        %v3379 = vadd.f32 %v2932, %v3237
        %v3380 = vadd.f32 %v2933, %v3240
        %v3381 = vadd.f32 %v2934, %v3245
        %v3382 = vadd.f32 %v2935, %v3248
        %v3383 = vadd.f32 %v2936, %v3253
        %v3384 = vadd.f32 %v2937, %v3256
        %v3385 = vadd.f32 %v2938, %v3261
        %v3386 = vadd.f32 %v2939, %v3264
        %v3387 = vadd.f32 %v2940, %v3269
        %v3388 = vadd.f32 %v2941, %v3272
        %v3389 = vadd.f32 %v2942, %v3277
        %v3390 = vadd.f32 %v2943, %v3280
        %v3391 = vadd.f32 %v2944, %v3285
        %v3392 = vadd.f32 %v2945, %v3288
        %v3393 = vadd.f32 %v2946, %v3293
        %v3394 = vadd.f32 %v2947, %v3296
        %v3395 = vadd.f32 %v2948, %v3301
        %v3396 = vadd.f32 %v2949, %v3304
        %v3397 = vadd.f32 %v2950, %v3309
        %v3398 = vadd.f32 %v2951, %v3312
        %v3399 = vadd.f32 %v2952, %v3317
        %v3400 = vadd.f32 %v2953, %v3320
        %v3401 = vadd.f32 %v2954, %v3325
        %v3402 = vadd.f32 %v2955, %v3328
        %v3403 = vadd.f32 %v2956, %v3333
        %v3404 = vadd.f32 %v2957, %v3336
        %v3405 = vadd.f32 %v2958, %v3341
        %v3406 = vadd.f32 %v2959, %v3344
        %v3407 = vadd.f32 %v2960, %v3349
        %v3408 = vadd.f32 %v2961, %v3352
        %v3409 = vadd.f32 %v2962, %v3357
        %v3410 = vadd.f32 %v2963, %v3360
        %v3411 = vadd.f32 %v2964, %v3365
        %v3412 = vadd.f32 %v2965, %v3368
        %v3413 = vadd.f32 %v2966, %v3373
        %v3414 = vadd.f32 %v2967, %v3376
        %v3415 = vld [vmem:[%s238 + $0x10] sm:$0x8]
        %s3416 = scalar_lea.vmem %s1, 16
        %v3417 = vld [vmem:[%s3416] sm:$0x3]
        %v3419 = vunpack.c.l.b16 %v3415
        %v3420 = vpack.c.b16 %v2606, %v3419
        %vm3421 = vcmask 1044480
        %v3422 = vrot.slane %v3420, 3
        %v3423 = vrot.slane %v2643, 3
        %v3424 = vsel %vm3421, %v3422, %v3423
        %v3425 = vrot.slane %v2644, 3
        %v3426 = vsel %vm3421, %v3423, %v3425
        %v3427 = vrot.slane %v2645, 3
        %v3428 = vsel %vm3421, %v3425, %v3427
        %v3429 = vrot.slane %v2646, 3
        %v3430 = vsel %vm3421, %v3427, %v3429
        %v3431 = vrot.slane %v2647, 3
        %v3432 = vsel %vm3421, %v3429, %v3431
        %v3433 = vrot.slane %v2648, 3
        %v3434 = vsel %vm3421, %v3431, %v3433
        %v3435 = vrot.slane %v2649, 3
        %v3436 = vsel %vm3421, %v3433, %v3435
        %v3437 = vrot.slane %v2650, 3
        %v3438 = vsel %vm3421, %v3435, %v3437
        %v3439 = vrot.slane %v2651, 3
        %v3440 = vsel %vm3421, %v3437, %v3439
        %v3441 = vrot.slane %v2652, 3
        %v3442 = vsel %vm3421, %v3439, %v3441
        %v3443 = vrot.slane %v2653, 3
        %v3444 = vsel %vm3421, %v3441, %v3443
        %v3445 = vrot.slane %v2654, 3
        %v3446 = vsel %vm3421, %v3443, %v3445
        %v3447 = vrot.slane %v2655, 3
        %v3448 = vsel %vm3421, %v3445, %v3447
        %v3449 = vrot.slane %v2656, 3
        %v3450 = vsel %vm3421, %v3447, %v3449
        %v3451 = vrot.slane %v2657, 3
        %v3452 = vsel %vm3421, %v3449, %v3451
        %v3453 = vrot.slane %v2658, 3
        %v3454 = vsel %vm3421, %v3451, %v3453
        %v3455 = vrot.slane %v2659, 3
        %v3456 = vsel %vm3421, %v3453, %v3455
        %v3457 = vrot.slane %v2973, 3
        %v3458 = vsel %vm3421, %v3455, %v3457
        %v3460 = vsel %vm563, %v3424, 0
        %v3463 = vsel %vm563, %v3426, 0
        %v3466 = vsel %vm563, %v3428, 0
        %v3469 = vsel %vm563, %v3430, 0
        %v3472 = vsel %vm563, %v3432, 0
        %v3475 = vsel %vm563, %v3434, 0
        %v3478 = vsel %vm563, %v3436, 0
        %v3481 = vsel %vm563, %v3438, 0
        %v3484 = vsel %vm563, %v3440, 0
        %v3487 = vsel %vm563, %v3442, 0
        %v3490 = vsel %vm563, %v3444, 0
        %v3493 = vsel %vm563, %v3446, 0
        %v3496 = vsel %vm563, %v3448, 0
        %v3499 = vsel %vm563, %v3450, 0
        %v3502 = vsel %vm563, %v3452, 0
        %v3505 = vsel %vm563, %v3454, 0
        %v3508 = vsel %vm563, %v3456, 0
        %v3511 = vsel %vm563, %v3458, 0
        %v3514 = vsel %vm618, %v3417, 0
        %3516 = vmatprep.subr.bf16.mxu0 0
        %3517 = vmatpush1.bf16.msra.mxu0 %v3514
        %3518 = vmatprep.subr.bf16.mxu0 0
        %3519 = vmatpush1.bf16.msra.mxu0 0
        %3520 = vmatprep.subr.bf16.mxu0 0
        %3521 = vmatpush1.bf16.msra.mxu0 0
        %3522 = vmatprep.subr.bf16.mxu0 0
        %3523 = vmatpush1.bf16.msra.mxu0 0
        %3524 = vmatprep.subr.bf16.mxu0 0
        %3525 = vmatpush1.bf16.msra.mxu0 0
        %3526 = vmatprep.subr.bf16.mxu0 0
        %3527 = vmatpush1.bf16.msra.mxu0 0
        %3528 = vmatprep.subr.bf16.mxu0 0
        %3529 = vmatpush1.bf16.msra.mxu0 0
        %3530 = vmatprep.subr.bf16.mxu0 0
        %3531 = vmatpush1.bf16.msra.mxu0 0
        %3532 = vmatprep.subr.bf16.mxu0 0
        %3533 = vmatpush1.bf16.msra.mxu0 0
        %3534 = vmatprep.subr.bf16.mxu0 0
        %3535 = vmatpush1.bf16.msra.mxu0 0
        %3536 = vmatprep.subr.bf16.mxu0 0
        %3537 = vmatpush1.bf16.msra.mxu0 0
        %3538 = vmatprep.subr.bf16.mxu0 0
        %3539 = vmatpush1.bf16.msra.mxu0 0
        %3540 = vmatprep.subr.bf16.mxu0 0
        %3541 = vmatpush1.bf16.msra.mxu0 0
        %3542 = vmatprep.subr.bf16.mxu0 0
        %3543 = vmatpush1.bf16.msra.mxu0 0
        %3544 = vmatprep.subr.bf16.mxu0 0
        %3545 = vmatpush1.bf16.msra.mxu0 0
        %3546 = vmatprep.subr.bf16.mxu0 0
        %3547 = vmatpush1.bf16.msra.mxu0 0
        %3548 = vmatprep.mubr.bf16.mxu0 0
        %3549 = vmatmul.mubr.bf16.gmra.mrb[0].mxu0 %v3460
        %v3550 = vpop.f32.mrb[0].mxu0
        %v3551 = vadd.f32 0.0, %v3550
        %v3552 = vpop.f32.mrb[0].mxu0
        %v3553 = vpop.f32.mrb[0].mxu0
        %v3554 = vadd.f32 0.0, %v3553
        %v3555 = vpop.f32.mrb[0].mxu0
        %3556 = vmatprep.mubr.bf16.mxu0 0
        %3557 = vmatmul.mubr.bf16.gmra.mrb[0].mxu0 %v3463
        %v3558 = vpop.f32.mrb[0].mxu0
        %v3559 = vadd.f32 0.0, %v3558
        %v3560 = vpop.f32.mrb[0].mxu0
        %v3561 = vpop.f32.mrb[0].mxu0
        %v3562 = vadd.f32 0.0, %v3561
        %v3563 = vpop.f32.mrb[0].mxu0
        %3564 = vmatprep.mubr.bf16.mxu0 0
        %3565 = vmatmul.mubr.bf16.gmra.mrb[0].mxu0 %v3466
        %v3566 = vpop.f32.mrb[0].mxu0
        %v3567 = vadd.f32 0.0, %v3566
        %v3568 = vpop.f32.mrb[0].mxu0
        %v3569 = vpop.f32.mrb[0].mxu0
        %v3570 = vadd.f32 0.0, %v3569
        %v3571 = vpop.f32.mrb[0].mxu0
        %3572 = vmatprep.mubr.bf16.mxu0 0
        %3573 = vmatmul.mubr.bf16.gmra.mrb[0].mxu0 %v3469
        %v3574 = vpop.f32.mrb[0].mxu0
        %v3575 = vadd.f32 0.0, %v3574
        %v3576 = vpop.f32.mrb[0].mxu0
        %v3577 = vpop.f32.mrb[0].mxu0
        %v3578 = vadd.f32 0.0, %v3577
        %v3579 = vpop.f32.mrb[0].mxu0
        %3580 = vmatprep.mubr.bf16.mxu0 0
        %3581 = vmatmul.mubr.bf16.gmra.mrb[0].mxu0 %v3472
        %v3582 = vpop.f32.mrb[0].mxu0
        %v3583 = vadd.f32 0.0, %v3582
        %v3584 = vpop.f32.mrb[0].mxu0
        %v3585 = vpop.f32.mrb[0].mxu0
        %v3586 = vadd.f32 0.0, %v3585
        %v3587 = vpop.f32.mrb[0].mxu0
        %3588 = vmatprep.mubr.bf16.mxu0 0
        %3589 = vmatmul.mubr.bf16.gmra.mrb[0].mxu0 %v3475
        %v3590 = vpop.f32.mrb[0].mxu0
        %v3591 = vadd.f32 0.0, %v3590
        %v3592 = vpop.f32.mrb[0].mxu0
        %v3593 = vpop.f32.mrb[0].mxu0
        %v3594 = vadd.f32 0.0, %v3593
        %v3595 = vpop.f32.mrb[0].mxu0
        %3596 = vmatprep.mubr.bf16.mxu0 0
        %3597 = vmatmul.mubr.bf16.gmra.mrb[0].mxu0 %v3478
        %v3598 = vpop.f32.mrb[0].mxu0
        %v3599 = vadd.f32 0.0, %v3598
        %v3600 = vpop.f32.mrb[0].mxu0
        %v3601 = vpop.f32.mrb[0].mxu0
        %v3602 = vadd.f32 0.0, %v3601
        %v3603 = vpop.f32.mrb[0].mxu0
        %3604 = vmatprep.mubr.bf16.mxu0 0
        %3605 = vmatmul.mubr.bf16.gmra.mrb[0].mxu0 %v3481
        %v3606 = vpop.f32.mrb[0].mxu0
        %v3607 = vadd.f32 0.0, %v3606
        %v3608 = vpop.f32.mrb[0].mxu0
        %v3609 = vpop.f32.mrb[0].mxu0
        %v3610 = vadd.f32 0.0, %v3609
        %v3611 = vpop.f32.mrb[0].mxu0
        %3612 = vmatprep.mubr.bf16.mxu0 0
        %3613 = vmatmul.mubr.bf16.gmra.mrb[0].mxu0 %v3484
        %v3614 = vpop.f32.mrb[0].mxu0
        %v3615 = vadd.f32 0.0, %v3614
        %v3616 = vpop.f32.mrb[0].mxu0
        %v3617 = vpop.f32.mrb[0].mxu0
        %v3618 = vadd.f32 0.0, %v3617
        %v3619 = vpop.f32.mrb[0].mxu0
        %3620 = vmatprep.mubr.bf16.mxu0 0
        %3621 = vmatmul.mubr.bf16.gmra.mrb[0].mxu0 %v3487
        %v3622 = vpop.f32.mrb[0].mxu0
        %v3623 = vadd.f32 0.0, %v3622
        %v3624 = vpop.f32.mrb[0].mxu0
        %v3625 = vpop.f32.mrb[0].mxu0
        %v3626 = vadd.f32 0.0, %v3625
        %v3627 = vpop.f32.mrb[0].mxu0
        %3628 = vmatprep.mubr.bf16.mxu0 0
        %3629 = vmatmul.mubr.bf16.gmra.mrb[0].mxu0 %v3490
        %v3630 = vpop.f32.mrb[0].mxu0
        %v3631 = vadd.f32 0.0, %v3630
        %v3632 = vpop.f32.mrb[0].mxu0
        %v3633 = vpop.f32.mrb[0].mxu0
        %v3634 = vadd.f32 0.0, %v3633
        %v3635 = vpop.f32.mrb[0].mxu0
        %3636 = vmatprep.mubr.bf16.mxu0 0
        %3637 = vmatmul.mubr.bf16.gmra.mrb[0].mxu0 %v3493
        %v3638 = vpop.f32.mrb[0].mxu0
        %v3639 = vadd.f32 0.0, %v3638
        %v3640 = vpop.f32.mrb[0].mxu0
        %v3641 = vpop.f32.mrb[0].mxu0
        %v3642 = vadd.f32 0.0, %v3641
        %v3643 = vpop.f32.mrb[0].mxu0
        %3644 = vmatprep.mubr.bf16.mxu0 0
        %3645 = vmatmul.mubr.bf16.gmra.mrb[0].mxu0 %v3496
        %v3646 = vpop.f32.mrb[0].mxu0
        %v3647 = vadd.f32 0.0, %v3646
        %v3648 = vpop.f32.mrb[0].mxu0
        %v3649 = vpop.f32.mrb[0].mxu0
        %v3650 = vadd.f32 0.0, %v3649
        %v3651 = vpop.f32.mrb[0].mxu0
        %3652 = vmatprep.mubr.bf16.mxu0 0
        %3653 = vmatmul.mubr.bf16.gmra.mrb[0].mxu0 %v3499
        %v3654 = vpop.f32.mrb[0].mxu0
        %v3655 = vadd.f32 0.0, %v3654
        %v3656 = vpop.f32.mrb[0].mxu0
        %v3657 = vpop.f32.mrb[0].mxu0
        %v3658 = vadd.f32 0.0, %v3657
        %v3659 = vpop.f32.mrb[0].mxu0
        %3660 = vmatprep.mubr.bf16.mxu0 0
        %3661 = vmatmul.mubr.bf16.gmra.mrb[0].mxu0 %v3502
        %v3662 = vpop.f32.mrb[0].mxu0
        %v3663 = vadd.f32 0.0, %v3662
        %v3664 = vpop.f32.mrb[0].mxu0
        %v3665 = vpop.f32.mrb[0].mxu0
        %v3666 = vadd.f32 0.0, %v3665
        %v3667 = vpop.f32.mrb[0].mxu0
        %3668 = vmatprep.mubr.bf16.mxu0 0
        %3669 = vmatmul.mubr.bf16.gmra.mrb[0].mxu0 %v3505
        %v3670 = vpop.f32.mrb[0].mxu0
        %v3671 = vadd.f32 0.0, %v3670
        %v3672 = vpop.f32.mrb[0].mxu0
        %v3673 = vpop.f32.mrb[0].mxu0
        %v3674 = vadd.f32 0.0, %v3673
        %v3675 = vpop.f32.mrb[0].mxu0
        %3676 = vmatprep.mubr.bf16.mxu0 0
        %3677 = vmatmul.mubr.bf16.gmra.mrb[0].mxu0 %v3508
        %v3678 = vpop.f32.mrb[0].mxu0
        %v3679 = vadd.f32 0.0, %v3678
        %v3680 = vpop.f32.mrb[0].mxu0
        %v3681 = vpop.f32.mrb[0].mxu0
        %v3682 = vadd.f32 0.0, %v3681
        %v3683 = vpop.f32.mrb[0].mxu0
        %3684 = vmatprep.mubr.bf16.mxu0 0
        %3685 = vmatmul.mubr.bf16.gmra.mrb[0].mxu0 %v3511
        %v3686 = vpop.f32.mrb[0].mxu0
        %v3687 = vadd.f32 0.0, %v3686
        %v3688 = vpop.f32.mrb[0].mxu0
        %v3689 = vpop.f32.mrb[0].mxu0
        %v3690 = vadd.f32 0.0, %v3689
        %v3691 = vpop.f32.mrb[0].mxu0
        %3692 = vdwg.mxu0
        %v3693 = vadd.f32 %v3379, %v3551
        %v3694 = vadd.f32 %v3380, %v3554
        %v3695 = vadd.f32 %v3381, %v3559
        %v3696 = vadd.f32 %v3382, %v3562
        %v3697 = vadd.f32 %v3383, %v3567
        %v3698 = vadd.f32 %v3384, %v3570
        %v3699 = vadd.f32 %v3385, %v3575
        %v3700 = vadd.f32 %v3386, %v3578
        %v3701 = vadd.f32 %v3387, %v3583
        %v3702 = vadd.f32 %v3388, %v3586
        %v3703 = vadd.f32 %v3389, %v3591
        %v3704 = vadd.f32 %v3390, %v3594
        %v3705 = vadd.f32 %v3391, %v3599
        %v3706 = vadd.f32 %v3392, %v3602
        %v3707 = vadd.f32 %v3393, %v3607
        %v3708 = vadd.f32 %v3394, %v3610
        %v3709 = vadd.f32 %v3395, %v3615
        %v3710 = vadd.f32 %v3396, %v3618
        %v3711 = vadd.f32 %v3397, %v3623
        %v3712 = vadd.f32 %v3398, %v3626
        %v3713 = vadd.f32 %v3399, %v3631
        %v3714 = vadd.f32 %v3400, %v3634
        %v3715 = vadd.f32 %v3401, %v3639
        %v3716 = vadd.f32 %v3402, %v3642
        %v3717 = vadd.f32 %v3403, %v3647
        %v3718 = vadd.f32 %v3404, %v3650
        %v3719 = vadd.f32 %v3405, %v3655
        %v3720 = vadd.f32 %v3406, %v3658
        %v3721 = vadd.f32 %v3407, %v3663
        %v3722 = vadd.f32 %v3408, %v3666
        %v3723 = vadd.f32 %v3409, %v3671
        %v3724 = vadd.f32 %v3410, %v3674
        %v3725 = vadd.f32 %v3411, %v3679
        %v3726 = vadd.f32 %v3412, %v3682
        %v3727 = vadd.f32 %v3413, %v3687
        %v3728 = vadd.f32 %v3414, %v3690
        %3730 = vset.pattern.permute.xlu0 0
        %3731 = vperm.xlu0 %3730, %v245
        %v3732 = vpop.permute.xlu0 %3731
        %3735 = vset.pattern.permute.xlu0 0
        %3736 = vperm.xlu0 %3735, %v246
        %v3737 = vpop.permute.xlu0 %3736
        %3740 = vset.pattern.permute.xlu0 0
        %3741 = vperm.xlu0 %3740, %v247
        %v3742 = vpop.permute.xlu0 %3741
        %3745 = vset.pattern.permute.xlu0 0
        %3746 = vperm.xlu0 %3745, %v248
        %v3747 = vpop.permute.xlu0 %3746
        %3750 = vset.pattern.permute.xlu0 0
        %3751 = vperm.xlu0 %3750, %v249
        %v3752 = vpop.permute.xlu0 %3751
        %3755 = vset.pattern.permute.xlu0 0
        %3756 = vperm.xlu0 %3755, %v250
        %v3757 = vpop.permute.xlu0 %3756
        %3760 = vset.pattern.permute.xlu0 0
        %3761 = vperm.xlu0 %3760, %v251
        %v3762 = vpop.permute.xlu0 %3761
        %3765 = vset.pattern.permute.xlu0 0
        %3766 = vperm.xlu0 %3765, %v252
        %v3767 = vpop.permute.xlu0 %3766
        %3770 = vset.pattern.permute.xlu0 0
        %3771 = vperm.xlu0 %3770, %v253
        %v3772 = vpop.permute.xlu0 %3771
        %3775 = vset.pattern.permute.xlu0 0
        %3776 = vperm.xlu0 %3775, %v254
        %v3777 = vpop.permute.xlu0 %3776
        %3780 = vset.pattern.permute.xlu0 0
        %3781 = vperm.xlu0 %3780, %v255
        %v3782 = vpop.permute.xlu0 %3781
        %3785 = vset.pattern.permute.xlu0 0
        %3786 = vperm.xlu0 %3785, %v256
        %v3787 = vpop.permute.xlu0 %3786
        %3790 = vset.pattern.permute.xlu0 0
        %3791 = vperm.xlu0 %3790, %v257
        %v3792 = vpop.permute.xlu0 %3791
        %3795 = vset.pattern.permute.xlu0 0
        %3796 = vperm.xlu0 %3795, %v258
        %v3797 = vpop.permute.xlu0 %3796
        %3800 = vset.pattern.permute.xlu0 0
        %3801 = vperm.xlu0 %3800, %v259
        %v3802 = vpop.permute.xlu0 %3801
        %3805 = vset.pattern.permute.xlu0 0
        %3806 = vperm.xlu0 %3805, %v260
        %v3807 = vpop.permute.xlu0 %3806
        %3810 = vset.pattern.permute.xlu0 0
        %3811 = vperm.xlu0 %3810, %v261
        %v3812 = vpop.permute.xlu0 %3811
        %3815 = vset.pattern.permute.xlu0 0
        %3816 = vperm.xlu0 %3815, %v262
        %v3817 = vpop.permute.xlu0 %3816
        %3820 = vset.pattern.permute.xlu0 0
        %3821 = vperm.xlu0 %3820, %v263
        %v3822 = vpop.permute.xlu0 %3821
        %3825 = vset.pattern.permute.xlu0 0
        %3826 = vperm.xlu0 %3825, %v264
        %v3827 = vpop.permute.xlu0 %3826
        %3830 = vset.pattern.permute.xlu0 0
        %3831 = vperm.xlu0 %3830, %v265
        %v3832 = vpop.permute.xlu0 %3831
        %3835 = vset.pattern.permute.xlu0 0
        %3836 = vperm.xlu0 %3835, %v266
        %v3837 = vpop.permute.xlu0 %3836
        %3840 = vset.pattern.permute.xlu0 0
        %3841 = vperm.xlu0 %3840, %v267
        %v3842 = vpop.permute.xlu0 %3841
        %3845 = vset.pattern.permute.xlu0 0
        %3846 = vperm.xlu0 %3845, %v268
        %v3847 = vpop.permute.xlu0 %3846
        %3850 = vset.pattern.permute.xlu0 0
        %3851 = vperm.xlu0 %3850, %v269
        %v3852 = vpop.permute.xlu0 %3851
        %3855 = vset.pattern.permute.xlu0 0
        %3856 = vperm.xlu0 %3855, %v270
        %v3857 = vpop.permute.xlu0 %3856
        %3860 = vset.pattern.permute.xlu0 0
        %3861 = vperm.xlu0 %3860, %v271
        %v3862 = vpop.permute.xlu0 %3861
        %3865 = vset.pattern.permute.xlu0 0
        %3866 = vperm.xlu0 %3865, %v272
        %v3867 = vpop.permute.xlu0 %3866
        %3870 = vset.pattern.permute.xlu0 0
        %3871 = vperm.xlu0 %3870, %v273
        %v3872 = vpop.permute.xlu0 %3871
        %3875 = vset.pattern.permute.xlu0 0
        %3876 = vperm.xlu0 %3875, %v274
        %v3877 = vpop.permute.xlu0 %3876
        %3880 = vset.pattern.permute.xlu0 0
        %3881 = vperm.xlu0 %3880, %v275
        %v3882 = vpop.permute.xlu0 %3881
        %3885 = vset.pattern.permute.xlu0 0
        %3886 = vperm.xlu0 %3885, %v276
        %v3887 = vpop.permute.xlu0 %3886
        %3890 = vset.pattern.permute.xlu0 0
        %3891 = vperm.xlu0 %3890, %v277
        %v3892 = vpop.permute.xlu0 %3891
        %3895 = vset.pattern.permute.xlu0 0
        %3896 = vperm.xlu0 %3895, %v278
        %v3897 = vpop.permute.xlu0 %3896
        %3900 = vset.pattern.permute.xlu0 0
        %3901 = vperm.xlu0 %3900, %v279
        %v3902 = vpop.permute.xlu0 %3901
        %3905 = vset.pattern.permute.xlu0 0
        %3906 = vperm.xlu0 %3905, %v280
        %v3907 = vpop.permute.xlu0 %3906
        %v3909 = vmul.f32 %v3693, %v3732
        %v3910 = vmul.f32 %v3694, %v3737
        %v3911 = vmul.f32 %v3695, %v3742
        %v3912 = vmul.f32 %v3696, %v3747
        %v3913 = vmul.f32 %v3697, %v3752
        %v3914 = vmul.f32 %v3698, %v3757
        %v3915 = vmul.f32 %v3699, %v3762
        %v3916 = vmul.f32 %v3700, %v3767
        %v3917 = vmul.f32 %v3701, %v3772
        %v3918 = vmul.f32 %v3702, %v3777
        %v3919 = vmul.f32 %v3703, %v3782
        %v3920 = vmul.f32 %v3704, %v3787
        %v3921 = vmul.f32 %v3705, %v3792
        %v3922 = vmul.f32 %v3706, %v3797
        %v3923 = vmul.f32 %v3707, %v3802
        %v3924 = vmul.f32 %v3708, %v3807
        %v3925 = vmul.f32 %v3709, %v3812
        %v3926 = vmul.f32 %v3710, %v3817
        %v3927 = vmul.f32 %v3711, %v3822
        %v3928 = vmul.f32 %v3712, %v3827
        %v3929 = vmul.f32 %v3713, %v3832
        %v3930 = vmul.f32 %v3714, %v3837
        %v3931 = vmul.f32 %v3715, %v3842
        %v3932 = vmul.f32 %v3716, %v3847
        %v3933 = vmul.f32 %v3717, %v3852
        %v3934 = vmul.f32 %v3718, %v3857
        %v3935 = vmul.f32 %v3719, %v3862
        %v3936 = vmul.f32 %v3720, %v3867
        %v3937 = vmul.f32 %v3721, %v3872
        %v3938 = vmul.f32 %v3722, %v3877
        %v3939 = vmul.f32 %v3723, %v3882
        %v3940 = vmul.f32 %v3724, %v3887
        %v3941 = vmul.f32 %v3725, %v3892
        %v3942 = vmul.f32 %v3726, %v3897
        %v3943 = vmul.f32 %v3727, %v3902
        %v3944 = vmul.f32 %v3728, %v3907
        %3945 = vst [vmem:[%s243] sm:$0xff] %v3909
        %3946 = vst [vmem:[%s243 + $0x8] sm:$0xff] %v3910
        %3947 = vst [vmem:[%s243 + $0x10] sm:$0xff] %v3911
        %3948 = vst [vmem:[%s243 + $0x18] sm:$0xff] %v3912
        %3949 = vst [vmem:[%s243 + $0x20] sm:$0xff] %v3913
        %3950 = vst [vmem:[%s243 + $0x28] sm:$0xff] %v3914
        %3951 = vst [vmem:[%s243 + $0x30] sm:$0xff] %v3915
        %3952 = vst [vmem:[%s243 + $0x38] sm:$0xff] %v3916
        %3953 = vst [vmem:[%s243 + $0x40] sm:$0xff] %v3917
        %3954 = vst [vmem:[%s243 + $0x48] sm:$0xff] %v3918
        %3955 = vst [vmem:[%s243 + $0x50] sm:$0xff] %v3919
        %3956 = vst [vmem:[%s243 + $0x58] sm:$0xff] %v3920
        %3957 = vst [vmem:[%s243 + $0x60] sm:$0xff] %v3921
        %3958 = vst [vmem:[%s243 + $0x68] sm:$0xff] %v3922
        %3959 = vst [vmem:[%s243 + $0x70] sm:$0xff] %v3923
        %3960 = vst [vmem:[%s243 + $0x78] sm:$0xff] %v3924
        %3961 = vst [vmem:[%s243 + $0x80] sm:$0xff] %v3925
        %3962 = vst [vmem:[%s243 + $0x88] sm:$0xff] %v3926
        %3963 = vst [vmem:[%s243 + $0x90] sm:$0xff] %v3927
        %3964 = vst [vmem:[%s243 + $0x98] sm:$0xff] %v3928
        %3965 = vst [vmem:[%s243 + $0xa0] sm:$0xff] %v3929
        %3966 = vst [vmem:[%s243 + $0xa8] sm:$0xff] %v3930
        %3967 = vst [vmem:[%s243 + $0xb0] sm:$0xff] %v3931
        %3968 = vst [vmem:[%s243 + $0xb8] sm:$0xff] %v3932
        %3969 = vst [vmem:[%s243 + $0xc0] sm:$0xff] %v3933
        %3970 = vst [vmem:[%s243 + $0xc8] sm:$0xff] %v3934
        %3971 = vst [vmem:[%s243 + $0xd0] sm:$0xff] %v3935
        %3972 = vst [vmem:[%s243 + $0xd8] sm:$0xff] %v3936
        %3973 = vst [vmem:[%s243 + $0xe0] sm:$0xff] %v3937
        %3974 = vst [vmem:[%s243 + $0xe8] sm:$0xff] %v3938
        %3975 = vst [vmem:[%s243 + $0xf0] sm:$0xff] %v3939
        %3976 = vst [vmem:[%s243 + $0xf8] sm:$0xff] %v3940
        %3977 = vst [vmem:[%s243 + $0x100] sm:$0xff] %v3941
        %3978 = vst [vmem:[%s243 + $0x108] sm:$0xff] %v3942
        %3979 = vst [vmem:[%s243 + $0x110] sm:$0xff] %v3943
        %3980 = vst [vmem:[%s243 + $0x118] sm:$0xff] %v3944
        %v3981 = vadd.f32 %v3909, %v3910
        %v3982 = vadd.f32 %v3981, %v3911
        %v3983 = vadd.f32 %v3982, %v3912
        %v3984 = vadd.f32 %v3983, %v3913
        %v3985 = vadd.f32 %v3984, %v3914
        %v3986 = vadd.f32 %v3985, %v3915
        %v3987 = vadd.f32 %v3986, %v3916
        %v3988 = vadd.f32 %v3987, %v3917
        %v3989 = vadd.f32 %v3988, %v3918
        %v3990 = vadd.f32 %v3989, %v3919
        %v3991 = vadd.f32 %v3990, %v3920
        %v3992 = vadd.f32 %v3991, %v3921
        %v3993 = vadd.f32 %v3992, %v3922
        %v3994 = vadd.f32 %v3993, %v3923
        %v3995 = vadd.f32 %v3994, %v3924
        %v3996 = vadd.f32 %v3995, %v3925
        %v3997 = vadd.f32 %v3996, %v3926
        %v3998 = vadd.f32 %v3997, %v3927
        %v3999 = vadd.f32 %v3998, %v3928
        %v4000 = vadd.f32 %v3999, %v3929
        %v4001 = vadd.f32 %v4000, %v3930
        %v4002 = vadd.f32 %v4001, %v3931
        %v4003 = vadd.f32 %v4002, %v3932
        %v4004 = vadd.f32 %v4003, %v3933
        %v4005 = vadd.f32 %v4004, %v3934
        %v4006 = vadd.f32 %v4005, %v3935
        %v4007 = vadd.f32 %v4006, %v3936
        %v4008 = vadd.f32 %v4007, %v3937
        %v4009 = vadd.f32 %v4008, %v3938
        %v4010 = vadd.f32 %v4009, %v3939
        %v4011 = vadd.f32 %v4010, %v3940
        %v4012 = vadd.f32 %v4011, %v3941
        %v4013 = vadd.f32 %v4012, %v3942
        %v4014 = vadd.f32 %v4013, %v3943
        %v4015 = vadd.f32 %v4014, %v3944
        %v4016 = vrot.slane %v4015, 4
        %v4017 = vadd.f32 %v4015, %v4016
        %v4018 = vrot.slane %v4017, 2
        %v4019 = vadd.f32 %v4017, %v4018
        %v4020 = vrot.slane %v4019, 1
        %v4021 = vadd.f32 %v4019, %v4020
        %v4022 = vadd.f32 %v4021, 0.0
        %v4023 = vmul.f32 %v3909, %v3909
        %v4024 = vmul.f32 %v3910, %v3910
        %v4025 = vmul.f32 %v3911, %v3911
        %v4026 = vmul.f32 %v3912, %v3912
        %v4027 = vmul.f32 %v3913, %v3913
        %v4028 = vmul.f32 %v3914, %v3914
        %v4029 = vmul.f32 %v3915, %v3915
        %v4030 = vmul.f32 %v3916, %v3916
        %v4031 = vmul.f32 %v3917, %v3917
        %v4032 = vmul.f32 %v3918, %v3918
        %v4033 = vmul.f32 %v3919, %v3919
        %v4034 = vmul.f32 %v3920, %v3920
        %v4035 = vmul.f32 %v3921, %v3921
        %v4036 = vmul.f32 %v3922, %v3922
        %v4037 = vmul.f32 %v3923, %v3923
        %v4038 = vmul.f32 %v3924, %v3924
        %v4039 = vmul.f32 %v3925, %v3925
        %v4040 = vmul.f32 %v3926, %v3926
        %v4041 = vmul.f32 %v3927, %v3927
        %v4042 = vmul.f32 %v3928, %v3928
        %v4043 = vmul.f32 %v3929, %v3929
        %v4044 = vmul.f32 %v3930, %v3930
        %v4045 = vmul.f32 %v3931, %v3931
        %v4046 = vmul.f32 %v3932, %v3932
        %v4047 = vmul.f32 %v3933, %v3933
        %v4048 = vmul.f32 %v3934, %v3934
        %v4049 = vmul.f32 %v3935, %v3935
        %v4050 = vmul.f32 %v3936, %v3936
        %v4051 = vmul.f32 %v3937, %v3937
        %v4052 = vmul.f32 %v3938, %v3938
        %v4053 = vmul.f32 %v3939, %v3939
        %v4054 = vmul.f32 %v3940, %v3940
        %v4055 = vmul.f32 %v3941, %v3941
        %v4056 = vmul.f32 %v3942, %v3942
        %v4057 = vmul.f32 %v3943, %v3943
        %v4058 = vmul.f32 %v3944, %v3944
        %v4059 = vadd.f32 %v4023, %v4024
        %v4060 = vadd.f32 %v4059, %v4025
        %v4061 = vadd.f32 %v4060, %v4026
        %v4062 = vadd.f32 %v4061, %v4027
        %v4063 = vadd.f32 %v4062, %v4028
        %v4064 = vadd.f32 %v4063, %v4029
        %v4065 = vadd.f32 %v4064, %v4030
        %v4066 = vadd.f32 %v4065, %v4031
        %v4067 = vadd.f32 %v4066, %v4032
        %v4068 = vadd.f32 %v4067, %v4033
        %v4069 = vadd.f32 %v4068, %v4034
        %v4070 = vadd.f32 %v4069, %v4035
        %v4071 = vadd.f32 %v4070, %v4036
        %v4072 = vadd.f32 %v4071, %v4037
        %v4073 = vadd.f32 %v4072, %v4038
        %v4074 = vadd.f32 %v4073, %v4039
        %v4075 = vadd.f32 %v4074, %v4040
        %v4076 = vadd.f32 %v4075, %v4041
        %v4077 = vadd.f32 %v4076, %v4042
        %v4078 = vadd.f32 %v4077, %v4043
        %v4079 = vadd.f32 %v4078, %v4044
        %v4080 = vadd.f32 %v4079, %v4045
        %v4081 = vadd.f32 %v4080, %v4046
        %v4082 = vadd.f32 %v4081, %v4047
        %v4083 = vadd.f32 %v4082, %v4048
        %v4084 = vadd.f32 %v4083, %v4049
        %v4085 = vadd.f32 %v4084, %v4050
        %v4086 = vadd.f32 %v4085, %v4051
        %v4087 = vadd.f32 %v4086, %v4052
        %v4088 = vadd.f32 %v4087, %v4053
        %v4089 = vadd.f32 %v4088, %v4054
        %v4090 = vadd.f32 %v4089, %v4055
        %v4091 = vadd.f32 %v4090, %v4056
        %v4092 = vadd.f32 %v4091, %v4057
        %v4093 = vadd.f32 %v4092, %v4058
        %v4094 = vrot.slane %v4093, 4
        %v4095 = vadd.f32 %v4093, %v4094
        %v4096 = vrot.slane %v4095, 2
        %v4097 = vadd.f32 %v4095, %v4096
        %v4098 = vrot.slane %v4097, 1
        %v4099 = vadd.f32 %v4097, %v4098
        %v4100 = vadd.f32 %v4099, 0.0
        %4101 = vst [vmem:[%s227] sm:$0x1] %v4022
        %4102 = vst [vmem:[%s233] sm:$0x1] %v4100
        %p4103 = scmp.lt.s32.totalorder %s23, 1
        %s4104 = scalar_select %p4103, %s23, 1
        %s4105 = smul.addr %s4104, 36
        %s4106 = smul.addr %s4105, 8
        %s4107 = scalar_lea.vmem %s3, %s4106
        %s4108 = sand.u32 %s125, 1
        %s4109 = scalar_lea.sflag [#allocation3], %s4108
        %s4110 = sand.u32 %s125, 1
        %s4111 = scalar_lea.vmem [#allocation2], %s4110
        %s4112 = sand.u32 %s151, 1
        %s4113 = scalar_lea.sflag [#allocation5], %s4112
        %s4114 = sand.u32 %s151, 1
        %s4115 = scalar_lea.vmem [#allocation4], %s4114
        // Predicated region
        $region33: #{conv_forward.1} parent=31 // pred_check
          %p4116 = pneg %p109
        $region34: #{conv_forward.1} parent=31 // pred_check_branch
          %4118 = sbr.rel (%p4116) target = $region36
        $region35: #{conv_forward.1} parent=31 // pred_region
          _
        $region36: #{conv_forward.1} parent=31 // pred_fallthru
          _
        // Predicated region
        $region37: #{conv_forward.1} parent=31 // pred_check
          %p4119 = pneg %p135
        $region38: #{conv_forward.1} parent=31 // pred_check_branch
          %4121 = sbr.rel (%p4119) target = $region40
        $region39: #{conv_forward.1} parent=31 // pred_region
          %s4123 = ssub.s32 16, 16
          %4124 = vsyncadd %s4109, %s4123
          %s4125 = smul.addr %s23, 16
          %s4126 = scalar_lea.hbm %s4, %s4125
          %s4128 = sshll.u32 %s4111, 4
          %s4129 = int_to_ptr.vmem [resolvable:$true] %s4128
          %4131 = dma.vmem_to_hbm [thread:$0]  %s4129, 16, %s4126, %s4109
        $region40: #{conv_forward.1} parent=31 // pred_fallthru
          _
        // Predicated region
        $region41: #{conv_forward.1} parent=31 // pred_check
          %p4132 = pneg %p161
        $region42: #{conv_forward.1} parent=31 // pred_check_branch
          %4134 = sbr.rel (%p4132) target = $region44
        $region43: #{conv_forward.1} parent=31 // pred_region
          %s4136 = ssub.s32 16, 16
          %4137 = vsyncadd %s4113, %s4136
          %s4138 = smul.addr %s23, 16
          %s4139 = scalar_lea.hbm %s5, %s4138
          %s4141 = sshll.u32 %s4115, 4
          %s4142 = int_to_ptr.vmem [resolvable:$true] %s4141
          %4144 = dma.vmem_to_hbm [thread:$0]  %s4142, 16, %s4139, %s4113
        $region44: #{conv_forward.1} parent=31 // pred_fallthru
          _
      $region32: #{conv_forward.1} parent=5 // pred_fallthru
        _
      %p4145 = scmp.le.s32.totalorder 2, %s18
      // Predicated region
      $region45: #{conv_forward.1} parent=5 // pred_check
        %p4146 = pneg %p4145
      $region46: #{conv_forward.1} parent=5 // pred_check_branch
        %4148 = sbr.rel (%p4146) target = $region48
      $region47: #{conv_forward.1} parent=5 // pred_region
        %s4149 = ssub.s32 %s18, 2
        // Predicated region
        $region49: #{conv_forward.1} parent=47 // pred_check
          %p4150 = pneg %p115
        $region50: #{conv_forward.1} parent=47 // pred_check_branch
          %4152 = sbr.rel (%p4150) target = $region52
        $region51: #{conv_forward.1} parent=47 // pred_region
          %p4153 = scmp.lt.s32.totalorder %s24, 1
          %s4154 = scalar_select %p4153, %s24, 1
          %s4155 = smul.addr %s4154, 36
          %s4156 = smul.addr %s4155, 8
          %s4157 = scalar_lea.vmem %s3, %s4156
        $region52: #{conv_forward.1} parent=47 // pred_fallthru
          _
        // Predicated region
        $region53: #{conv_forward.1} parent=47 // pred_check
          %p4158 = pneg %p141
        $region54: #{conv_forward.1} parent=47 // pred_check_branch
          %4160 = sbr.rel (%p4158) target = $region56
        $region55: #{conv_forward.1} parent=47 // pred_region
          %s4161 = sand.u32 %s126, 1
          %s4162 = scalar_lea.sflag [#allocation3], %s4161
          %s4163 = sand.u32 %s126, 1
          %s4164 = scalar_lea.vmem [#allocation2], %s4163
          %4165 = dma.done %s4162, 16
        $region56: #{conv_forward.1} parent=47 // pred_fallthru
          _
        // Predicated region
        $region57: #{conv_forward.1} parent=47 // pred_check
          %p4166 = pneg %p167
        $region58: #{conv_forward.1} parent=47 // pred_check_branch
          %4168 = sbr.rel (%p4166) target = $region60
        $region59: #{conv_forward.1} parent=47 // pred_region
          %s4169 = sand.u32 %s152, 1
          %s4170 = scalar_lea.sflag [#allocation5], %s4169
          %s4171 = sand.u32 %s152, 1
          %s4172 = scalar_lea.vmem [#allocation4], %s4171
          %4173 = dma.done %s4170, 16
        $region60: #{conv_forward.1} parent=47 // pred_fallthru
          _
      $region48: #{conv_forward.1} parent=5 // pred_fallthru
        _
    $region6: #{conv_forward.1} parent=1 // loop_footer
      %s22 = sadd.s32 1, %s18
    $region7: #{conv_forward.1} parent=1 // loop_footer_branch
      %17 = sbr.rel target = $region3
    $region8: #{conv_forward.1} parent=1 // loop_exit
      _
    %4174 = vsyncpa [#allocation3], 1
    %s4175 = scalar_lea.sflag [#allocation3], 1
    %4176 = vsyncpa %s4175, 1
    %4177 = vsyncpa [#allocation5], 1
    %s4178 = scalar_lea.sflag [#allocation5], 1
    %4179 = vsyncpa %s4178, 1

</llo_original>
